<compile_context>
chip_gen: v5e
topology: v5e:2x2
jax: 0.10.0
libtpu: 0.0.40
codegen_flags: <defaults>
</compile_context>

<pallas_src>
import functools

import numpy as np
import jax
import jax.numpy as jnp
from jax import lax
from jax.experimental import pallas as pl
from jax.experimental.pallas import tpu as pltpu


# ----------------------------------------------------------------------------
# Static layout helpers (shared by wrapper and kernel)
# ----------------------------------------------------------------------------
def _flat_dims(H, W, TB):
    """Flat padded per-image layout: (H+4) x (W+2) (1 top / 1 left / 1 right /
    3 bottom rows of zeros; the 2 extra bottom rows absorb the im2col tap
    overhang so every tap is an in-bounds contiguous lane slice)."""
    Wp = W + 2
    PBe = (H + 4) * Wp                # flat slots per image
    M = TB * PBe - (2 * Wp + 2)       # common width of all 9 tap slices
    return Wp, PBe, M


def _pool_sel(tb, H, W, to_padded_next):
    """For each column of the next stage's flat layout, the source index in
    this stage's (row-max'ed, col-max'ed) conv output; -1 => write a zero
    (pad borders / extra rows)."""
    Wp, PBe, _ = _flat_dims(H, W, tb)
    H2, W2 = H // 2, W // 2
    if to_padded_next:
        PBn = (H2 + 4) * (W2 + 2)
        sel = np.full((tb * PBn,), -1, dtype=np.int32)
        for b in range(tb):
            for h2 in range(H2):
                for w2 in range(W2):
                    n = b * PBn + (h2 + 1) * (W2 + 2) + (w2 + 1)
                    sel[n] = b * PBe + (2 * h2) * Wp + 2 * w2
    else:
        # final stage: compact, position-major (p = h*W2 + w, then image)
        sel = np.full((H2 * W2 * tb,), -1, dtype=np.int32)
        for b in range(tb):
            for h2 in range(H2):
                for w2 in range(W2):
                    n = (h2 * W2 + w2) * tb + b
                    sel[n] = b * PBe + (2 * h2) * Wp + 2 * w2
    return sel.reshape(1, -1)


# ----------------------------------------------------------------------------
# One conv3x3 (+bias, ReLU) + 2x2 maxpool stage, channel-major flat layout.
# ----------------------------------------------------------------------------
def _conv_stage(read_src, w_ref, b_ref, patch_ref, sel_ref,
                Cin, Cout, H, W, TB, n_next):
    Wp, _, M = _flat_dims(H, W, TB)
    Mv = M - Wp                       # after vertical (row-pair) max
    Mw = Mv - 1                       # after horizontal (col-pair) max

    # im2col: 9 shifted contiguous lane slices of the flat padded input,
    # written at static sublane offsets (no concat, no reshapes).
    t = 0
    for dy in range(3):
        for dx in range(3):
            off = dy * Wp + dx
            patch_ref[t * Cin:(t + 1) * Cin, 0:M] = read_src(off, M)
            t += 1

    # conv as ONE lane-dense MXU matmul: (Cout, 9*Cin) @ (9*Cin, TB*flat)
    acc = jnp.dot(w_ref[...], patch_ref[0:9 * Cin, 0:M],
                  preferred_element_type=jnp.float32)
    acc = jnp.maximum(acc + b_ref[...], 0.0)          # bias + ReLU

    # 2x2 maxpool: two shifted maxima (reuse the patch scratch as buffer so
    # all slicing is plain VMEM ref slicing) ...
    patch_ref[0:Cout, 0:M] = acc
    vmax = jnp.maximum(patch_ref[0:Cout, 0:Mv],
                       patch_ref[0:Cout, Wp:Wp + Mv])
    patch_ref[0:Cout, 0:Mv] = vmax
    wmax = jnp.maximum(patch_ref[0:Cout, 0:Mw],
                       patch_ref[0:Cout, 1:1 + Mw])

    # ... then one 0/1 selection matmul that stride-2 downsamples, drops the
    # padding/garbage columns and scatters into the next stage's flat padded
    # layout (zero for border columns).
    m_iota = lax.broadcasted_iota(jnp.int32, (Mw, n_next), 0)
    sel = jnp.where(m_iota == sel_ref[...], 1.0, 0.0)
    return jnp.dot(wmax, sel, preferred_element_type=jnp.float32)


# ----------------------------------------------------------------------------
# Fused whole-model kernel (one grid step = TB images)
# ----------------------------------------------------------------------------
def convnet_fused_kernel(
    x_ref,                     # (1, Cin, TB*PBe1)  pre-padded, per-image flat
    mask_ref,                  # (1, Mfeat, TB)
    sel1_ref, sel2_ref, sel3_ref,
    w1_ref, b1_ref, w2_ref, b2_ref, w3_ref, b3_ref,
    fc1wc_ref, fc1wm_ref, fc1b_ref,
    fc2w_ref, fc2b_ref, fc3w_ref, fc3b_ref, fc4w_ref, fc4b_ref,
    o_ref,                     # (TB, out_ch, 1)
    patch1_ref, pad2_ref, patch2_ref, pad3_ref, patch3_ref,
    *, TB, Cin, C1, C2, C3, H, W, out_ch,
):
    H2, W2 = H // 2, W // 2
    H3, W3 = H // 4, W // 4
    Hf, Wf = H // 8, W // 8
    n2 = TB * (H2 + 4) * (W2 + 2)
    n3 = TB * (H3 + 4) * (W3 + 2)
    nf = Hf * Wf * TB

    # conv1 -> ReLU -> pool.  The input block IS the flat padded activation.
    pooled1 = _conv_stage(lambda off, m: x_ref[0, :, off:off + m],
                          w1_ref, b1_ref, patch1_ref, sel1_ref,
                          Cin, C1, H, W, TB, n2)
    pad2_ref[...] = pooled1
    # TODO(synk): nn.Dropout2d(0.25) is identity at inference; training-mode
    # channel dropout is not implemented.

    pooled2 = _conv_stage(lambda off, m: pad2_ref[:, off:off + m],
                          w2_ref, b2_ref, patch2_ref, sel2_ref,
                          C1, C2, H2, W2, TB, n3)
    pad3_ref[...] = pooled2

    y3 = _conv_stage(lambda off, m: pad3_ref[:, off:off + m],
                     w3_ref, b3_ref, patch3_ref, sel3_ref,
                     C2, C3, H3, W3, TB, nf)
    # y3: (C3, Hf*Wf*TB), columns grouped by spatial position (position-major)
    patch3_ref[0:C3, 0:nf] = y3

    # ---- MLP head, kept transposed (features x TB) so PyTorch's native
    # (out, in) Linear weights are used directly; no flatten/concat shuffles.
    h = fc1b_ref[...] + jnp.dot(fc1wm_ref[...], mask_ref[0],
                                preferred_element_type=jnp.float32)
    for p in range(Hf * Wf):
        h = h + jnp.dot(fc1wc_ref[p],
                        patch3_ref[0:C3, p * TB:(p + 1) * TB],
                        preferred_element_type=jnp.float32)
    h = jnp.maximum(h, 0.0)
    h = jnp.maximum(jnp.dot(fc2w_ref[...], h,
                            preferred_element_type=jnp.float32)
                    + fc2b_ref[...], 0.0)
    h = jnp.maximum(jnp.dot(fc3w_ref[...], h,
                            preferred_element_type=jnp.float32)
                    + fc3b_ref[...], 0.0)
    out_t = jnp.dot(fc4w_ref[...], h,
                    preferred_element_type=jnp.float32) + fc4b_ref[...]

    # out_t: (out_ch, TB) -> one (TB, out_ch, 1) output block per step
    patch3_ref[0:out_ch, 0:TB] = out_t
    for b in range(TB):
        o_ref[b] = patch3_ref[0:out_ch, b:b + 1]


# ----------------------------------------------------------------------------
# One-time parameter preprocessing (outside the hot path)
# ----------------------------------------------------------------------------
def prepare_params(p, H, W):
    C3 = p["conv3_w"].shape[-1]
    Hf, Wf = H // 8, W // 8
    conv_feat = C3 * Hf * Wf

    q = {}
    for name in ("conv1", "conv2", "conv3"):
        w = p[name + "_w"]                                 # (3,3,Cin,Cout) HWIO
        kh, kw, cin, cout = w.shape
        q[name + "_w"] = jnp.transpose(w.reshape(kh * kw * cin, cout))  # (Cout, 9*Cin)
        q[name + "_b"] = p[name + "_b"].reshape(cout, 1)
    # fc1: conv-feature part reshaped to (Hf*Wf, n1, C3) (per spatial
    # position, pre-transposed); mask part pre-transposed to (n1, Mfeat).
    q["fc1_wc"] = jnp.transpose(
        p["fc1_w"][:conv_feat].reshape(C3, Hf * Wf, -1), (1, 2, 0))
    q["fc1_wm"] = p["fc1_w"][conv_feat:].T
    q["fc1_b"] = p["fc1_b"].reshape(-1, 1)
    for n in ("fc2", "fc3", "fc4"):
        q[n + "_w"] = p[n + "_w"].T                        # (out, in)
        q[n + "_b"] = p[n + "_b"].reshape(-1, 1)
    return q


# ----------------------------------------------------------------------------
# Wrapper
# ----------------------------------------------------------------------------
def convnet_forward(mask, x_nchw, q, tb=2):
    B, Cin, H, W = x_nchw.shape
    assert H % 8 == 0 and W % 8 == 0, "three 2x2 pools need H, W divisible by 8"
    assert B % tb == 0, "batch must be divisible by the batch tile"
    nB = B // tb

    C1 = q["conv1_w"].shape[0]
    C2 = q["conv2_w"].shape[0]
    C3 = q["conv3_w"].shape[0]
    out_ch = q["fc4_w"].shape[0]

    Wp1, PBe1, M1 = _flat_dims(H, W, tb)
    _, PBe2, M2 = _flat_dims(H // 2, W // 2, tb)
    _, PBe3, M3 = _flat_dims(H // 4, W // 4, tb)

    # Input prep (tiny; at real sizes keep inputs pre-padded upstream or fold
    # into the kernel): zero-pad each image to (H+4, W+2) and flatten so the
    # kernel's 9 im2col taps are plain contiguous lane slices.
    xp = jnp.pad(x_nchw, ((0, 0), (0, 0), (1, 3), (1, 1)))
    xp = xp.reshape(nB, tb, Cin, PBe1).transpose(0, 2, 1, 3)
    xp = xp.reshape(nB, Cin, tb * PBe1)

    mask_flat = mask.reshape(B, -1)
    Mfeat = mask_flat.shape[1]
    mk = mask_flat.T.reshape(Mfeat, nB, tb).transpose(1, 0, 2)   # (nB, Mfeat, tb)

    sel1 = jnp.asarray(_pool_sel(tb, H, W, True))
    sel2 = jnp.asarray(_pool_sel(tb, H // 2, W // 2, True))
    sel3 = jnp.asarray(_pool_sel(tb, H // 4, W // 4, False))

    def full(a):
        return pl.BlockSpec(a.shape, lambda i, _n=a.ndim: (0,) * _n)

    kern = functools.partial(
        convnet_fused_kernel,
        TB=tb, Cin=Cin, C1=C1, C2=C2, C3=C3, H=H, W=W, out_ch=out_ch)

    out = pl.pallas_call(
        kern,
        out_shape=jax.ShapeDtypeStruct((B, out_ch, 1), jnp.float32),
        grid=(nB,),
        in_specs=[
            pl.BlockSpec((1, Cin, tb * PBe1), lambda i: (i, 0, 0)),
            pl.BlockSpec((1, Mfeat, tb), lambda i: (i, 0, 0)),
            full(sel1), full(sel2), full(sel3),
            full(q["conv1_w"]), full(q["conv1_b"]),
            full(q["conv2_w"]), full(q["conv2_b"]),
            full(q["conv3_w"]), full(q["conv3_b"]),
            full(q["fc1_wc"]), full(q["fc1_wm"]), full(q["fc1_b"]),
            full(q["fc2_w"]), full(q["fc2_b"]),
            full(q["fc3_w"]), full(q["fc3_b"]),
            full(q["fc4_w"]), full(q["fc4_b"]),
        ],
        out_specs=pl.BlockSpec((tb, out_ch, 1), lambda i: (i, 0, 0)),
        scratch_shapes=[
            pltpu.VMEM((max(9 * Cin, C1), M1), jnp.float32),     # patch1 / buf
            pltpu.VMEM((C1, tb * PBe2), jnp.float32),            # pad2 (flat)
            pltpu.VMEM((max(9 * C1, C2), M2), jnp.float32),      # patch2 / buf
            pltpu.VMEM((C2, tb * PBe3), jnp.float32),            # pad3 (flat)
            pltpu.VMEM((max(9 * C2, C3, out_ch), M3), jnp.float32),  # patch3
        ],
        compiler_params=pltpu.CompilerParams(
            dimension_semantics=("parallel",)),
    )(xp, mk, sel1, sel2, sel3,
      q["conv1_w"], q["conv1_b"], q["conv2_w"], q["conv2_b"],
      q["conv3_w"], q["conv3_b"],
      q["fc1_wc"], q["fc1_wm"], q["fc1_b"],
      q["fc2_w"], q["fc2_b"], q["fc3_w"], q["fc3_b"],
      q["fc4_w"], q["fc4_b"])
    return out.reshape(B, out_ch)


# ----------------------------------------------------------------------------
# Pure-JAX reference (PyTorch semantics), full f32 precision
# ----------------------------------------------------------------------------
def ref_forward(mask, x_nchw, p):
    x = jnp.transpose(x_nchw, (0, 2, 3, 1))

    def block(x, w, b):
        y = lax.conv_general_dilated(
            x, w, (1, 1), "SAME",
            dimension_numbers=("NHWC", "HWIO", "NHWC"),
            precision=lax.Precision.HIGHEST)
        y = jnp.maximum(y + b.reshape(1, 1, 1, -1), 0.0)
        y = lax.reduce_window(y, -jnp.inf, lax.max,
                              (1, 2, 2, 1), (1, 2, 2, 1), "VALID")
        return y

    x = block(x, p["conv1_w"], p["conv1_b"])
    x = block(x, p["conv2_w"], p["conv2_b"])
    x = block(x, p["conv3_w"], p["conv3_b"])
    x = jnp.transpose(x, (0, 3, 1, 2))
    B = x.shape[0]
    feat = jnp.concatenate([x.reshape(B, -1), mask.reshape(B, -1)], axis=1)
    mm = lambda a, b: jnp.dot(a, b, precision=lax.Precision.HIGHEST)
    h = jnp.maximum(mm(feat, p["fc1_w"]) + p["fc1_b"], 0.0)
    h = jnp.maximum(mm(h, p["fc2_w"]) + p["fc2_b"], 0.0)
    h = jnp.maximum(mm(h, p["fc3_w"]) + p["fc3_b"], 0.0)
    return mm(h, p["fc4_w"]) + p["fc4_b"]


# ----------------------------------------------------------------------------
# Deterministic parameter initialization (shapes from ConvNet.__init__,
# scaled down: fc1 input = 64*(H/8)*(W/8) + mask size)
# ----------------------------------------------------------------------------
def init_params(key, in_channel, features, out_channels, fc1_in,
                n1=240, n2=120, n3=60):
    ks = jax.random.split(key, 14)

    def wn(k, shape, fan_in):
        return jax.random.normal(k, shape, jnp.float32) / jnp.sqrt(fan_in)

    p = {}
    p["conv1_w"] = wn(ks[0], (3, 3, in_channel, features), 9 * in_channel)
    p["conv1_b"] = wn(ks[1], (features,), 9 * in_channel)
    p["conv2_w"] = wn(ks[2], (3, 3, features, 2 * features), 9 * features)
    p["conv2_b"] = wn(ks[3], (2 * features,), 9 * features)
    p["conv3_w"] = wn(ks[4], (3, 3, 2 * features, 64), 9 * 2 * features)
    p["conv3_b"] = wn(ks[5], (64,), 9 * 2 * features)
    p["fc1_w"] = wn(ks[6], (fc1_in, n1), fc1_in)
    p["fc1_b"] = wn(ks[7], (1, n1), fc1_in)
    p["fc2_w"] = wn(ks[8], (n1, n2), n1)
    p["fc2_b"] = wn(ks[9], (1, n2), n1)
    p["fc3_w"] = wn(ks[10], (n2, n3), n2)
    p["fc3_b"] = wn(ks[11], (1, n3), n2)
    p["fc4_w"] = wn(ks[12], (n3, out_channels), n3)
    p["fc4_b"] = wn(ks[13], (1, out_channels), n3)
    return p


if __name__ == "__main__":
    key = jax.random.PRNGKey(0)
    B, in_channel, features, out_channels = 4, 4, 8, 10
    Hx = Wx = 16    # after 3 pools -> 2x2 with 64 channels = 256 conv feats
    Hm = Wm = 8     # mask -> 64 feats; fc1 input = 256 + 64 = 320

    k_x, k_m, k_p = jax.random.split(key, 3)
    x = jax.random.normal(k_x, (B, in_channel, Hx, Wx), jnp.float32)
    mask = jax.random.normal(k_m, (B, 1, Hm, Wm), jnp.float32)

    fc1_in = 64 * (Hx // 8) * (Wx // 8) + 1 * Hm * Wm
    params = init_params(k_p, in_channel, features, out_channels, fc1_in)
    kparams = prepare_params(params, Hx, Wx)

    out = jax.block_until_ready(convnet_forward(mask, x, kparams, tb=2))
    ref = jax.block_until_ready(ref_forward(mask, x, params))

    assert out.shape == (B, out_channels), out.shape
    err = float(jnp.max(jnp.abs(out - ref)))
    assert jnp.allclose(out, ref, rtol=2e-3, atol=2e-3), err
    print("KERNEL_OK")
</pallas_src>

<mosaic_0001>
module attributes {stable_mosaic.version = 11 : i64} {
  func.func @convnet_fused_kernel(%arg0: i32, %arg1: memref<1x4x720xf32, #tpu.memory_space<vmem>>, %arg2: memref<1x64x2xf32, #tpu.memory_space<vmem>>, %arg3: memref<1x240xi32, #tpu.memory_space<vmem>>, %arg4: memref<1x96xi32, #tpu.memory_space<vmem>>, %arg5: memref<1x8xi32, #tpu.memory_space<vmem>>, %arg6: memref<8x36xf32, #tpu.memory_space<vmem>>, %arg7: memref<8x1xf32, #tpu.memory_space<vmem>>, %arg8: memref<16x72xf32, #tpu.memory_space<vmem>>, %arg9: memref<16x1xf32, #tpu.memory_space<vmem>>, %arg10: memref<64x144xf32, #tpu.memory_space<vmem>>, %arg11: memref<64x1xf32, #tpu.memory_space<vmem>>, %arg12: memref<4x240x64xf32, #tpu.memory_space<vmem>>, %arg13: memref<240x64xf32, #tpu.memory_space<vmem>>, %arg14: memref<240x1xf32, #tpu.memory_space<vmem>>, %arg15: memref<120x240xf32, #tpu.memory_space<vmem>>, %arg16: memref<120x1xf32, #tpu.memory_space<vmem>>, %arg17: memref<60x120xf32, #tpu.memory_space<vmem>>, %arg18: memref<60x1xf32, #tpu.memory_space<vmem>>, %arg19: memref<10x60xf32, #tpu.memory_space<vmem>>, %arg20: memref<10x1xf32, #tpu.memory_space<vmem>>, %arg21: memref<2x10x1xf32, #tpu.memory_space<vmem>>, %arg22: memref<36x682xf32, #tpu.memory_space<vmem>>, %arg23: memref<8x240xf32, #tpu.memory_space<vmem>>, %arg24: memref<72x218xf32, #tpu.memory_space<vmem>>, %arg25: memref<16x96xf32, #tpu.memory_space<vmem>>, %arg26: memref<144x82xf32, #tpu.memory_space<vmem>>) attributes {dimension_semantics = [#tpu.dimension_semantics<parallel>], iteration_bounds = array<i64: 2>, scalar_prefetch = 0 : i64, scratch_operands = 5 : i64, tpu.core_type = #tpu.core_type<tc>, window_params = [{transform_indices = @transform_0, window_bounds = array<i64: 1, 4, 720>}, {transform_indices = @transform_1, window_bounds = array<i64: 1, 64, 2>}, {pipeline_mode = #tpu.pipeline_mode<synchronous>, transform_indices = @transform_2, window_bounds = array<i64: 1, 240>}, {pipeline_mode = #tpu.pipeline_mode<synchronous>, transform_indices = @transform_3, window_bounds = array<i64: 1, 96>}, {pipeline_mode = #tpu.pipeline_mode<synchronous>, transform_indices = @transform_4, window_bounds = array<i64: 1, 8>}, {pipeline_mode = #tpu.pipeline_mode<synchronous>, transform_indices = @transform_5, window_bounds = array<i64: 8, 36>}, {pipeline_mode = #tpu.pipeline_mode<synchronous>, transform_indices = @transform_6, window_bounds = array<i64: 8, 1>}, {pipeline_mode = #tpu.pipeline_mode<synchronous>, transform_indices = @transform_7, window_bounds = array<i64: 16, 72>}, {pipeline_mode = #tpu.pipeline_mode<synchronous>, transform_indices = @transform_8, window_bounds = array<i64: 16, 1>}, {pipeline_mode = #tpu.pipeline_mode<synchronous>, transform_indices = @transform_9, window_bounds = array<i64: 64, 144>}, {pipeline_mode = #tpu.pipeline_mode<synchronous>, transform_indices = @transform_10, window_bounds = array<i64: 64, 1>}, {pipeline_mode = #tpu.pipeline_mode<synchronous>, transform_indices = @transform_11, window_bounds = array<i64: 4, 240, 64>}, {pipeline_mode = #tpu.pipeline_mode<synchronous>, transform_indices = @transform_12, window_bounds = array<i64: 240, 64>}, {pipeline_mode = #tpu.pipeline_mode<synchronous>, transform_indices = @transform_13, window_bounds = array<i64: 240, 1>}, {pipeline_mode = #tpu.pipeline_mode<synchronous>, transform_indices = @transform_14, window_bounds = array<i64: 120, 240>}, {pipeline_mode = #tpu.pipeline_mode<synchronous>, transform_indices = @transform_15, window_bounds = array<i64: 120, 1>}, {pipeline_mode = #tpu.pipeline_mode<synchronous>, transform_indices = @transform_16, window_bounds = array<i64: 60, 120>}, {pipeline_mode = #tpu.pipeline_mode<synchronous>, transform_indices = @transform_17, window_bounds = array<i64: 60, 1>}, {pipeline_mode = #tpu.pipeline_mode<synchronous>, transform_indices = @transform_18, window_bounds = array<i64: 10, 60>}, {pipeline_mode = #tpu.pipeline_mode<synchronous>, transform_indices = @transform_19, window_bounds = array<i64: 10, 1>}, {transform_indices = @transform_20, window_bounds = array<i64: 2, 10, 1>}]} {
    %c0 = arith.constant 0 : index
    %c0_0 = arith.constant 0 : index
    %c0_1 = arith.constant 0 : index
    %0 = vector.load %arg1[%c0, %c0_0, %c0_1] : memref<1x4x720xf32, #tpu.memory_space<vmem>>, vector<1x4x682xf32>
    %1 = vector.shape_cast %0 : vector<1x4x682xf32> to vector<4x682xf32>
    %c0_2 = arith.constant 0 : index
    %c0_3 = arith.constant 0 : index
    %2 = vector.load %arg22[%c0_2, %c0_3] : memref<36x682xf32, #tpu.memory_space<vmem>>, vector<4x682xf32>
    tpu.vector_store %arg22[%c0_2, %c0_3], %1 {strides = array<i32>} : memref<36x682xf32, #tpu.memory_space<vmem>>, vector<4x682xf32>,
    %c0_4 = arith.constant 0 : index
    %c0_5 = arith.constant 0 : index
    %c1 = arith.constant 1 : index
    %3 = vector.load %arg1[%c0_4, %c0_5, %c1] : memref<1x4x720xf32, #tpu.memory_space<vmem>>, vector<1x4x682xf32>
    %4 = vector.shape_cast %3 : vector<1x4x682xf32> to vector<4x682xf32>
    %c4 = arith.constant 4 : index
    %c0_6 = arith.constant 0 : index
    %5 = vector.load %arg22[%c4, %c0_6] : memref<36x682xf32, #tpu.memory_space<vmem>>, vector<4x682xf32>
    tpu.vector_store %arg22[%c4, %c0_6], %4 {strides = array<i32>} : memref<36x682xf32, #tpu.memory_space<vmem>>, vector<4x682xf32>,
    %c0_7 = arith.constant 0 : index
    %c0_8 = arith.constant 0 : index
    %c2 = arith.constant 2 : index
    %6 = vector.load %arg1[%c0_7, %c0_8, %c2] : memref<1x4x720xf32, #tpu.memory_space<vmem>>, vector<1x4x682xf32>
    %7 = vector.shape_cast %6 : vector<1x4x682xf32> to vector<4x682xf32>
    %c8 = arith.constant 8 : index
    %c0_9 = arith.constant 0 : index
    %8 = vector.load %arg22[%c8, %c0_9] : memref<36x682xf32, #tpu.memory_space<vmem>>, vector<4x682xf32>
    tpu.vector_store %arg22[%c8, %c0_9], %7 {strides = array<i32>} : memref<36x682xf32, #tpu.memory_space<vmem>>, vector<4x682xf32>,
    %c0_10 = arith.constant 0 : index
    %c0_11 = arith.constant 0 : index
    %c18 = arith.constant 18 : index
    %9 = vector.load %arg1[%c0_10, %c0_11, %c18] : memref<1x4x720xf32, #tpu.memory_space<vmem>>, vector<1x4x682xf32>
    %10 = vector.shape_cast %9 : vector<1x4x682xf32> to vector<4x682xf32>
    %c12 = arith.constant 12 : index
    %c0_12 = arith.constant 0 : index
    %11 = vector.load %arg22[%c12, %c0_12] : memref<36x682xf32, #tpu.memory_space<vmem>>, vector<4x682xf32>
    tpu.vector_store %arg22[%c12, %c0_12], %10 {strides = array<i32>} : memref<36x682xf32, #tpu.memory_space<vmem>>, vector<4x682xf32>,
    %c0_13 = arith.constant 0 : index
    %c0_14 = arith.constant 0 : index
    %c19 = arith.constant 19 : index
    %12 = vector.load %arg1[%c0_13, %c0_14, %c19] : memref<1x4x720xf32, #tpu.memory_space<vmem>>, vector<1x4x682xf32>
    %13 = vector.shape_cast %12 : vector<1x4x682xf32> to vector<4x682xf32>
    %c16 = arith.constant 16 : index
    %c0_15 = arith.constant 0 : index
    %14 = vector.load %arg22[%c16, %c0_15] : memref<36x682xf32, #tpu.memory_space<vmem>>, vector<4x682xf32>
    tpu.vector_store %arg22[%c16, %c0_15], %13 {strides = array<i32>} : memref<36x682xf32, #tpu.memory_space<vmem>>, vector<4x682xf32>,
    %c0_16 = arith.constant 0 : index
    %c0_17 = arith.constant 0 : index
    %c20 = arith.constant 20 : index
    %15 = vector.load %arg1[%c0_16, %c0_17, %c20] : memref<1x4x720xf32, #tpu.memory_space<vmem>>, vector<1x4x682xf32>
    %16 = vector.shape_cast %15 : vector<1x4x682xf32> to vector<4x682xf32>
    %c20_18 = arith.constant 20 : index
    %c0_19 = arith.constant 0 : index
    %17 = vector.load %arg22[%c20_18, %c0_19] : memref<36x682xf32, #tpu.memory_space<vmem>>, vector<4x682xf32>
    tpu.vector_store %arg22[%c20_18, %c0_19], %16 {strides = array<i32>} : memref<36x682xf32, #tpu.memory_space<vmem>>, vector<4x682xf32>,
    %c0_20 = arith.constant 0 : index
    %c0_21 = arith.constant 0 : index
    %c36 = arith.constant 36 : index
    %18 = vector.load %arg1[%c0_20, %c0_21, %c36] : memref<1x4x720xf32, #tpu.memory_space<vmem>>, vector<1x4x682xf32>
    %19 = vector.shape_cast %18 : vector<1x4x682xf32> to vector<4x682xf32>
    %c24 = arith.constant 24 : index
    %c0_22 = arith.constant 0 : index
    %20 = vector.load %arg22[%c24, %c0_22] : memref<36x682xf32, #tpu.memory_space<vmem>>, vector<4x682xf32>
    tpu.vector_store %arg22[%c24, %c0_22], %19 {strides = array<i32>} : memref<36x682xf32, #tpu.memory_space<vmem>>, vector<4x682xf32>,
    %c0_23 = arith.constant 0 : index
    %c0_24 = arith.constant 0 : index
    %c37 = arith.constant 37 : index
    %21 = vector.load %arg1[%c0_23, %c0_24, %c37] : memref<1x4x720xf32, #tpu.memory_space<vmem>>, vector<1x4x682xf32>
    %22 = vector.shape_cast %21 : vector<1x4x682xf32> to vector<4x682xf32>
    %c28 = arith.constant 28 : index
    %c0_25 = arith.constant 0 : index
    %23 = vector.load %arg22[%c28, %c0_25] : memref<36x682xf32, #tpu.memory_space<vmem>>, vector<4x682xf32>
    tpu.vector_store %arg22[%c28, %c0_25], %22 {strides = array<i32>} : memref<36x682xf32, #tpu.memory_space<vmem>>, vector<4x682xf32>,
    %c0_26 = arith.constant 0 : index
    %c0_27 = arith.constant 0 : index
    %c38 = arith.constant 38 : index
    %24 = vector.load %arg1[%c0_26, %c0_27, %c38] : memref<1x4x720xf32, #tpu.memory_space<vmem>>, vector<1x4x682xf32>
    %25 = vector.shape_cast %24 : vector<1x4x682xf32> to vector<4x682xf32>
    %c32 = arith.constant 32 : index
    %c0_28 = arith.constant 0 : index
    %26 = vector.load %arg22[%c32, %c0_28] : memref<36x682xf32, #tpu.memory_space<vmem>>, vector<4x682xf32>
    tpu.vector_store %arg22[%c32, %c0_28], %25 {strides = array<i32>} : memref<36x682xf32, #tpu.memory_space<vmem>>, vector<4x682xf32>,
    %c0_29 = arith.constant 0 : index
    %c0_30 = arith.constant 0 : index
    %27 = vector.load %arg6[%c0_29, %c0_30] : memref<8x36xf32, #tpu.memory_space<vmem>>, vector<8x36xf32>
    %c0_31 = arith.constant 0 : index
    %c0_32 = arith.constant 0 : index
    %28 = vector.load %arg22[%c0_31, %c0_32] : memref<36x682xf32, #tpu.memory_space<vmem>>, vector<36x682xf32>
    %cst = arith.constant dense<0.000000e+00> : vector<8x682xf32>
    %29 = tpu.matmul %27, %28, %cst {dimension_numbers = #tpu.dot_dimension_numbers<[1], [0], [0], [1], [0, 0, 1, 1], [], []>} : vector<8x36xf32>, vector<36x682xf32>, vector<8x682xf32> -> vector<8x682xf32>
    %c0_33 = arith.constant 0 : index
    %c0_34 = arith.constant 0 : index
    %30 = vector.load %arg7[%c0_33, %c0_34] : memref<8x1xf32, #tpu.memory_space<vmem>>, vector<8x1xf32>
    %31 = vector.broadcast %30 : vector<8x1xf32> to vector<8x682xf32>
    %32 = arith.addf %29, %31 : vector<8x682xf32>
    %cst_35 = arith.constant 0.000000e+00 : f32
    %33 = vector.broadcast %cst_35 : f32 to vector<8x682xf32>
    %34 = arith.maximumf %32, %33 : vector<8x682xf32>
    %c0_36 = arith.constant 0 : index
    %c0_37 = arith.constant 0 : index
    %35 = vector.load %arg22[%c0_36, %c0_37] : memref<36x682xf32, #tpu.memory_space<vmem>>, vector<8x682xf32>
    tpu.vector_store %arg22[%c0_36, %c0_37], %34 {strides = array<i32>} : memref<36x682xf32, #tpu.memory_space<vmem>>, vector<8x682xf32>,
    %c0_38 = arith.constant 0 : index
    %c0_39 = arith.constant 0 : index
    %36 = vector.load %arg22[%c0_38, %c0_39] : memref<36x682xf32, #tpu.memory_space<vmem>>, vector<8x664xf32>
    %c0_40 = arith.constant 0 : index
    %c18_41 = arith.constant 18 : index
    %37 = vector.load %arg22[%c0_40, %c18_41] : memref<36x682xf32, #tpu.memory_space<vmem>>, vector<8x664xf32>
    %38 = arith.maximumf %36, %37 : vector<8x664xf32>
    %c0_42 = arith.constant 0 : index
    %c0_43 = arith.constant 0 : index
    %39 = vector.load %arg22[%c0_42, %c0_43] : memref<36x682xf32, #tpu.memory_space<vmem>>, vector<8x664xf32>
    tpu.vector_store %arg22[%c0_42, %c0_43], %38 {strides = array<i32>} : memref<36x682xf32, #tpu.memory_space<vmem>>, vector<8x664xf32>,
    %c0_44 = arith.constant 0 : index
    %c0_45 = arith.constant 0 : index
    %40 = vector.load %arg22[%c0_44, %c0_45] : memref<36x682xf32, #tpu.memory_space<vmem>>, vector<8x663xf32>
    %c0_46 = arith.constant 0 : index
    %c1_47 = arith.constant 1 : index
    %41 = vector.load %arg22[%c0_46, %c1_47] : memref<36x682xf32, #tpu.memory_space<vmem>>, vector<8x663xf32>
    %42 = arith.maximumf %40, %41 : vector<8x663xf32>
    %43 = tpu.iota {dimensions = array<i32: 0>} : vector<663x240xi32>
    %c0_48 = arith.constant 0 : index
    %c0_49 = arith.constant 0 : index
    %44 = vector.load %arg3[%c0_48, %c0_49] : memref<1x240xi32, #tpu.memory_space<vmem>>, vector<1x240xi32>
    %45 = vector.broadcast %44 : vector<1x240xi32> to vector<663x240xi32>
    %46 = arith.cmpi eq, %43, %45 : vector<663x240xi32>
    %cst_50 = arith.constant 1.000000e+00 : f32
    %cst_51 = arith.constant 0.000000e+00 : f32
    %47 = vector.broadcast %cst_50 : f32 to vector<663x240xf32>
    %48 = vector.broadcast %cst_51 : f32 to vector<663x240xf32>
    %49 = arith.select %46, %47, %48 : vector<663x240xi1>, vector<663x240xf32>
    %cst_52 = arith.constant dense<0.000000e+00> : vector<8x240xf32>
    %50 = tpu.matmul %42, %49, %cst_52 {dimension_numbers = #tpu.dot_dimension_numbers<[1], [0], [0], [1], [0, 0, 1, 1], [], []>} : vector<8x663xf32>, vector<663x240xf32>, vector<8x240xf32> -> vector<8x240xf32>
    %c0_53 = arith.constant 0 : index
    %c0_54 = arith.constant 0 : index
    %51 = vector.load %arg23[%c0_53, %c0_54] : memref<8x240xf32, #tpu.memory_space<vmem>>, vector<8x240xf32>
    tpu.vector_store %arg23[%c0_53, %c0_54], %50 {strides = array<i32>} : memref<8x240xf32, #tpu.memory_space<vmem>>, vector<8x240xf32>,
    %c0_55 = arith.constant 0 : index
    %c0_56 = arith.constant 0 : index
    %52 = vector.load %arg23[%c0_55, %c0_56] : memref<8x240xf32, #tpu.memory_space<vmem>>, vector<8x218xf32>
    %c0_57 = arith.constant 0 : index
    %c0_58 = arith.constant 0 : index
    %53 = vector.load %arg24[%c0_57, %c0_58] : memref<72x218xf32, #tpu.memory_space<vmem>>, vector<8x218xf32>
    tpu.vector_store %arg24[%c0_57, %c0_58], %52 {strides = array<i32>} : memref<72x218xf32, #tpu.memory_space<vmem>>, vector<8x218xf32>,
    %c0_59 = arith.constant 0 : index
    %c1_60 = arith.constant 1 : index
    %54 = vector.load %arg23[%c0_59, %c1_60] : memref<8x240xf32, #tpu.memory_space<vmem>>, vector<8x218xf32>
    %c8_61 = arith.constant 8 : index
    %c0_62 = arith.constant 0 : index
    %55 = vector.load %arg24[%c8_61, %c0_62] : memref<72x218xf32, #tpu.memory_space<vmem>>, vector<8x218xf32>
    tpu.vector_store %arg24[%c8_61, %c0_62], %54 {strides = array<i32>} : memref<72x218xf32, #tpu.memory_space<vmem>>, vector<8x218xf32>,
    %c0_63 = arith.constant 0 : index
    %c2_64 = arith.constant 2 : index
    %56 = vector.load %arg23[%c0_63, %c2_64] : memref<8x240xf32, #tpu.memory_space<vmem>>, vector<8x218xf32>
    %c16_65 = arith.constant 16 : index
    %c0_66 = arith.constant 0 : index
    %57 = vector.load %arg24[%c16_65, %c0_66] : memref<72x218xf32, #tpu.memory_space<vmem>>, vector<8x218xf32>
    tpu.vector_store %arg24[%c16_65, %c0_66], %56 {strides = array<i32>} : memref<72x218xf32, #tpu.memory_space<vmem>>, vector<8x218xf32>,
    %c0_67 = arith.constant 0 : index
    %c10 = arith.constant 10 : index
    %58 = vector.load %arg23[%c0_67, %c10] : memref<8x240xf32, #tpu.memory_space<vmem>>, vector<8x218xf32>
    %c24_68 = arith.constant 24 : index
    %c0_69 = arith.constant 0 : index
    %59 = vector.load %arg24[%c24_68, %c0_69] : memref<72x218xf32, #tpu.memory_space<vmem>>, vector<8x218xf32>
    tpu.vector_store %arg24[%c24_68, %c0_69], %58 {strides = array<i32>} : memref<72x218xf32, #tpu.memory_space<vmem>>, vector<8x218xf32>,
    %c0_70 = arith.constant 0 : index
    %c11 = arith.constant 11 : index
    %60 = vector.load %arg23[%c0_70, %c11] : memref<8x240xf32, #tpu.memory_space<vmem>>, vector<8x218xf32>
    %c32_71 = arith.constant 32 : index
    %c0_72 = arith.constant 0 : index
    %61 = vector.load %arg24[%c32_71, %c0_72] : memref<72x218xf32, #tpu.memory_space<vmem>>, vector<8x218xf32>
    tpu.vector_store %arg24[%c32_71, %c0_72], %60 {strides = array<i32>} : memref<72x218xf32, #tpu.memory_space<vmem>>, vector<8x218xf32>,
    %c0_73 = arith.constant 0 : index
    %c12_74 = arith.constant 12 : index
    %62 = vector.load %arg23[%c0_73, %c12_74] : memref<8x240xf32, #tpu.memory_space<vmem>>, vector<8x218xf32>
    %c40 = arith.constant 40 : index
    %c0_75 = arith.constant 0 : index
    %63 = vector.load %arg24[%c40, %c0_75] : memref<72x218xf32, #tpu.memory_space<vmem>>, vector<8x218xf32>
    tpu.vector_store %arg24[%c40, %c0_75], %62 {strides = array<i32>} : memref<72x218xf32, #tpu.memory_space<vmem>>, vector<8x218xf32>,
    %c0_76 = arith.constant 0 : index
    %c20_77 = arith.constant 20 : index
    %64 = vector.load %arg23[%c0_76, %c20_77] : memref<8x240xf32, #tpu.memory_space<vmem>>, vector<8x218xf32>
    %c48 = arith.constant 48 : index
    %c0_78 = arith.constant 0 : index
    %65 = vector.load %arg24[%c48, %c0_78] : memref<72x218xf32, #tpu.memory_space<vmem>>, vector<8x218xf32>
    tpu.vector_store %arg24[%c48, %c0_78], %64 {strides = array<i32>} : memref<72x218xf32, #tpu.memory_space<vmem>>, vector<8x218xf32>,
    %c0_79 = arith.constant 0 : index
    %c21 = arith.constant 21 : index
    %66 = vector.load %arg23[%c0_79, %c21] : memref<8x240xf32, #tpu.memory_space<vmem>>, vector<8x218xf32>
    %c56 = arith.constant 56 : index
    %c0_80 = arith.constant 0 : index
    %67 = vector.load %arg24[%c56, %c0_80] : memref<72x218xf32, #tpu.memory_space<vmem>>, vector<8x218xf32>
    tpu.vector_store %arg24[%c56, %c0_80], %66 {strides = array<i32>} : memref<72x218xf32, #tpu.memory_space<vmem>>, vector<8x218xf32>,
    %c0_81 = arith.constant 0 : index
    %c22 = arith.constant 22 : index
    %68 = vector.load %arg23[%c0_81, %c22] : memref<8x240xf32, #tpu.memory_space<vmem>>, vector<8x218xf32>
    %c64 = arith.constant 64 : index
    %c0_82 = arith.constant 0 : index
    %69 = vector.load %arg24[%c64, %c0_82] : memref<72x218xf32, #tpu.memory_space<vmem>>, vector<8x218xf32>
    tpu.vector_store %arg24[%c64, %c0_82], %68 {strides = array<i32>} : memref<72x218xf32, #tpu.memory_space<vmem>>, vector<8x218xf32>,
    %c0_83 = arith.constant 0 : index
    %c0_84 = arith.constant 0 : index
    %70 = vector.load %arg8[%c0_83, %c0_84] : memref<16x72xf32, #tpu.memory_space<vmem>>, vector<16x72xf32>
    %c0_85 = arith.constant 0 : index
    %c0_86 = arith.constant 0 : index
    %71 = vector.load %arg24[%c0_85, %c0_86] : memref<72x218xf32, #tpu.memory_space<vmem>>, vector<72x218xf32>
    %cst_87 = arith.constant dense<0.000000e+00> : vector<16x218xf32>
    %72 = tpu.matmul %70, %71, %cst_87 {dimension_numbers = #tpu.dot_dimension_numbers<[1], [0], [0], [1], [0, 0, 1, 1], [], []>} : vector<16x72xf32>, vector<72x218xf32>, vector<16x218xf32> -> vector<16x218xf32>
    %c0_88 = arith.constant 0 : index
    %c0_89 = arith.constant 0 : index
    %73 = vector.load %arg9[%c0_88, %c0_89] : memref<16x1xf32, #tpu.memory_space<vmem>>, vector<16x1xf32>
    %74 = vector.broadcast %73 : vector<16x1xf32> to vector<16x218xf32>
    %75 = arith.addf %72, %74 : vector<16x218xf32>
    %cst_90 = arith.constant 0.000000e+00 : f32
    %76 = vector.broadcast %cst_90 : f32 to vector<16x218xf32>
    %77 = arith.maximumf %75, %76 : vector<16x218xf32>
    %c0_91 = arith.constant 0 : index
    %c0_92 = arith.constant 0 : index
    %78 = vector.load %arg24[%c0_91, %c0_92] : memref<72x218xf32, #tpu.memory_space<vmem>>, vector<16x218xf32>
    tpu.vector_store %arg24[%c0_91, %c0_92], %77 {strides = array<i32>} : memref<72x218xf32, #tpu.memory_space<vmem>>, vector<16x218xf32>,
    %c0_93 = arith.constant 0 : index
    %c0_94 = arith.constant 0 : index
    %79 = vector.load %arg24[%c0_93, %c0_94] : memref<72x218xf32, #tpu.memory_space<vmem>>, vector<16x208xf32>
    %c0_95 = arith.constant 0 : index
    %c10_96 = arith.constant 10 : index
    %80 = vector.load %arg24[%c0_95, %c10_96] : memref<72x218xf32, #tpu.memory_space<vmem>>, vector<16x208xf32>
    %81 = arith.maximumf %79, %80 : vector<16x208xf32>
    %c0_97 = arith.constant 0 : index
    %c0_98 = arith.constant 0 : index
    %82 = vector.load %arg24[%c0_97, %c0_98] : memref<72x218xf32, #tpu.memory_space<vmem>>, vector<16x208xf32>
    tpu.vector_store %arg24[%c0_97, %c0_98], %81 {strides = array<i32>} : memref<72x218xf32, #tpu.memory_space<vmem>>, vector<16x208xf32>,
    %c0_99 = arith.constant 0 : index
    %c0_100 = arith.constant 0 : index
    %83 = vector.load %arg24[%c0_99, %c0_100] : memref<72x218xf32, #tpu.memory_space<vmem>>, vector<16x207xf32>
    %c0_101 = arith.constant 0 : index
    %c1_102 = arith.constant 1 : index
    %84 = vector.load %arg24[%c0_101, %c1_102] : memref<72x218xf32, #tpu.memory_space<vmem>>, vector<16x207xf32>
    %85 = arith.maximumf %83, %84 : vector<16x207xf32>
    %86 = tpu.iota {dimensions = array<i32: 0>} : vector<207x96xi32>
    %c0_103 = arith.constant 0 : index
    %c0_104 = arith.constant 0 : index
    %87 = vector.load %arg4[%c0_103, %c0_104] : memref<1x96xi32, #tpu.memory_space<vmem>>, vector<1x96xi32>
    %88 = vector.broadcast %87 : vector<1x96xi32> to vector<207x96xi32>
    %89 = arith.cmpi eq, %86, %88 : vector<207x96xi32>
    %cst_105 = arith.constant 1.000000e+00 : f32
    %cst_106 = arith.constant 0.000000e+00 : f32
    %90 = vector.broadcast %cst_105 : f32 to vector<207x96xf32>
    %91 = vector.broadcast %cst_106 : f32 to vector<207x96xf32>
    %92 = arith.select %89, %90, %91 : vector<207x96xi1>, vector<207x96xf32>
    %cst_107 = arith.constant dense<0.000000e+00> : vector<16x96xf32>
    %93 = tpu.matmul %85, %92, %cst_107 {dimension_numbers = #tpu.dot_dimension_numbers<[1], [0], [0], [1], [0, 0, 1, 1], [], []>} : vector<16x207xf32>, vector<207x96xf32>, vector<16x96xf32> -> vector<16x96xf32>
    %c0_108 = arith.constant 0 : index
    %c0_109 = arith.constant 0 : index
    %94 = vector.load %arg25[%c0_108, %c0_109] : memref<16x96xf32, #tpu.memory_space<vmem>>, vector<16x96xf32>
    tpu.vector_store %arg25[%c0_108, %c0_109], %93 {strides = array<i32>} : memref<16x96xf32, #tpu.memory_space<vmem>>, vector<16x96xf32>,
    %c0_110 = arith.constant 0 : index
    %c0_111 = arith.constant 0 : index
    %95 = vector.load %arg25[%c0_110, %c0_111] : memref<16x96xf32, #tpu.memory_space<vmem>>, vector<16x82xf32>
    %c0_112 = arith.constant 0 : index
    %c0_113 = arith.constant 0 : index
    %96 = vector.load %arg26[%c0_112, %c0_113] : memref<144x82xf32, #tpu.memory_space<vmem>>, vector<16x82xf32>
    tpu.vector_store %arg26[%c0_112, %c0_113], %95 {strides = array<i32>} : memref<144x82xf32, #tpu.memory_space<vmem>>, vector<16x82xf32>,
    %c0_114 = arith.constant 0 : index
    %c1_115 = arith.constant 1 : index
    %97 = vector.load %arg25[%c0_114, %c1_115] : memref<16x96xf32, #tpu.memory_space<vmem>>, vector<16x82xf32>
    %c16_116 = arith.constant 16 : index
    %c0_117 = arith.constant 0 : index
    %98 = vector.load %arg26[%c16_116, %c0_117] : memref<144x82xf32, #tpu.memory_space<vmem>>, vector<16x82xf32>
    tpu.vector_store %arg26[%c16_116, %c0_117], %97 {strides = array<i32>} : memref<144x82xf32, #tpu.memory_space<vmem>>, vector<16x82xf32>,
    %c0_118 = arith.constant 0 : index
    %c2_119 = arith.constant 2 : index
    %99 = vector.load %arg25[%c0_118, %c2_119] : memref<16x96xf32, #tpu.memory_space<vmem>>, vector<16x82xf32>
    %c32_120 = arith.constant 32 : index
    %c0_121 = arith.constant 0 : index
    %100 = vector.load %arg26[%c32_120, %c0_121] : memref<144x82xf32, #tpu.memory_space<vmem>>, vector<16x82xf32>
    tpu.vector_store %arg26[%c32_120, %c0_121], %99 {strides = array<i32>} : memref<144x82xf32, #tpu.memory_space<vmem>>, vector<16x82xf32>,
    %c0_122 = arith.constant 0 : index
    %c6 = arith.constant 6 : index
    %101 = vector.load %arg25[%c0_122, %c6] : memref<16x96xf32, #tpu.memory_space<vmem>>, vector<16x82xf32>
    %c48_123 = arith.constant 48 : index
    %c0_124 = arith.constant 0 : index
    %102 = vector.load %arg26[%c48_123, %c0_124] : memref<144x82xf32, #tpu.memory_space<vmem>>, vector<16x82xf32>
    tpu.vector_store %arg26[%c48_123, %c0_124], %101 {strides = array<i32>} : memref<144x82xf32, #tpu.memory_space<vmem>>, vector<16x82xf32>,
    %c0_125 = arith.constant 0 : index
    %c7 = arith.constant 7 : index
    %103 = vector.load %arg25[%c0_125, %c7] : memref<16x96xf32, #tpu.memory_space<vmem>>, vector<16x82xf32>
    %c64_126 = arith.constant 64 : index
    %c0_127 = arith.constant 0 : index
    %104 = vector.load %arg26[%c64_126, %c0_127] : memref<144x82xf32, #tpu.memory_space<vmem>>, vector<16x82xf32>
    tpu.vector_store %arg26[%c64_126, %c0_127], %103 {strides = array<i32>} : memref<144x82xf32, #tpu.memory_space<vmem>>, vector<16x82xf32>,
    %c0_128 = arith.constant 0 : index
    %c8_129 = arith.constant 8 : index
    %105 = vector.load %arg25[%c0_128, %c8_129] : memref<16x96xf32, #tpu.memory_space<vmem>>, vector<16x82xf32>
    %c80 = arith.constant 80 : index
    %c0_130 = arith.constant 0 : index
    %106 = vector.load %arg26[%c80, %c0_130] : memref<144x82xf32, #tpu.memory_space<vmem>>, vector<16x82xf32>
    tpu.vector_store %arg26[%c80, %c0_130], %105 {strides = array<i32>} : memref<144x82xf32, #tpu.memory_space<vmem>>, vector<16x82xf32>,
    %c0_131 = arith.constant 0 : index
    %c12_132 = arith.constant 12 : index
    %107 = vector.load %arg25[%c0_131, %c12_132] : memref<16x96xf32, #tpu.memory_space<vmem>>, vector<16x82xf32>
    %c96 = arith.constant 96 : index
    %c0_133 = arith.constant 0 : index
    %108 = vector.load %arg26[%c96, %c0_133] : memref<144x82xf32, #tpu.memory_space<vmem>>, vector<16x82xf32>
    tpu.vector_store %arg26[%c96, %c0_133], %107 {strides = array<i32>} : memref<144x82xf32, #tpu.memory_space<vmem>>, vector<16x82xf32>,
    %c0_134 = arith.constant 0 : index
    %c13 = arith.constant 13 : index
    %109 = vector.load %arg25[%c0_134, %c13] : memref<16x96xf32, #tpu.memory_space<vmem>>, vector<16x82xf32>
    %c112 = arith.constant 112 : index
    %c0_135 = arith.constant 0 : index
    %110 = vector.load %arg26[%c112, %c0_135] : memref<144x82xf32, #tpu.memory_space<vmem>>, vector<16x82xf32>
    tpu.vector_store %arg26[%c112, %c0_135], %109 {strides = array<i32>} : memref<144x82xf32, #tpu.memory_space<vmem>>, vector<16x82xf32>,
    %c0_136 = arith.constant 0 : index
    %c14 = arith.constant 14 : index
    %111 = vector.load %arg25[%c0_136, %c14] : memref<16x96xf32, #tpu.memory_space<vmem>>, vector<16x82xf32>
    %c128 = arith.constant 128 : index
    %c0_137 = arith.constant 0 : index
    %112 = vector.load %arg26[%c128, %c0_137] : memref<144x82xf32, #tpu.memory_space<vmem>>, vector<16x82xf32>
    tpu.vector_store %arg26[%c128, %c0_137], %111 {strides = array<i32>} : memref<144x82xf32, #tpu.memory_space<vmem>>, vector<16x82xf32>,
    %c0_138 = arith.constant 0 : index
    %c0_139 = arith.constant 0 : index
    %113 = vector.load %arg10[%c0_138, %c0_139] : memref<64x144xf32, #tpu.memory_space<vmem>>, vector<64x144xf32>
    %c0_140 = arith.constant 0 : index
    %c0_141 = arith.constant 0 : index
    %114 = vector.load %arg26[%c0_140, %c0_141] : memref<144x82xf32, #tpu.memory_space<vmem>>, vector<144x82xf32>
    %cst_142 = arith.constant dense<0.000000e+00> : vector<64x82xf32>
    %115 = tpu.matmul %113, %114, %cst_142 {dimension_numbers = #tpu.dot_dimension_numbers<[1], [0], [0], [1], [0, 0, 1, 1], [], []>} : vector<64x144xf32>, vector<144x82xf32>, vector<64x82xf32> -> vector<64x82xf32>
    %c0_143 = arith.constant 0 : index
    %c0_144 = arith.constant 0 : index
    %116 = vector.load %arg11[%c0_143, %c0_144] : memref<64x1xf32, #tpu.memory_space<vmem>>, vector<64x1xf32>
    %117 = vector.broadcast %116 : vector<64x1xf32> to vector<64x82xf32>
    %118 = arith.addf %115, %117 : vector<64x82xf32>
    %cst_145 = arith.constant 0.000000e+00 : f32
    %119 = vector.broadcast %cst_145 : f32 to vector<64x82xf32>
    %120 = arith.maximumf %118, %119 : vector<64x82xf32>
    %c0_146 = arith.constant 0 : index
    %c0_147 = arith.constant 0 : index
    %121 = vector.load %arg26[%c0_146, %c0_147] : memref<144x82xf32, #tpu.memory_space<vmem>>, vector<64x82xf32>
    tpu.vector_store %arg26[%c0_146, %c0_147], %120 {strides = array<i32>} : memref<144x82xf32, #tpu.memory_space<vmem>>, vector<64x82xf32>,
    %c0_148 = arith.constant 0 : index
    %c0_149 = arith.constant 0 : index
    %122 = vector.load %arg26[%c0_148, %c0_149] : memref<144x82xf32, #tpu.memory_space<vmem>>, vector<64x76xf32>
    %c0_150 = arith.constant 0 : index
    %c6_151 = arith.constant 6 : index
    %123 = vector.load %arg26[%c0_150, %c6_151] : memref<144x82xf32, #tpu.memory_space<vmem>>, vector<64x76xf32>
    %124 = arith.maximumf %122, %123 : vector<64x76xf32>
    %c0_152 = arith.constant 0 : index
    %c0_153 = arith.constant 0 : index
    %125 = vector.load %arg26[%c0_152, %c0_153] : memref<144x82xf32, #tpu.memory_space<vmem>>, vector<64x76xf32>
    tpu.vector_store %arg26[%c0_152, %c0_153], %124 {strides = array<i32>} : memref<144x82xf32, #tpu.memory_space<vmem>>, vector<64x76xf32>,
    %c0_154 = arith.constant 0 : index
    %c0_155 = arith.constant 0 : index
    %126 = vector.load %arg26[%c0_154, %c0_155] : memref<144x82xf32, #tpu.memory_space<vmem>>, vector<64x75xf32>
    %c0_156 = arith.constant 0 : index
    %c1_157 = arith.constant 1 : index
    %127 = vector.load %arg26[%c0_156, %c1_157] : memref<144x82xf32, #tpu.memory_space<vmem>>, vector<64x75xf32>
    %128 = arith.maximumf %126, %127 : vector<64x75xf32>
    %129 = tpu.iota {dimensions = array<i32: 0>} : vector<75x8xi32>
    %c0_158 = arith.constant 0 : index
    %c0_159 = arith.constant 0 : index
    %130 = vector.load %arg5[%c0_158, %c0_159] : memref<1x8xi32, #tpu.memory_space<vmem>>, vector<1x8xi32>
    %131 = vector.broadcast %130 : vector<1x8xi32> to vector<75x8xi32>
    %132 = arith.cmpi eq, %129, %131 : vector<75x8xi32>
    %cst_160 = arith.constant 1.000000e+00 : f32
    %cst_161 = arith.constant 0.000000e+00 : f32
    %133 = vector.broadcast %cst_160 : f32 to vector<75x8xf32>
    %134 = vector.broadcast %cst_161 : f32 to vector<75x8xf32>
    %135 = arith.select %132, %133, %134 : vector<75x8xi1>, vector<75x8xf32>
    %cst_162 = arith.constant dense<0.000000e+00> : vector<64x8xf32>
    %136 = tpu.matmul %128, %135, %cst_162 {dimension_numbers = #tpu.dot_dimension_numbers<[1], [0], [0], [1], [0, 0, 1, 1], [], []>} : vector<64x75xf32>, vector<75x8xf32>, vector<64x8xf32> -> vector<64x8xf32>
    %c0_163 = arith.constant 0 : index
    %c0_164 = arith.constant 0 : index
    %137 = vector.load %arg26[%c0_163, %c0_164] : memref<144x82xf32, #tpu.memory_space<vmem>>, vector<64x8xf32>
    tpu.vector_store %arg26[%c0_163, %c0_164], %136 {strides = array<i32>} : memref<144x82xf32, #tpu.memory_space<vmem>>, vector<64x8xf32>,
    %c0_165 = arith.constant 0 : index
    %c0_166 = arith.constant 0 : index
    %138 = vector.load %arg14[%c0_165, %c0_166] : memref<240x1xf32, #tpu.memory_space<vmem>>, vector<240x1xf32>
    %c0_167 = arith.constant 0 : index
    %c0_168 = arith.constant 0 : index
    %139 = vector.load %arg13[%c0_167, %c0_168] : memref<240x64xf32, #tpu.memory_space<vmem>>, vector<240x64xf32>
    %c0_169 = arith.constant 0 : index
    %c0_170 = arith.constant 0 : index
    %c0_171 = arith.constant 0 : index
    %140 = vector.load %arg2[%c0_169, %c0_170, %c0_171] : memref<1x64x2xf32, #tpu.memory_space<vmem>>, vector<1x64x2xf32>
    %141 = vector.shape_cast %140 : vector<1x64x2xf32> to vector<64x2xf32>
    %cst_172 = arith.constant dense<0.000000e+00> : vector<240x2xf32>
    %142 = tpu.matmul %139, %141, %cst_172 {dimension_numbers = #tpu.dot_dimension_numbers<[1], [0], [0], [1], [0, 0, 1, 1], [], []>} : vector<240x64xf32>, vector<64x2xf32>, vector<240x2xf32> -> vector<240x2xf32>
    %143 = vector.broadcast %138 : vector<240x1xf32> to vector<240x2xf32>
    %144 = arith.addf %143, %142 : vector<240x2xf32>
    %c0_173 = arith.constant 0 : index
    %c0_174 = arith.constant 0 : index
    %c0_175 = arith.constant 0 : index
    %145 = vector.load %arg12[%c0_173, %c0_174, %c0_175] : memref<4x240x64xf32, #tpu.memory_space<vmem>>, vector<1x240x64xf32>
    %146 = vector.shape_cast %145 : vector<1x240x64xf32> to vector<240x64xf32>
    %c0_176 = arith.constant 0 : index
    %c0_177 = arith.constant 0 : index
    %147 = vector.load %arg26[%c0_176, %c0_177] : memref<144x82xf32, #tpu.memory_space<vmem>>, vector<64x2xf32>
    %cst_178 = arith.constant dense<0.000000e+00> : vector<240x2xf32>
    %148 = tpu.matmul %146, %147, %cst_178 {dimension_numbers = #tpu.dot_dimension_numbers<[1], [0], [0], [1], [0, 0, 1, 1], [], []>} : vector<240x64xf32>, vector<64x2xf32>, vector<240x2xf32> -> vector<240x2xf32>
    %149 = arith.addf %144, %148 : vector<240x2xf32>
    %c1_179 = arith.constant 1 : index
    %c0_180 = arith.constant 0 : index
    %c0_181 = arith.constant 0 : index
    %150 = vector.load %arg12[%c1_179, %c0_180, %c0_181] : memref<4x240x64xf32, #tpu.memory_space<vmem>>, vector<1x240x64xf32>
    %151 = vector.shape_cast %150 : vector<1x240x64xf32> to vector<240x64xf32>
    %c0_182 = arith.constant 0 : index
    %c2_183 = arith.constant 2 : index
    %152 = vector.load %arg26[%c0_182, %c2_183] : memref<144x82xf32, #tpu.memory_space<vmem>>, vector<64x2xf32>
    %cst_184 = arith.constant dense<0.000000e+00> : vector<240x2xf32>
    %153 = tpu.matmul %151, %152, %cst_184 {dimension_numbers = #tpu.dot_dimension_numbers<[1], [0], [0], [1], [0, 0, 1, 1], [], []>} : vector<240x64xf32>, vector<64x2xf32>, vector<240x2xf32> -> vector<240x2xf32>
    %154 = arith.addf %149, %153 : vector<240x2xf32>
    %c2_185 = arith.constant 2 : index
    %c0_186 = arith.constant 0 : index
    %c0_187 = arith.constant 0 : index
    %155 = vector.load %arg12[%c2_185, %c0_186, %c0_187] : memref<4x240x64xf32, #tpu.memory_space<vmem>>, vector<1x240x64xf32>
    %156 = vector.shape_cast %155 : vector<1x240x64xf32> to vector<240x64xf32>
    %c0_188 = arith.constant 0 : index
    %c4_189 = arith.constant 4 : index
    %157 = vector.load %arg26[%c0_188, %c4_189] : memref<144x82xf32, #tpu.memory_space<vmem>>, vector<64x2xf32>
    %cst_190 = arith.constant dense<0.000000e+00> : vector<240x2xf32>
    %158 = tpu.matmul %156, %157, %cst_190 {dimension_numbers = #tpu.dot_dimension_numbers<[1], [0], [0], [1], [0, 0, 1, 1], [], []>} : vector<240x64xf32>, vector<64x2xf32>, vector<240x2xf32> -> vector<240x2xf32>
    %159 = arith.addf %154, %158 : vector<240x2xf32>
    %c3 = arith.constant 3 : index
    %c0_191 = arith.constant 0 : index
    %c0_192 = arith.constant 0 : index
    %160 = vector.load %arg12[%c3, %c0_191, %c0_192] : memref<4x240x64xf32, #tpu.memory_space<vmem>>, vector<1x240x64xf32>
    %161 = vector.shape_cast %160 : vector<1x240x64xf32> to vector<240x64xf32>
    %c0_193 = arith.constant 0 : index
    %c6_194 = arith.constant 6 : index
    %162 = vector.load %arg26[%c0_193, %c6_194] : memref<144x82xf32, #tpu.memory_space<vmem>>, vector<64x2xf32>
    %cst_195 = arith.constant dense<0.000000e+00> : vector<240x2xf32>
    %163 = tpu.matmul %161, %162, %cst_195 {dimension_numbers = #tpu.dot_dimension_numbers<[1], [0], [0], [1], [0, 0, 1, 1], [], []>} : vector<240x64xf32>, vector<64x2xf32>, vector<240x2xf32> -> vector<240x2xf32>
    %164 = arith.addf %159, %163 : vector<240x2xf32>
    %cst_196 = arith.constant 0.000000e+00 : f32
    %165 = vector.broadcast %cst_196 : f32 to vector<240x2xf32>
    %166 = arith.maximumf %164, %165 : vector<240x2xf32>
    %c0_197 = arith.constant 0 : index
    %c0_198 = arith.constant 0 : index
    %167 = vector.load %arg15[%c0_197, %c0_198] : memref<120x240xf32, #tpu.memory_space<vmem>>, vector<120x240xf32>
    %cst_199 = arith.constant dense<0.000000e+00> : vector<120x2xf32>
    %168 = tpu.matmul %167, %166, %cst_199 {dimension_numbers = #tpu.dot_dimension_numbers<[1], [0], [0], [1], [0, 0, 1, 1], [], []>} : vector<120x240xf32>, vector<240x2xf32>, vector<120x2xf32> -> vector<120x2xf32>
    %c0_200 = arith.constant 0 : index
    %c0_201 = arith.constant 0 : index
    %169 = vector.load %arg16[%c0_200, %c0_201] : memref<120x1xf32, #tpu.memory_space<vmem>>, vector<120x1xf32>
    %170 = vector.broadcast %169 : vector<120x1xf32> to vector<120x2xf32>
    %171 = arith.addf %168, %170 : vector<120x2xf32>
    %cst_202 = arith.constant 0.000000e+00 : f32
    %172 = vector.broadcast %cst_202 : f32 to vector<120x2xf32>
    %173 = arith.maximumf %171, %172 : vector<120x2xf32>
    %c0_203 = arith.constant 0 : index
    %c0_204 = arith.constant 0 : index
    %174 = vector.load %arg17[%c0_203, %c0_204] : memref<60x120xf32, #tpu.memory_space<vmem>>, vector<60x120xf32>
    %cst_205 = arith.constant dense<0.000000e+00> : vector<60x2xf32>
    %175 = tpu.matmul %174, %173, %cst_205 {dimension_numbers = #tpu.dot_dimension_numbers<[1], [0], [0], [1], [0, 0, 1, 1], [], []>} : vector<60x120xf32>, vector<120x2xf32>, vector<60x2xf32> -> vector<60x2xf32>
    %c0_206 = arith.constant 0 : index
    %c0_207 = arith.constant 0 : index
    %176 = vector.load %arg18[%c0_206, %c0_207] : memref<60x1xf32, #tpu.memory_space<vmem>>, vector<60x1xf32>
    %177 = vector.broadcast %176 : vector<60x1xf32> to vector<60x2xf32>
    %178 = arith.addf %175, %177 : vector<60x2xf32>
    %cst_208 = arith.constant 0.000000e+00 : f32
    %179 = vector.broadcast %cst_208 : f32 to vector<60x2xf32>
    %180 = arith.maximumf %178, %179 : vector<60x2xf32>
    %c0_209 = arith.constant 0 : index
    %c0_210 = arith.constant 0 : index
    %181 = vector.load %arg19[%c0_209, %c0_210] : memref<10x60xf32, #tpu.memory_space<vmem>>, vector<10x60xf32>
    %cst_211 = arith.constant dense<0.000000e+00> : vector<10x2xf32>
    %182 = tpu.matmul %181, %180, %cst_211 {dimension_numbers = #tpu.dot_dimension_numbers<[1], [0], [0], [1], [0, 0, 1, 1], [], []>} : vector<10x60xf32>, vector<60x2xf32>, vector<10x2xf32> -> vector<10x2xf32>
    %c0_212 = arith.constant 0 : index
    %c0_213 = arith.constant 0 : index
    %183 = vector.load %arg20[%c0_212, %c0_213] : memref<10x1xf32, #tpu.memory_space<vmem>>, vector<10x1xf32>
    %184 = vector.broadcast %183 : vector<10x1xf32> to vector<10x2xf32>
    %185 = arith.addf %182, %184 : vector<10x2xf32>
    %c0_214 = arith.constant 0 : index
    %c0_215 = arith.constant 0 : index
    %186 = vector.load %arg26[%c0_214, %c0_215] : memref<144x82xf32, #tpu.memory_space<vmem>>, vector<10x2xf32>
    tpu.vector_store %arg26[%c0_214, %c0_215], %185 {strides = array<i32>} : memref<144x82xf32, #tpu.memory_space<vmem>>, vector<10x2xf32>,
    %c0_216 = arith.constant 0 : index
    %c0_217 = arith.constant 0 : index
    %187 = vector.load %arg26[%c0_216, %c0_217] : memref<144x82xf32, #tpu.memory_space<vmem>>, vector<10x1xf32>
    %c0_218 = arith.constant 0 : index
    %c0_219 = arith.constant 0 : index
    %c0_220 = arith.constant 0 : index
    %188 = vector.load %arg21[%c0_218, %c0_219, %c0_220] : memref<2x10x1xf32, #tpu.memory_space<vmem>>, vector<1x10x1xf32>
    %189 = vector.shape_cast %188 : vector<1x10x1xf32> to vector<10x1xf32>
    %190 = vector.shape_cast %187 : vector<10x1xf32> to vector<1x10x1xf32>
    tpu.vector_store %arg21[%c0_218, %c0_219, %c0_220], %190 {strides = array<i32>} : memref<2x10x1xf32, #tpu.memory_space<vmem>>, vector<1x10x1xf32>,
    %c0_221 = arith.constant 0 : index
    %c1_222 = arith.constant 1 : index
    %191 = vector.load %arg26[%c0_221, %c1_222] : memref<144x82xf32, #tpu.memory_space<vmem>>, vector<10x1xf32>
    %c1_223 = arith.constant 1 : index
    %c0_224 = arith.constant 0 : index
    %c0_225 = arith.constant 0 : index
    %192 = vector.load %arg21[%c1_223, %c0_224, %c0_225] : memref<2x10x1xf32, #tpu.memory_space<vmem>>, vector<1x10x1xf32>
    %193 = vector.shape_cast %192 : vector<1x10x1xf32> to vector<10x1xf32>
    %194 = vector.shape_cast %191 : vector<10x1xf32> to vector<1x10x1xf32>
    tpu.vector_store %arg21[%c1_223, %c0_224, %c0_225], %194 {strides = array<i32>} : memref<2x10x1xf32, #tpu.memory_space<vmem>>, vector<1x10x1xf32>,
    return
  }
  func.func @transform_0(%arg0: i32) -> (i32, i32, i32) {
    %c0_i32 = arith.constant 0 : i32
    %c0_i32_0 = arith.constant 0 : i32
    %c0_i32_1 = arith.constant 0 : i32
    return %arg0, %c0_i32, %c0_i32_0 : i32, i32, i32
  }
  func.func @transform_1(%arg0: i32) -> (i32, i32, i32) {
    %c0_i32 = arith.constant 0 : i32
    %c0_i32_0 = arith.constant 0 : i32
    %c0_i32_1 = arith.constant 0 : i32
    return %arg0, %c0_i32, %c0_i32_0 : i32, i32, i32
  }
  func.func @transform_2(%arg0: i32) -> (i32, i32) {
    %c0_i32 = arith.constant 0 : i32
    %c0_i32_0 = arith.constant 0 : i32
    %c0_i32_1 = arith.constant 0 : i32
    return %c0_i32, %c0_i32_0 : i32, i32
  }
  func.func @transform_3(%arg0: i32) -> (i32, i32) {
    %c0_i32 = arith.constant 0 : i32
    %c0_i32_0 = arith.constant 0 : i32
    %c0_i32_1 = arith.constant 0 : i32
    return %c0_i32, %c0_i32_0 : i32, i32
  }
  func.func @transform_4(%arg0: i32) -> (i32, i32) {
    %c0_i32 = arith.constant 0 : i32
    %c0_i32_0 = arith.constant 0 : i32
    %c0_i32_1 = arith.constant 0 : i32
    return %c0_i32, %c0_i32_0 : i32, i32
  }
  func.func @transform_5(%arg0: i32) -> (i32, i32) {
    %c0_i32 = arith.constant 0 : i32
    %c0_i32_0 = arith.constant 0 : i32
    %c0_i32_1 = arith.constant 0 : i32
    return %c0_i32, %c0_i32_0 : i32, i32
  }
  func.func @transform_6(%arg0: i32) -> (i32, i32) {
    %c0_i32 = arith.constant 0 : i32
    %c0_i32_0 = arith.constant 0 : i32
    %c0_i32_1 = arith.constant 0 : i32
    return %c0_i32, %c0_i32_0 : i32, i32
  }
  func.func @transform_7(%arg0: i32) -> (i32, i32) {
    %c0_i32 = arith.constant 0 : i32
    %c0_i32_0 = arith.constant 0 : i32
    %c0_i32_1 = arith.constant 0 : i32
    return %c0_i32, %c0_i32_0 : i32, i32
  }
  func.func @transform_8(%arg0: i32) -> (i32, i32) {
    %c0_i32 = arith.constant 0 : i32
    %c0_i32_0 = arith.constant 0 : i32
    %c0_i32_1 = arith.constant 0 : i32
    return %c0_i32, %c0_i32_0 : i32, i32
  }
  func.func @transform_9(%arg0: i32) -> (i32, i32) {
    %c0_i32 = arith.constant 0 : i32
    %c0_i32_0 = arith.constant 0 : i32
    %c0_i32_1 = arith.constant 0 : i32
    return %c0_i32, %c0_i32_0 : i32, i32
  }
  func.func @transform_10(%arg0: i32) -> (i32, i32) {
    %c0_i32 = arith.constant 0 : i32
    %c0_i32_0 = arith.constant 0 : i32
    %c0_i32_1 = arith.constant 0 : i32
    return %c0_i32, %c0_i32_0 : i32, i32
  }
  func.func @transform_11(%arg0: i32) -> (i32, i32, i32) {
    %c0_i32 = arith.constant 0 : i32
    %c0_i32_0 = arith.constant 0 : i32
    %c0_i32_1 = arith.constant 0 : i32
    %c0_i32_2 = arith.constant 0 : i32
    return %c0_i32, %c0_i32_0, %c0_i32_1 : i32, i32, i32
  }
  func.func @transform_12(%arg0: i32) -> (i32, i32) {
    %c0_i32 = arith.constant 0 : i32
    %c0_i32_0 = arith.constant 0 : i32
    %c0_i32_1 = arith.constant 0 : i32
    return %c0_i32, %c0_i32_0 : i32, i32
  }
  func.func @transform_13(%arg0: i32) -> (i32, i32) {
    %c0_i32 = arith.constant 0 : i32
    %c0_i32_0 = arith.constant 0 : i32
    %c0_i32_1 = arith.constant 0 : i32
    return %c0_i32, %c0_i32_0 : i32, i32
  }
  func.func @transform_14(%arg0: i32) -> (i32, i32) {
    %c0_i32 = arith.constant 0 : i32
    %c0_i32_0 = arith.constant 0 : i32
    %c0_i32_1 = arith.constant 0 : i32
    return %c0_i32, %c0_i32_0 : i32, i32
  }
  func.func @transform_15(%arg0: i32) -> (i32, i32) {
    %c0_i32 = arith.constant 0 : i32
    %c0_i32_0 = arith.constant 0 : i32
    %c0_i32_1 = arith.constant 0 : i32
    return %c0_i32, %c0_i32_0 : i32, i32
  }
  func.func @transform_16(%arg0: i32) -> (i32, i32) {
    %c0_i32 = arith.constant 0 : i32
    %c0_i32_0 = arith.constant 0 : i32
    %c0_i32_1 = arith.constant 0 : i32
    return %c0_i32, %c0_i32_0 : i32, i32
  }
  func.func @transform_17(%arg0: i32) -> (i32, i32) {
    %c0_i32 = arith.constant 0 : i32
    %c0_i32_0 = arith.constant 0 : i32
    %c0_i32_1 = arith.constant 0 : i32
    return %c0_i32, %c0_i32_0 : i32, i32
  }
  func.func @transform_18(%arg0: i32) -> (i32, i32) {
    %c0_i32 = arith.constant 0 : i32
    %c0_i32_0 = arith.constant 0 : i32
    %c0_i32_1 = arith.constant 0 : i32
    return %c0_i32, %c0_i32_0 : i32, i32
  }
  func.func @transform_19(%arg0: i32) -> (i32, i32) {
    %c0_i32 = arith.constant 0 : i32
    %c0_i32_0 = arith.constant 0 : i32
    %c0_i32_1 = arith.constant 0 : i32
    return %c0_i32, %c0_i32_0 : i32, i32
  }
  func.func @transform_20(%arg0: i32) -> (i32, i32, i32) {
    %c0_i32 = arith.constant 0 : i32
    %c0_i32_0 = arith.constant 0 : i32
    %c0_i32_1 = arith.constant 0 : i32
    return %arg0, %c0_i32, %c0_i32_0 : i32, i32, i32
  }
}

</mosaic_0001>

<llo_original>
// kernel: tpu_custom_call.1
$region0: #{tpu_custom_call.1}
  #allocation0 [shape = 'u32[]', space=smem, size = 0x4, offset = 0x4, fixed_abs, tag = 'smem constant byte address 0x4 - core index']
  #allocation1 [shape = 'u32[72,128]{1,0:T(1,128)}', space=vmem, size = 0x9000, scoped, tag = 'internal scratch']
  #allocation2 [shape = 'f32[36,682]{1,0:T(8,128)}', space=vmem, size = 0x1e000, scoped, tag = 'scratch operand']
  #allocation3 [shape = 'f32[8,240]{1,0:T(8,128)}', space=vmem, size = 0x2000, scoped, tag = 'scratch operand']
  #allocation4 [shape = 'f32[72,218]{1,0:T(8,128)}', space=vmem, size = 0x12000, scoped, tag = 'scratch operand']
  #allocation5 [shape = 'f32[16,96]{1,0:T(8,128)}', space=vmem, size = 0x2000, scoped, tag = 'scratch operand']
  #allocation6 [shape = 'f32[144,82]{1,0:T(8,128)}', space=vmem, size = 0x12000, scoped, tag = 'scratch operand']
  %s0 = inlined_call_operand.vmem [shape: f32[2,4,720], index: 0, kind: input, shape index: {}]
  %s1 = inlined_call_operand.vmem [shape: f32[2,64,2], index: 1, kind: input, shape index: {}]
  %s2 = inlined_call_operand.vmem [shape: s32[1,240], index: 2, kind: input, shape index: {}]
  %s3 = inlined_call_operand.vmem [shape: s32[1,96], index: 3, kind: input, shape index: {}]
  %s4 = inlined_call_operand.vmem [shape: s32[1,8], index: 4, kind: input, shape index: {}]
  %s5 = inlined_call_operand.vmem [shape: f32[8,36], index: 5, kind: input, shape index: {}]
  %s6 = inlined_call_operand.vmem [shape: f32[8,1], index: 6, kind: input, shape index: {}]
  %s7 = inlined_call_operand.vmem [shape: f32[16,72], index: 7, kind: input, shape index: {}]
  %s8 = inlined_call_operand.vmem [shape: f32[16,1], index: 8, kind: input, shape index: {}]
  %s9 = inlined_call_operand.vmem [shape: f32[64,144], index: 9, kind: input, shape index: {}]
  %s10 = inlined_call_operand.vmem [shape: f32[64,1], index: 10, kind: input, shape index: {}]
  %s11 = inlined_call_operand.vmem [shape: f32[4,240,64], index: 11, kind: input, shape index: {}]
  %s12 = inlined_call_operand.vmem [shape: f32[240,64], index: 12, kind: input, shape index: {}]
  %s13 = inlined_call_operand.vmem [shape: f32[240,1], index: 13, kind: input, shape index: {}]
  %s14 = inlined_call_operand.vmem [shape: f32[120,240], index: 14, kind: input, shape index: {}]
  %s15 = inlined_call_operand.vmem [shape: f32[120,1], index: 15, kind: input, shape index: {}]
  %s16 = inlined_call_operand.vmem [shape: f32[60,120], index: 16, kind: input, shape index: {}]
  %s17 = inlined_call_operand.vmem [shape: f32[60,1], index: 17, kind: input, shape index: {}]
  %s18 = inlined_call_operand.vmem [shape: f32[10,60], index: 18, kind: input, shape index: {}]
  %s19 = inlined_call_operand.vmem [shape: f32[10,1], index: 19, kind: input, shape index: {}]
  %s20 = inlined_call_operand.vmem [shape: f32[4,10,1], index: 20, kind: output, shape index: {}]
  %s21 = sld [smem:[#allocation0]]
  $region113: #{tpu_custom_call.1} parent=0
    _
  %s23 = ssub.s32 1, %s21
  %s24 = scalar_select 0, %s23, %s21
  loop: start=0, step=1, limit=4
  $region2: #{tpu_custom_call.1} parent=0 // loop_pre_header
    _
  $region3: #{tpu_custom_call.1} parent=0 // loop_header
    %s26 = sphi 0, %s30
    %p27 = scmp.ge.s32.totalorder %s26, 4
    %s36 = sphi 0, %s38
    %s39 = sphi 0, %s36
    %s40 = sphi 0, %s39
    %s56 = sphi 0, %s40
    %s62 = sphi 0, %s64
    %s65 = sphi 0, %s62
    %s66 = sphi 0, %s65
    %s82 = sphi 0, %s66
    %s86 = sphi 0, %s86
    %s88 = sphi 0, %s86
    %s89 = sphi 0, %s88
    %s103 = sphi 0, %s89
    %s107 = sphi 0, %s107
    %s109 = sphi 0, %s107
    %s110 = sphi 0, %s109
    %s124 = sphi 0, %s110
    %s128 = sphi 0, %s128
    %s130 = sphi 0, %s128
    %s131 = sphi 0, %s130
    %s145 = sphi 0, %s131
    %s149 = sphi 0, %s149
    %s151 = sphi 0, %s149
    %s152 = sphi 0, %s151
    %s166 = sphi 0, %s152
    %s170 = sphi 0, %s170
    %s172 = sphi 0, %s170
    %s173 = sphi 0, %s172
    %s187 = sphi 0, %s173
    %s191 = sphi 0, %s191
    %s193 = sphi 0, %s191
    %s194 = sphi 0, %s193
    %s208 = sphi 0, %s194
    %s212 = sphi 0, %s212
    %s214 = sphi 0, %s212
    %s215 = sphi 0, %s214
    %s229 = sphi 0, %s215
    %s233 = sphi 0, %s233
    %s235 = sphi 0, %s233
    %s236 = sphi 0, %s235
    %s250 = sphi 0, %s236
    %s254 = sphi 0, %s254
    %s256 = sphi 0, %s254
    %s257 = sphi 0, %s256
    %s271 = sphi 0, %s257
    %s275 = sphi 0, %s275
    %s277 = sphi 0, %s275
    %s278 = sphi 0, %s277
    %s292 = sphi 0, %s278
    %s296 = sphi 0, %s296
    %s298 = sphi 0, %s296
    %s299 = sphi 0, %s298
    %s313 = sphi 0, %s299
    %s317 = sphi 0, %s317
    %s319 = sphi 0, %s317
    %s320 = sphi 0, %s319
    %s334 = sphi 0, %s320
    %s338 = sphi 0, %s338
    %s340 = sphi 0, %s338
    %s341 = sphi 0, %s340
    %s355 = sphi 0, %s341
    %s359 = sphi 0, %s359
    %s361 = sphi 0, %s359
    %s362 = sphi 0, %s361
    %s376 = sphi 0, %s362
    %s380 = sphi 0, %s380
    %s382 = sphi 0, %s380
    %s383 = sphi 0, %s382
    %s397 = sphi 0, %s383
    %s401 = sphi 0, %s401
    %s403 = sphi 0, %s401
    %s404 = sphi 0, %s403
    %s418 = sphi 0, %s404
    %s422 = sphi 0, %s422
    %s424 = sphi 0, %s422
    %s425 = sphi 0, %s424
    %s439 = sphi 0, %s425
    %s443 = sphi 0, %s443
    %s445 = sphi 0, %s443
    %s446 = sphi 0, %s445
    %s460 = sphi 0, %s446
    %s466 = sphi 0, %s468
    %s469 = sphi 0, %s466
    %s470 = sphi 0, %s469
    %s486 = sphi 0, %s470
  $region4: #{tpu_custom_call.1} parent=0 // loop_header_branch
    %29 = sbr.rel (%p27) target = $region8
  $region5: #{tpu_custom_call.1} parent=0 // loop_body
    %s31 = ssub.s32 %s26, 1
    %s32 = ssub.s32 %s26, 2
    %s33 = sadd.s32 %s26, 1
    %s34 = ssub.s32 %s26, %s33
    %p35 = scmp.eq.s32.totalorder %s34, 0
    %s37 = sadd.s32 %s36, 1
    %s38 = scalar_select %p35, %s36, %s37
    %p41 = pneg %p35
    %p42 = scmp.eq.s32.totalorder %s26, 1
    %p43 = por %p41, %p42
    %p44 = scmp.ne.s32.totalorder %s36, %s39
    %p45 = scmp.eq.s32.totalorder %s26, 0
    %p46 = por %p44, %p45
    %p47 = scmp.ne.s32.totalorder %s36, %s39
    %p48 = scmp.eq.s32.totalorder %s31, 1
    %p49 = por %p47, %p48
    %p50 = scmp.ne.s32.totalorder %s39, %s40
    %p51 = scmp.eq.s32.totalorder %s31, 0
    %p52 = por %p50, %p51
    %p53 = scmp.ne.s32.totalorder %s39, %s40
    %p54 = scmp.eq.s32.totalorder %s32, 1
    %p55 = por %p53, %p54
    %p57 = scmp.ne.s32.totalorder %s40, %s56
    %p58 = scmp.eq.s32.totalorder %s32, 0
    %p59 = por %p57, %p58
    %s60 = ssub.s32 %s26, %s33
    %p61 = scmp.eq.s32.totalorder %s60, 0
    %s63 = sadd.s32 %s62, 1
    %s64 = scalar_select %p61, %s62, %s63
    %p67 = pneg %p61
    %p68 = scmp.eq.s32.totalorder %s26, 1
    %p69 = por %p67, %p68
    %p70 = scmp.ne.s32.totalorder %s62, %s65
    %p71 = scmp.eq.s32.totalorder %s26, 0
    %p72 = por %p70, %p71
    %p73 = scmp.ne.s32.totalorder %s62, %s65
    %p74 = scmp.eq.s32.totalorder %s31, 1
    %p75 = por %p73, %p74
    %p76 = scmp.ne.s32.totalorder %s65, %s66
    %p77 = scmp.eq.s32.totalorder %s31, 0
    %p78 = por %p76, %p77
    %p79 = scmp.ne.s32.totalorder %s65, %s66
    %p80 = scmp.eq.s32.totalorder %s32, 1
    %p81 = por %p79, %p80
    %p83 = scmp.ne.s32.totalorder %s66, %s82
    %p84 = scmp.eq.s32.totalorder %s32, 0
    %p85 = por %p83, %p84
    %s87 = sadd.s32 %s86, 1
    %p90 = scmp.eq.s32.totalorder %s26, 1
    %p91 = scmp.ne.s32.totalorder %s86, %s88
    %p92 = scmp.eq.s32.totalorder %s26, 0
    %p93 = por %p91, %p92
    %p94 = scmp.ne.s32.totalorder %s86, %s88
    %p95 = scmp.eq.s32.totalorder %s31, 1
    %p96 = por %p94, %p95
    %p97 = scmp.ne.s32.totalorder %s88, %s89
    %p98 = scmp.eq.s32.totalorder %s31, 0
    %p99 = por %p97, %p98
    %p100 = scmp.ne.s32.totalorder %s88, %s89
    %p101 = scmp.eq.s32.totalorder %s32, 1
    %p102 = por %p100, %p101
    %p104 = scmp.ne.s32.totalorder %s89, %s103
    %p105 = scmp.eq.s32.totalorder %s32, 0
    %p106 = por %p104, %p105
    %s108 = sadd.s32 %s107, 1
    %p111 = scmp.eq.s32.totalorder %s26, 1
    %p112 = scmp.ne.s32.totalorder %s107, %s109
    %p113 = scmp.eq.s32.totalorder %s26, 0
    %p114 = por %p112, %p113
    %p115 = scmp.ne.s32.totalorder %s107, %s109
    %p116 = scmp.eq.s32.totalorder %s31, 1
    %p117 = por %p115, %p116
    %p118 = scmp.ne.s32.totalorder %s109, %s110
    %p119 = scmp.eq.s32.totalorder %s31, 0
    %p120 = por %p118, %p119
    %p121 = scmp.ne.s32.totalorder %s109, %s110
    %p122 = scmp.eq.s32.totalorder %s32, 1
    %p123 = por %p121, %p122
    %p125 = scmp.ne.s32.totalorder %s110, %s124
    %p126 = scmp.eq.s32.totalorder %s32, 0
    %p127 = por %p125, %p126
    %s129 = sadd.s32 %s128, 1
    %p132 = scmp.eq.s32.totalorder %s26, 1
    %p133 = scmp.ne.s32.totalorder %s128, %s130
    %p134 = scmp.eq.s32.totalorder %s26, 0
    %p135 = por %p133, %p134
    %p136 = scmp.ne.s32.totalorder %s128, %s130
    %p137 = scmp.eq.s32.totalorder %s31, 1
    %p138 = por %p136, %p137
    %p139 = scmp.ne.s32.totalorder %s130, %s131
    %p140 = scmp.eq.s32.totalorder %s31, 0
    %p141 = por %p139, %p140
    %p142 = scmp.ne.s32.totalorder %s130, %s131
    %p143 = scmp.eq.s32.totalorder %s32, 1
    %p144 = por %p142, %p143
    %p146 = scmp.ne.s32.totalorder %s131, %s145
    %p147 = scmp.eq.s32.totalorder %s32, 0
    %p148 = por %p146, %p147
    %s150 = sadd.s32 %s149, 1
    %p153 = scmp.eq.s32.totalorder %s26, 1
    %p154 = scmp.ne.s32.totalorder %s149, %s151
    %p155 = scmp.eq.s32.totalorder %s26, 0
    %p156 = por %p154, %p155
    %p157 = scmp.ne.s32.totalorder %s149, %s151
    %p158 = scmp.eq.s32.totalorder %s31, 1
    %p159 = por %p157, %p158
    %p160 = scmp.ne.s32.totalorder %s151, %s152
    %p161 = scmp.eq.s32.totalorder %s31, 0
    %p162 = por %p160, %p161
    %p163 = scmp.ne.s32.totalorder %s151, %s152
    %p164 = scmp.eq.s32.totalorder %s32, 1
    %p165 = por %p163, %p164
    %p167 = scmp.ne.s32.totalorder %s152, %s166
    %p168 = scmp.eq.s32.totalorder %s32, 0
    %p169 = por %p167, %p168
    %s171 = sadd.s32 %s170, 1
    %p174 = scmp.eq.s32.totalorder %s26, 1
    %p175 = scmp.ne.s32.totalorder %s170, %s172
    %p176 = scmp.eq.s32.totalorder %s26, 0
    %p177 = por %p175, %p176
    %p178 = scmp.ne.s32.totalorder %s170, %s172
    %p179 = scmp.eq.s32.totalorder %s31, 1
    %p180 = por %p178, %p179
    %p181 = scmp.ne.s32.totalorder %s172, %s173
    %p182 = scmp.eq.s32.totalorder %s31, 0
    %p183 = por %p181, %p182
    %p184 = scmp.ne.s32.totalorder %s172, %s173
    %p185 = scmp.eq.s32.totalorder %s32, 1
    %p186 = por %p184, %p185
    %p188 = scmp.ne.s32.totalorder %s173, %s187
    %p189 = scmp.eq.s32.totalorder %s32, 0
    %p190 = por %p188, %p189
    %s192 = sadd.s32 %s191, 1
    %p195 = scmp.eq.s32.totalorder %s26, 1
    %p196 = scmp.ne.s32.totalorder %s191, %s193
    %p197 = scmp.eq.s32.totalorder %s26, 0
    %p198 = por %p196, %p197
    %p199 = scmp.ne.s32.totalorder %s191, %s193
    %p200 = scmp.eq.s32.totalorder %s31, 1
    %p201 = por %p199, %p200
    %p202 = scmp.ne.s32.totalorder %s193, %s194
    %p203 = scmp.eq.s32.totalorder %s31, 0
    %p204 = por %p202, %p203
    %p205 = scmp.ne.s32.totalorder %s193, %s194
    %p206 = scmp.eq.s32.totalorder %s32, 1
    %p207 = por %p205, %p206
    %p209 = scmp.ne.s32.totalorder %s194, %s208
    %p210 = scmp.eq.s32.totalorder %s32, 0
    %p211 = por %p209, %p210
    %s213 = sadd.s32 %s212, 1
    %p216 = scmp.eq.s32.totalorder %s26, 1
    %p217 = scmp.ne.s32.totalorder %s212, %s214
    %p218 = scmp.eq.s32.totalorder %s26, 0
    %p219 = por %p217, %p218
    %p220 = scmp.ne.s32.totalorder %s212, %s214
    %p221 = scmp.eq.s32.totalorder %s31, 1
    %p222 = por %p220, %p221
    %p223 = scmp.ne.s32.totalorder %s214, %s215
    %p224 = scmp.eq.s32.totalorder %s31, 0
    %p225 = por %p223, %p224
    %p226 = scmp.ne.s32.totalorder %s214, %s215
    %p227 = scmp.eq.s32.totalorder %s32, 1
    %p228 = por %p226, %p227
    %p230 = scmp.ne.s32.totalorder %s215, %s229
    %p231 = scmp.eq.s32.totalorder %s32, 0
    %p232 = por %p230, %p231
    %s234 = sadd.s32 %s233, 1
    %p237 = scmp.eq.s32.totalorder %s26, 1
    %p238 = scmp.ne.s32.totalorder %s233, %s235
    %p239 = scmp.eq.s32.totalorder %s26, 0
    %p240 = por %p238, %p239
    %p241 = scmp.ne.s32.totalorder %s233, %s235
    %p242 = scmp.eq.s32.totalorder %s31, 1
    %p243 = por %p241, %p242
    %p244 = scmp.ne.s32.totalorder %s235, %s236
    %p245 = scmp.eq.s32.totalorder %s31, 0
    %p246 = por %p244, %p245
    %p247 = scmp.ne.s32.totalorder %s235, %s236
    %p248 = scmp.eq.s32.totalorder %s32, 1
    %p249 = por %p247, %p248
    %p251 = scmp.ne.s32.totalorder %s236, %s250
    %p252 = scmp.eq.s32.totalorder %s32, 0
    %p253 = por %p251, %p252
    %s255 = sadd.s32 %s254, 1
    %p258 = scmp.eq.s32.totalorder %s26, 1
    %p259 = scmp.ne.s32.totalorder %s254, %s256
    %p260 = scmp.eq.s32.totalorder %s26, 0
    %p261 = por %p259, %p260
    %p262 = scmp.ne.s32.totalorder %s254, %s256
    %p263 = scmp.eq.s32.totalorder %s31, 1
    %p264 = por %p262, %p263
    %p265 = scmp.ne.s32.totalorder %s256, %s257
    %p266 = scmp.eq.s32.totalorder %s31, 0
    %p267 = por %p265, %p266
    %p268 = scmp.ne.s32.totalorder %s256, %s257
    %p269 = scmp.eq.s32.totalorder %s32, 1
    %p270 = por %p268, %p269
    %p272 = scmp.ne.s32.totalorder %s257, %s271
    %p273 = scmp.eq.s32.totalorder %s32, 0
    %p274 = por %p272, %p273
    %s276 = sadd.s32 %s275, 1
    %p279 = scmp.eq.s32.totalorder %s26, 1
    %p280 = scmp.ne.s32.totalorder %s275, %s277
    %p281 = scmp.eq.s32.totalorder %s26, 0
    %p282 = por %p280, %p281
    %p283 = scmp.ne.s32.totalorder %s275, %s277
    %p284 = scmp.eq.s32.totalorder %s31, 1
    %p285 = por %p283, %p284
    %p286 = scmp.ne.s32.totalorder %s277, %s278
    %p287 = scmp.eq.s32.totalorder %s31, 0
    %p288 = por %p286, %p287
    %p289 = scmp.ne.s32.totalorder %s277, %s278
    %p290 = scmp.eq.s32.totalorder %s32, 1
    %p291 = por %p289, %p290
    %p293 = scmp.ne.s32.totalorder %s278, %s292
    %p294 = scmp.eq.s32.totalorder %s32, 0
    %p295 = por %p293, %p294
    %s297 = sadd.s32 %s296, 1
    %p300 = scmp.eq.s32.totalorder %s26, 1
    %p301 = scmp.ne.s32.totalorder %s296, %s298
    %p302 = scmp.eq.s32.totalorder %s26, 0
    %p303 = por %p301, %p302
    %p304 = scmp.ne.s32.totalorder %s296, %s298
    %p305 = scmp.eq.s32.totalorder %s31, 1
    %p306 = por %p304, %p305
    %p307 = scmp.ne.s32.totalorder %s298, %s299
    %p308 = scmp.eq.s32.totalorder %s31, 0
    %p309 = por %p307, %p308
    %p310 = scmp.ne.s32.totalorder %s298, %s299
    %p311 = scmp.eq.s32.totalorder %s32, 1
    %p312 = por %p310, %p311
    %p314 = scmp.ne.s32.totalorder %s299, %s313
    %p315 = scmp.eq.s32.totalorder %s32, 0
    %p316 = por %p314, %p315
    %s318 = sadd.s32 %s317, 1
    %p321 = scmp.eq.s32.totalorder %s26, 1
    %p322 = scmp.ne.s32.totalorder %s317, %s319
    %p323 = scmp.eq.s32.totalorder %s26, 0
    %p324 = por %p322, %p323
    %p325 = scmp.ne.s32.totalorder %s317, %s319
    %p326 = scmp.eq.s32.totalorder %s31, 1
    %p327 = por %p325, %p326
    %p328 = scmp.ne.s32.totalorder %s319, %s320
    %p329 = scmp.eq.s32.totalorder %s31, 0
    %p330 = por %p328, %p329
    %p331 = scmp.ne.s32.totalorder %s319, %s320
    %p332 = scmp.eq.s32.totalorder %s32, 1
    %p333 = por %p331, %p332
    %p335 = scmp.ne.s32.totalorder %s320, %s334
    %p336 = scmp.eq.s32.totalorder %s32, 0
    %p337 = por %p335, %p336
    %s339 = sadd.s32 %s338, 1
    %p342 = scmp.eq.s32.totalorder %s26, 1
    %p343 = scmp.ne.s32.totalorder %s338, %s340
    %p344 = scmp.eq.s32.totalorder %s26, 0
    %p345 = por %p343, %p344
    %p346 = scmp.ne.s32.totalorder %s338, %s340
    %p347 = scmp.eq.s32.totalorder %s31, 1
    %p348 = por %p346, %p347
    %p349 = scmp.ne.s32.totalorder %s340, %s341
    %p350 = scmp.eq.s32.totalorder %s31, 0
    %p351 = por %p349, %p350
    %p352 = scmp.ne.s32.totalorder %s340, %s341
    %p353 = scmp.eq.s32.totalorder %s32, 1
    %p354 = por %p352, %p353
    %p356 = scmp.ne.s32.totalorder %s341, %s355
    %p357 = scmp.eq.s32.totalorder %s32, 0
    %p358 = por %p356, %p357
    %s360 = sadd.s32 %s359, 1
    %p363 = scmp.eq.s32.totalorder %s26, 1
    %p364 = scmp.ne.s32.totalorder %s359, %s361
    %p365 = scmp.eq.s32.totalorder %s26, 0
    %p366 = por %p364, %p365
    %p367 = scmp.ne.s32.totalorder %s359, %s361
    %p368 = scmp.eq.s32.totalorder %s31, 1
    %p369 = por %p367, %p368
    %p370 = scmp.ne.s32.totalorder %s361, %s362
    %p371 = scmp.eq.s32.totalorder %s31, 0
    %p372 = por %p370, %p371
    %p373 = scmp.ne.s32.totalorder %s361, %s362
    %p374 = scmp.eq.s32.totalorder %s32, 1
    %p375 = por %p373, %p374
    %p377 = scmp.ne.s32.totalorder %s362, %s376
    %p378 = scmp.eq.s32.totalorder %s32, 0
    %p379 = por %p377, %p378
    %s381 = sadd.s32 %s380, 1
    %p384 = scmp.eq.s32.totalorder %s26, 1
    %p385 = scmp.ne.s32.totalorder %s380, %s382
    %p386 = scmp.eq.s32.totalorder %s26, 0
    %p387 = por %p385, %p386
    %p388 = scmp.ne.s32.totalorder %s380, %s382
    %p389 = scmp.eq.s32.totalorder %s31, 1
    %p390 = por %p388, %p389
    %p391 = scmp.ne.s32.totalorder %s382, %s383
    %p392 = scmp.eq.s32.totalorder %s31, 0
    %p393 = por %p391, %p392
    %p394 = scmp.ne.s32.totalorder %s382, %s383
    %p395 = scmp.eq.s32.totalorder %s32, 1
    %p396 = por %p394, %p395
    %p398 = scmp.ne.s32.totalorder %s383, %s397
    %p399 = scmp.eq.s32.totalorder %s32, 0
    %p400 = por %p398, %p399
    %s402 = sadd.s32 %s401, 1
    %p405 = scmp.eq.s32.totalorder %s26, 1
    %p406 = scmp.ne.s32.totalorder %s401, %s403
    %p407 = scmp.eq.s32.totalorder %s26, 0
    %p408 = por %p406, %p407
    %p409 = scmp.ne.s32.totalorder %s401, %s403
    %p410 = scmp.eq.s32.totalorder %s31, 1
    %p411 = por %p409, %p410
    %p412 = scmp.ne.s32.totalorder %s403, %s404
    %p413 = scmp.eq.s32.totalorder %s31, 0
    %p414 = por %p412, %p413
    %p415 = scmp.ne.s32.totalorder %s403, %s404
    %p416 = scmp.eq.s32.totalorder %s32, 1
    %p417 = por %p415, %p416
    %p419 = scmp.ne.s32.totalorder %s404, %s418
    %p420 = scmp.eq.s32.totalorder %s32, 0
    %p421 = por %p419, %p420
    %s423 = sadd.s32 %s422, 1
    %p426 = scmp.eq.s32.totalorder %s26, 1
    %p427 = scmp.ne.s32.totalorder %s422, %s424
    %p428 = scmp.eq.s32.totalorder %s26, 0
    %p429 = por %p427, %p428
    %p430 = scmp.ne.s32.totalorder %s422, %s424
    %p431 = scmp.eq.s32.totalorder %s31, 1
    %p432 = por %p430, %p431
    %p433 = scmp.ne.s32.totalorder %s424, %s425
    %p434 = scmp.eq.s32.totalorder %s31, 0
    %p435 = por %p433, %p434
    %p436 = scmp.ne.s32.totalorder %s424, %s425
    %p437 = scmp.eq.s32.totalorder %s32, 1
    %p438 = por %p436, %p437
    %p440 = scmp.ne.s32.totalorder %s425, %s439
    %p441 = scmp.eq.s32.totalorder %s32, 0
    %p442 = por %p440, %p441
    %s444 = sadd.s32 %s443, 1
    %p447 = scmp.eq.s32.totalorder %s26, 1
    %p448 = scmp.ne.s32.totalorder %s443, %s445
    %p449 = scmp.eq.s32.totalorder %s26, 0
    %p450 = por %p448, %p449
    %p451 = scmp.ne.s32.totalorder %s443, %s445
    %p452 = scmp.eq.s32.totalorder %s31, 1
    %p453 = por %p451, %p452
    %p454 = scmp.ne.s32.totalorder %s445, %s446
    %p455 = scmp.eq.s32.totalorder %s31, 0
    %p456 = por %p454, %p455
    %p457 = scmp.ne.s32.totalorder %s445, %s446
    %p458 = scmp.eq.s32.totalorder %s32, 1
    %p459 = por %p457, %p458
    %p461 = scmp.ne.s32.totalorder %s446, %s460
    %p462 = scmp.eq.s32.totalorder %s32, 0
    %p463 = por %p461, %p462
    %s464 = ssub.s32 %s26, %s33
    %p465 = scmp.eq.s32.totalorder %s464, 0
    %s467 = sadd.s32 %s466, 1
    %s468 = scalar_select %p465, %s466, %s467
    %p471 = pneg %p465
    %p472 = scmp.eq.s32.totalorder %s26, 1
    %p473 = por %p471, %p472
    %p474 = scmp.ne.s32.totalorder %s466, %s469
    %p475 = scmp.eq.s32.totalorder %s26, 0
    %p476 = por %p474, %p475
    %p477 = scmp.ne.s32.totalorder %s466, %s469
    %p478 = scmp.eq.s32.totalorder %s31, 1
    %p479 = por %p477, %p478
    %p480 = scmp.ne.s32.totalorder %s469, %s470
    %p481 = scmp.eq.s32.totalorder %s31, 0
    %p482 = por %p480, %p481
    %p483 = scmp.ne.s32.totalorder %s469, %s470
    %p484 = scmp.eq.s32.totalorder %s32, 1
    %p485 = por %p483, %p484
    %p487 = scmp.ne.s32.totalorder %s470, %s486
    %p488 = scmp.eq.s32.totalorder %s32, 0
    %p489 = por %p487, %p488
    %p490 = scmp.le.s32.totalorder 1, %s26
    %p491 = scmp.lt.s32.totalorder %s26, 3
    %p492 = pnand %p490, %p491
    %p493 = pneg %p492
    // Predicated region
    $region9: #{tpu_custom_call.1} parent=5 // pred_check
      _
    $region10: #{tpu_custom_call.1} parent=5 // pred_check_branch
      %495 = sbr.rel (%p492) target = $region12
    $region11: #{tpu_custom_call.1} parent=5 // pred_region
      %s496 = ssub.s32 %s26, 1
      // Predicated region
      $region13: #{tpu_custom_call.1} parent=11 // pred_check
        %p497 = pneg %p99
      $region14: #{tpu_custom_call.1} parent=11 // pred_check_branch
        %499 = sbr.rel (%p497) target = $region16
      $region15: #{tpu_custom_call.1} parent=11 // pred_region
        _
      $region16: #{tpu_custom_call.1} parent=11 // pred_fallthru
        _
      // Predicated region
      $region17: #{tpu_custom_call.1} parent=11 // pred_check
        %p500 = pneg %p120
      $region18: #{tpu_custom_call.1} parent=11 // pred_check_branch
        %502 = sbr.rel (%p500) target = $region20
      $region19: #{tpu_custom_call.1} parent=11 // pred_region
        _
      $region20: #{tpu_custom_call.1} parent=11 // pred_fallthru
        _
      // Predicated region
      $region21: #{tpu_custom_call.1} parent=11 // pred_check
        %p503 = pneg %p141
      $region22: #{tpu_custom_call.1} parent=11 // pred_check_branch
        %505 = sbr.rel (%p503) target = $region24
      $region23: #{tpu_custom_call.1} parent=11 // pred_region
        _
      $region24: #{tpu_custom_call.1} parent=11 // pred_fallthru
        _
      // Predicated region
      $region25: #{tpu_custom_call.1} parent=11 // pred_check
        %p506 = pneg %p162
      $region26: #{tpu_custom_call.1} parent=11 // pred_check_branch
        %508 = sbr.rel (%p506) target = $region28
      $region27: #{tpu_custom_call.1} parent=11 // pred_region
        _
      $region28: #{tpu_custom_call.1} parent=11 // pred_fallthru
        _
      // Predicated region
      $region29: #{tpu_custom_call.1} parent=11 // pred_check
        %p509 = pneg %p183
      $region30: #{tpu_custom_call.1} parent=11 // pred_check_branch
        %511 = sbr.rel (%p509) target = $region32
      $region31: #{tpu_custom_call.1} parent=11 // pred_region
        _
      $region32: #{tpu_custom_call.1} parent=11 // pred_fallthru
        _
      // Predicated region
      $region33: #{tpu_custom_call.1} parent=11 // pred_check
        %p512 = pneg %p204
      $region34: #{tpu_custom_call.1} parent=11 // pred_check_branch
        %514 = sbr.rel (%p512) target = $region36
      $region35: #{tpu_custom_call.1} parent=11 // pred_region
        _
      $region36: #{tpu_custom_call.1} parent=11 // pred_fallthru
        _
      // Predicated region
      $region37: #{tpu_custom_call.1} parent=11 // pred_check
        %p515 = pneg %p225
      $region38: #{tpu_custom_call.1} parent=11 // pred_check_branch
        %517 = sbr.rel (%p515) target = $region40
      $region39: #{tpu_custom_call.1} parent=11 // pred_region
        _
      $region40: #{tpu_custom_call.1} parent=11 // pred_fallthru
        _
      // Predicated region
      $region41: #{tpu_custom_call.1} parent=11 // pred_check
        %p518 = pneg %p246
      $region42: #{tpu_custom_call.1} parent=11 // pred_check_branch
        %520 = sbr.rel (%p518) target = $region44
      $region43: #{tpu_custom_call.1} parent=11 // pred_region
        _
      $region44: #{tpu_custom_call.1} parent=11 // pred_fallthru
        _
      // Predicated region
      $region45: #{tpu_custom_call.1} parent=11 // pred_check
        %p521 = pneg %p267
      $region46: #{tpu_custom_call.1} parent=11 // pred_check_branch
        %523 = sbr.rel (%p521) target = $region48
      $region47: #{tpu_custom_call.1} parent=11 // pred_region
        _
      $region48: #{tpu_custom_call.1} parent=11 // pred_fallthru
        _
      // Predicated region
      $region49: #{tpu_custom_call.1} parent=11 // pred_check
        %p524 = pneg %p288
      $region50: #{tpu_custom_call.1} parent=11 // pred_check_branch
        %526 = sbr.rel (%p524) target = $region52
      $region51: #{tpu_custom_call.1} parent=11 // pred_region
        _
      $region52: #{tpu_custom_call.1} parent=11 // pred_fallthru
        _
      // Predicated region
      $region53: #{tpu_custom_call.1} parent=11 // pred_check
        %p527 = pneg %p309
      $region54: #{tpu_custom_call.1} parent=11 // pred_check_branch
        %529 = sbr.rel (%p527) target = $region56
      $region55: #{tpu_custom_call.1} parent=11 // pred_region
        _
      $region56: #{tpu_custom_call.1} parent=11 // pred_fallthru
        _
      // Predicated region
      $region57: #{tpu_custom_call.1} parent=11 // pred_check
        %p530 = pneg %p330
      $region58: #{tpu_custom_call.1} parent=11 // pred_check_branch
        %532 = sbr.rel (%p530) target = $region60
      $region59: #{tpu_custom_call.1} parent=11 // pred_region
        _
      $region60: #{tpu_custom_call.1} parent=11 // pred_fallthru
        _
      // Predicated region
      $region61: #{tpu_custom_call.1} parent=11 // pred_check
        %p533 = pneg %p351
      $region62: #{tpu_custom_call.1} parent=11 // pred_check_branch
        %535 = sbr.rel (%p533) target = $region64
      $region63: #{tpu_custom_call.1} parent=11 // pred_region
        _
      $region64: #{tpu_custom_call.1} parent=11 // pred_fallthru
        _
      // Predicated region
      $region65: #{tpu_custom_call.1} parent=11 // pred_check
        %p536 = pneg %p372
      $region66: #{tpu_custom_call.1} parent=11 // pred_check_branch
        %538 = sbr.rel (%p536) target = $region68
      $region67: #{tpu_custom_call.1} parent=11 // pred_region
        _
      $region68: #{tpu_custom_call.1} parent=11 // pred_fallthru
        _
      // Predicated region
      $region69: #{tpu_custom_call.1} parent=11 // pred_check
        %p539 = pneg %p393
      $region70: #{tpu_custom_call.1} parent=11 // pred_check_branch
        %541 = sbr.rel (%p539) target = $region72
      $region71: #{tpu_custom_call.1} parent=11 // pred_region
        _
      $region72: #{tpu_custom_call.1} parent=11 // pred_fallthru
        _
      // Predicated region
      $region73: #{tpu_custom_call.1} parent=11 // pred_check
        %p542 = pneg %p414
      $region74: #{tpu_custom_call.1} parent=11 // pred_check_branch
        %544 = sbr.rel (%p542) target = $region76
      $region75: #{tpu_custom_call.1} parent=11 // pred_region
        _
      $region76: #{tpu_custom_call.1} parent=11 // pred_fallthru
        _
      // Predicated region
      $region77: #{tpu_custom_call.1} parent=11 // pred_check
        %p545 = pneg %p435
      $region78: #{tpu_custom_call.1} parent=11 // pred_check_branch
        %547 = sbr.rel (%p545) target = $region80
      $region79: #{tpu_custom_call.1} parent=11 // pred_region
        _
      $region80: #{tpu_custom_call.1} parent=11 // pred_fallthru
        _
      // Predicated region
      $region81: #{tpu_custom_call.1} parent=11 // pred_check
        %p548 = pneg %p456
      $region82: #{tpu_custom_call.1} parent=11 // pred_check_branch
        %550 = sbr.rel (%p548) target = $region84
      $region83: #{tpu_custom_call.1} parent=11 // pred_region
        _
      $region84: #{tpu_custom_call.1} parent=11 // pred_fallthru
        _
    $region12: #{tpu_custom_call.1} parent=5 // pred_fallthru
      _
    %p551 = scmp.lt.s32.totalorder %s26, 2
    // Predicated region
    $region85: #{tpu_custom_call.1} parent=5 // pred_check
      %p552 = pneg %p551
    $region86: #{tpu_custom_call.1} parent=5 // pred_check_branch
      %554 = sbr.rel (%p552) target = $region88
    $region87: #{tpu_custom_call.1} parent=5 // pred_region
      // Predicated region
      $region89: #{tpu_custom_call.1} parent=87 // pred_check
        %p555 = pneg %p46
      $region90: #{tpu_custom_call.1} parent=87 // pred_check_branch
        %557 = sbr.rel (%p555) target = $region92
      $region91: #{tpu_custom_call.1} parent=87 // pred_region
        %p558 = scmp.lt.s32.totalorder %s26, 1
        %s559 = scalar_select %p558, %s26, 1
        %s560 = smul.addr %s559, 6
        %s561 = smul.addr %s560, 4
        %s562 = scalar_lea.vmem %s0, %s561
      $region92: #{tpu_custom_call.1} parent=87 // pred_fallthru
        _
      // Predicated region
      $region93: #{tpu_custom_call.1} parent=87 // pred_check
        %p563 = pneg %p72
      $region94: #{tpu_custom_call.1} parent=87 // pred_check_branch
        %565 = sbr.rel (%p563) target = $region96
      $region95: #{tpu_custom_call.1} parent=87 // pred_region
        %p566 = scmp.lt.s32.totalorder %s26, 1
        %s567 = scalar_select %p566, %s26, 1
        %s568 = smul.addr %s567, 8
        %s569 = smul.addr %s568, 8
        %s570 = scalar_lea.vmem %s1, %s569
      $region96: #{tpu_custom_call.1} parent=87 // pred_fallthru
        _
    $region88: #{tpu_custom_call.1} parent=5 // pred_fallthru
      _
    %p571 = scmp.le.s32.totalorder 1, %s26
    %p572 = scmp.lt.s32.totalorder %s26, 3
    %p573 = pnand %p571, %p572
    %p574 = pneg %p573
    // Predicated region
    $region97: #{tpu_custom_call.1} parent=5 // pred_check
      _
    $region98: #{tpu_custom_call.1} parent=5 // pred_check_branch
      %576 = sbr.rel (%p573) target = $region100
    $region99: #{tpu_custom_call.1} parent=5 // pred_region
      %s577 = ssub.s32 %s26, 1
      %p578 = scmp.lt.s32.totalorder %s31, 1
      %s579 = scalar_select %p578, %s31, 1
      %s580 = smul.addr %s579, 6
      %s581 = smul.addr %s580, 4
      %s582 = scalar_lea.vmem %s0, %s581
      %p583 = pneg %p52
      %p584 = pneg %p49
      %p585 = scmp.lt.s32.totalorder %s31, 1
      %s586 = scalar_select %p585, %s31, 1
      %s587 = smul.addr %s586, 8
      %s588 = smul.addr %s587, 8
      %s589 = scalar_lea.vmem %s1, %s588
      %p590 = pneg %p78
      %p591 = pneg %p75
      %p592 = pneg %p99
      %p593 = pneg %p96
      %p594 = pneg %p120
      %p595 = pneg %p117
      %p596 = pneg %p141
      %p597 = pneg %p138
      %p598 = pneg %p162
      %p599 = pneg %p159
      %p600 = pneg %p183
      %p601 = pneg %p180
      %p602 = pneg %p204
      %p603 = pneg %p201
      %p604 = pneg %p225
      %p605 = pneg %p222
      %p606 = pneg %p246
      %p607 = pneg %p243
      %p608 = pneg %p267
      %p609 = pneg %p264
      %p610 = pneg %p288
      %p611 = pneg %p285
      %p612 = pneg %p309
      %p613 = pneg %p306
      %p614 = pneg %p330
      %p615 = pneg %p327
      %p616 = pneg %p351
      %p617 = pneg %p348
      %p618 = pneg %p372
      %p619 = pneg %p369
      %p620 = pneg %p393
      %p621 = pneg %p390
      %p622 = pneg %p414
      %p623 = pneg %p411
      %p624 = pneg %p435
      %p625 = pneg %p432
      %p626 = pneg %p456
      %p627 = pneg %p453
      %p628 = pneg %p482
      %p629 = pneg %p479
      %s630 = smul.u32 2, %s31
      %p631 = scmp.lt.s32.totalorder %s630, 3
      %s632 = scalar_select %p631, %s630, 3
      %s633 = smul.addr %s632, 2
      %s634 = smul.addr %s633, 8
      %s635 = scalar_lea.vmem %s20, %s634
      %p636 = scmp.lt.s32.totalorder %s31, 1
      %s637 = scalar_select %p636, %s31, 1
      %s638 = smul.addr %s637, 6
      %s639 = smul.addr %s638, 4
      %s640 = scalar_lea.vmem %s0, %s639
      %p641 = scmp.lt.s32.totalorder %s31, 1
      %s642 = scalar_select %p641, %s31, 1
      %s643 = smul.addr %s642, 8
      %s644 = smul.addr %s643, 8
      %s645 = scalar_lea.vmem %s1, %s644
      %s646 = smul.u32 2, %s31
      %p647 = scmp.lt.s32.totalorder %s646, 3
      %s648 = scalar_select %p647, %s646, 3
      %s649 = smul.addr %s648, 2
      %s650 = smul.addr %s649, 8
      %s651 = scalar_lea.vmem %s20, %s650
      %s652 = smul.u32 2, %s31
      %v653 = vld [vmem:[%s640] sm:$0xff]
      %v654 = vld [vmem:[%s640 + $0x8] sm:$0xff]
      %v655 = vld [vmem:[%s640 + $0x10] sm:$0xff]
      %659 = vst [vmem:[#allocation1] ss:$2 sm:$0xff] %v653
      %s660 = scalar_lea.vmem [#allocation1], 16
      %661 = vst [vmem:[%s660] ss:$2 sm:$0xff] %v654
      %s662 = scalar_lea.vmem [#allocation1], 32
      %663 = vst [vmem:[%s662] ss:$2 sm:$0xff] %v655
      %v664 = vld.sshfl [vmem:[#allocation1] sm:$0xff pattern:$0x75316420]
      %v665 = vld.sshfl [vmem:[#allocation1 + $0x8] sm:$0xff pattern:$0x75316420]
      %v666 = vld.sshfl [vmem:[#allocation1 + $0x10] sm:$0xff pattern:$0x75316420]
      %v667 = vld.sshfl [vmem:[#allocation1 + $0x18] sm:$0xff pattern:$0x75316420]
      %v668 = vld.sshfl [vmem:[#allocation1 + $0x20] sm:$0xff pattern:$0x75316420]
      %v669 = vld.sshfl [vmem:[#allocation1 + $0x28] sm:$0xff pattern:$0x75316420]
      %676 = vst [vmem:[#allocation2] sm:$0xf] %v664
      %677 = vst [vmem:[#allocation2 + $0x8] sm:$0xf] %v665
      %678 = vst [vmem:[#allocation2 + $0x10] sm:$0xf] %v666
      %679 = vst [vmem:[#allocation2 + $0x18] sm:$0xf] %v667
      %680 = vst [vmem:[#allocation2 + $0x20] sm:$0xf] %v668
      %vm681 = vcmask 338944
      %682 = vst.msk [vmem:[#allocation2 + $0x28] sm:$0xf] %vm681, %v669
      %v683 = vld [vmem:[%s640] sm:$0xff]
      %v684 = vld [vmem:[%s640 + $0x8] sm:$0xff]
      %v685 = vld [vmem:[%s640 + $0x10] sm:$0xff]
      %s689 = scalar_lea.vmem [#allocation1], 1
      %690 = vst [vmem:[%s689] ss:$2 sm:$0xff] %v683
      %s691 = scalar_lea.vmem [#allocation1], 17
      %692 = vst [vmem:[%s691] ss:$2 sm:$0xff] %v684
      %s693 = scalar_lea.vmem [#allocation1], 33
      %694 = vst [vmem:[%s693] ss:$2 sm:$0xff] %v685
      %v695 = vld.sshfl [vmem:[#allocation1] sm:$0xff pattern:$0x75316420]
      %v696 = vld.sshfl [vmem:[#allocation1 + $0x8] sm:$0xff pattern:$0x75316420]
      %v697 = vld.sshfl [vmem:[#allocation1 + $0x10] sm:$0xff pattern:$0x75316420]
      %v698 = vld.sshfl [vmem:[#allocation1 + $0x18] sm:$0xff pattern:$0x75316420]
      %v699 = vld.sshfl [vmem:[#allocation1 + $0x20] sm:$0xff pattern:$0x75316420]
      %v700 = vld.sshfl [vmem:[#allocation1 + $0x28] sm:$0xff pattern:$0x75316420]
      %701 = vrot.lane.b32.xlu0 %v695, 127
      %v702 = vpop.permute.xlu0 %701
      %703 = vrot.lane.b32.xlu0 %v696, 127
      %v704 = vpop.permute.xlu0 %703
      %705 = vrot.lane.b32.xlu0 %v697, 127
      %v706 = vpop.permute.xlu0 %705
      %707 = vrot.lane.b32.xlu0 %v698, 127
      %v708 = vpop.permute.xlu0 %707
      %709 = vrot.lane.b32.xlu0 %v699, 127
      %v710 = vpop.permute.xlu0 %709
      %711 = vrot.lane.b32.xlu0 %v700, 127
      %v712 = vpop.permute.xlu0 %711
      %vm713 = vcmask 1039360
      %v714 = vsel %vm713, %v702, %v704
      %v715 = vsel %vm713, %v704, %v706
      %v716 = vsel %vm713, %v706, %v708
      %v717 = vsel %vm713, %v708, %v710
      %v718 = vsel %vm713, %v710, %v712
      %725 = vst [vmem:[#allocation2] sm:$0xf0] %v714
      %726 = vst [vmem:[#allocation2 + $0x8] sm:$0xf0] %v715
      %727 = vst [vmem:[#allocation2 + $0x10] sm:$0xf0] %v716
      %728 = vst [vmem:[#allocation2 + $0x18] sm:$0xf0] %v717
      %729 = vst [vmem:[#allocation2 + $0x20] sm:$0xf0] %v718
      %vm730 = vcmask 343044
      %731 = vst.msk [vmem:[#allocation2 + $0x28] sm:$0xf0] %vm730, %v712
      %v732 = vld [vmem:[%s640] sm:$0xff]
      %v733 = vld [vmem:[%s640 + $0x8] sm:$0xff]
      %v734 = vld [vmem:[%s640 + $0x10] sm:$0xff]
      %738 = vst [vmem:[#allocation1] ss:$2 sm:$0xff] %v732
      %s739 = scalar_lea.vmem [#allocation1], 16
      %740 = vst [vmem:[%s739] ss:$2 sm:$0xff] %v733
      %s741 = scalar_lea.vmem [#allocation1], 32
      %742 = vst [vmem:[%s741] ss:$2 sm:$0xff] %v734
      %v743 = vld.sshfl [vmem:[#allocation1] sm:$0xff pattern:$0x75316420]
      %v744 = vld.sshfl [vmem:[#allocation1 + $0x8] sm:$0xff pattern:$0x75316420]
      %v745 = vld.sshfl [vmem:[#allocation1 + $0x10] sm:$0xff pattern:$0x75316420]
      %v746 = vld.sshfl [vmem:[#allocation1 + $0x18] sm:$0xff pattern:$0x75316420]
      %v747 = vld.sshfl [vmem:[#allocation1 + $0x20] sm:$0xff pattern:$0x75316420]
      %v748 = vld.sshfl [vmem:[#allocation1 + $0x28] sm:$0xff pattern:$0x75316420]
      %749 = vrot.lane.b32.xlu0 %v743, 126
      %v750 = vpop.permute.xlu0 %749
      %751 = vrot.lane.b32.xlu0 %v744, 126
      %v752 = vpop.permute.xlu0 %751
      %753 = vrot.lane.b32.xlu0 %v745, 126
      %v754 = vpop.permute.xlu0 %753
      %755 = vrot.lane.b32.xlu0 %v746, 126
      %v756 = vpop.permute.xlu0 %755
      %757 = vrot.lane.b32.xlu0 %v747, 126
      %v758 = vpop.permute.xlu0 %757
      %759 = vrot.lane.b32.xlu0 %v748, 126
      %v760 = vpop.permute.xlu0 %759
      %vm761 = vcmask 1031168
      %v762 = vsel %vm761, %v750, %v752
      %v763 = vsel %vm761, %v752, %v754
      %v764 = vsel %vm761, %v754, %v756
      %v765 = vsel %vm761, %v756, %v758
      %v766 = vsel %vm761, %v758, %v760
      %773 = vst [vmem:[#allocation2 + $0x30] sm:$0xf] %v762
      %774 = vst [vmem:[#allocation2 + $0x38] sm:$0xf] %v763
      %775 = vst [vmem:[#allocation2 + $0x40] sm:$0xf] %v764
      %776 = vst [vmem:[#allocation2 + $0x48] sm:$0xf] %v765
      %777 = vst [vmem:[#allocation2 + $0x50] sm:$0xf] %v766
      %778 = vst.msk [vmem:[#allocation2 + $0x58] sm:$0xf] %vm681, %v760
      %v779 = vld [vmem:[%s640] sm:$0xff]
      %v780 = vld [vmem:[%s640 + $0x8] sm:$0xff]
      %v781 = vld [vmem:[%s640 + $0x10] sm:$0xff]
      %s785 = scalar_lea.vmem [#allocation1], 1
      %786 = vst [vmem:[%s785] ss:$2 sm:$0xff] %v779
      %s787 = scalar_lea.vmem [#allocation1], 17
      %788 = vst [vmem:[%s787] ss:$2 sm:$0xff] %v780
      %s789 = scalar_lea.vmem [#allocation1], 33
      %790 = vst [vmem:[%s789] ss:$2 sm:$0xff] %v781
      %v791 = vld.sshfl [vmem:[#allocation1] sm:$0xff pattern:$0x75316420]
      %v792 = vld.sshfl [vmem:[#allocation1 + $0x8] sm:$0xff pattern:$0x75316420]
      %v793 = vld.sshfl [vmem:[#allocation1 + $0x10] sm:$0xff pattern:$0x75316420]
      %v794 = vld.sshfl [vmem:[#allocation1 + $0x18] sm:$0xff pattern:$0x75316420]
      %v795 = vld.sshfl [vmem:[#allocation1 + $0x20] sm:$0xff pattern:$0x75316420]
      %v796 = vld.sshfl [vmem:[#allocation1 + $0x28] sm:$0xff pattern:$0x75316420]
      %797 = vrot.lane.b32.xlu0 %v791, 110
      %v798 = vpop.permute.xlu0 %797
      %799 = vrot.lane.b32.xlu0 %v792, 110
      %v800 = vpop.permute.xlu0 %799
      %801 = vrot.lane.b32.xlu0 %v793, 110
      %v802 = vpop.permute.xlu0 %801
      %803 = vrot.lane.b32.xlu0 %v794, 110
      %v804 = vpop.permute.xlu0 %803
      %805 = vrot.lane.b32.xlu0 %v795, 110
      %v806 = vpop.permute.xlu0 %805
      %807 = vrot.lane.b32.xlu0 %v796, 110
      %v808 = vpop.permute.xlu0 %807
      %vm809 = vcmask 900096
      %v810 = vsel %vm809, %v798, %v800
      %v811 = vsel %vm809, %v800, %v802
      %v812 = vsel %vm809, %v802, %v804
      %v813 = vsel %vm809, %v804, %v806
      %v814 = vsel %vm809, %v806, %v808
      %821 = vst [vmem:[#allocation2 + $0x30] sm:$0xf0] %v810
      %822 = vst [vmem:[#allocation2 + $0x38] sm:$0xf0] %v811
      %823 = vst [vmem:[#allocation2 + $0x40] sm:$0xf0] %v812
      %824 = vst [vmem:[#allocation2 + $0x48] sm:$0xf0] %v813
      %825 = vst [vmem:[#allocation2 + $0x50] sm:$0xf0] %v814
      %826 = vst.msk [vmem:[#allocation2 + $0x58] sm:$0xf0] %vm730, %v808
      %v827 = vld [vmem:[%s640] sm:$0xff]
      %v828 = vld [vmem:[%s640 + $0x8] sm:$0xff]
      %v829 = vld [vmem:[%s640 + $0x10] sm:$0xff]
      %833 = vst [vmem:[#allocation1] ss:$2 sm:$0xff] %v827
      %s834 = scalar_lea.vmem [#allocation1], 16
      %835 = vst [vmem:[%s834] ss:$2 sm:$0xff] %v828
      %s836 = scalar_lea.vmem [#allocation1], 32
      %837 = vst [vmem:[%s836] ss:$2 sm:$0xff] %v829
      %v838 = vld.sshfl [vmem:[#allocation1] sm:$0xff pattern:$0x75316420]
      %v839 = vld.sshfl [vmem:[#allocation1 + $0x8] sm:$0xff pattern:$0x75316420]
      %v840 = vld.sshfl [vmem:[#allocation1 + $0x10] sm:$0xff pattern:$0x75316420]
      %v841 = vld.sshfl [vmem:[#allocation1 + $0x18] sm:$0xff pattern:$0x75316420]
      %v842 = vld.sshfl [vmem:[#allocation1 + $0x20] sm:$0xff pattern:$0x75316420]
      %v843 = vld.sshfl [vmem:[#allocation1 + $0x28] sm:$0xff pattern:$0x75316420]
      %844 = vrot.lane.b32.xlu0 %v838, 109
      %v845 = vpop.permute.xlu0 %844
      %846 = vrot.lane.b32.xlu0 %v839, 109
      %v847 = vpop.permute.xlu0 %846
      %848 = vrot.lane.b32.xlu0 %v840, 109
      %v849 = vpop.permute.xlu0 %848
      %850 = vrot.lane.b32.xlu0 %v841, 109
      %v851 = vpop.permute.xlu0 %850
      %852 = vrot.lane.b32.xlu0 %v842, 109
      %v853 = vpop.permute.xlu0 %852
      %854 = vrot.lane.b32.xlu0 %v843, 109
      %v855 = vpop.permute.xlu0 %854
      %vm856 = vcmask 891904
      %v857 = vsel %vm856, %v845, %v847
      %v858 = vsel %vm856, %v847, %v849
      %v859 = vsel %vm856, %v849, %v851
      %v860 = vsel %vm856, %v851, %v853
      %v861 = vsel %vm856, %v853, %v855
      %868 = vst [vmem:[#allocation2 + $0x60] sm:$0xf] %v857
      %869 = vst [vmem:[#allocation2 + $0x68] sm:$0xf] %v858
      %870 = vst [vmem:[#allocation2 + $0x70] sm:$0xf] %v859
      %871 = vst [vmem:[#allocation2 + $0x78] sm:$0xf] %v860
      %872 = vst [vmem:[#allocation2 + $0x80] sm:$0xf] %v861
      %873 = vst.msk [vmem:[#allocation2 + $0x88] sm:$0xf] %vm681, %v855
      %v874 = vld [vmem:[%s640] sm:$0xff]
      %v875 = vld [vmem:[%s640 + $0x8] sm:$0xff]
      %v876 = vld [vmem:[%s640 + $0x10] sm:$0xff]
      %s880 = scalar_lea.vmem [#allocation1], 1
      %881 = vst [vmem:[%s880] ss:$2 sm:$0xff] %v874
      %s882 = scalar_lea.vmem [#allocation1], 17
      %883 = vst [vmem:[%s882] ss:$2 sm:$0xff] %v875
      %s884 = scalar_lea.vmem [#allocation1], 33
      %885 = vst [vmem:[%s884] ss:$2 sm:$0xff] %v876
      %v886 = vld.sshfl [vmem:[#allocation1] sm:$0xff pattern:$0x75316420]
      %v887 = vld.sshfl [vmem:[#allocation1 + $0x8] sm:$0xff pattern:$0x75316420]
      %v888 = vld.sshfl [vmem:[#allocation1 + $0x10] sm:$0xff pattern:$0x75316420]
      %v889 = vld.sshfl [vmem:[#allocation1 + $0x18] sm:$0xff pattern:$0x75316420]
      %v890 = vld.sshfl [vmem:[#allocation1 + $0x20] sm:$0xff pattern:$0x75316420]
      %v891 = vld.sshfl [vmem:[#allocation1 + $0x28] sm:$0xff pattern:$0x75316420]
      %892 = vrot.lane.b32.xlu0 %v886, 108
      %v893 = vpop.permute.xlu0 %892
      %894 = vrot.lane.b32.xlu0 %v887, 108
      %v895 = vpop.permute.xlu0 %894
      %896 = vrot.lane.b32.xlu0 %v888, 108
      %v897 = vpop.permute.xlu0 %896
      %898 = vrot.lane.b32.xlu0 %v889, 108
      %v899 = vpop.permute.xlu0 %898
      %900 = vrot.lane.b32.xlu0 %v890, 108
      %v901 = vpop.permute.xlu0 %900
      %902 = vrot.lane.b32.xlu0 %v891, 108
      %v903 = vpop.permute.xlu0 %902
      %vm904 = vcmask 883712
      %v905 = vsel %vm904, %v893, %v895
      %v906 = vsel %vm904, %v895, %v897
      %v907 = vsel %vm904, %v897, %v899
      %v908 = vsel %vm904, %v899, %v901
      %v909 = vsel %vm904, %v901, %v903
      %916 = vst [vmem:[#allocation2 + $0x60] sm:$0xf0] %v905
      %917 = vst [vmem:[#allocation2 + $0x68] sm:$0xf0] %v906
      %918 = vst [vmem:[#allocation2 + $0x70] sm:$0xf0] %v907
      %919 = vst [vmem:[#allocation2 + $0x78] sm:$0xf0] %v908
      %920 = vst [vmem:[#allocation2 + $0x80] sm:$0xf0] %v909
      %921 = vst.msk [vmem:[#allocation2 + $0x88] sm:$0xf0] %vm730, %v903
      %v922 = vld [vmem:[%s640] sm:$0xff]
      %v923 = vld [vmem:[%s640 + $0x8] sm:$0xff]
      %v924 = vld [vmem:[%s640 + $0x10] sm:$0xff]
      %928 = vst [vmem:[#allocation1] ss:$2 sm:$0xff] %v922
      %s929 = scalar_lea.vmem [#allocation1], 16
      %930 = vst [vmem:[%s929] ss:$2 sm:$0xff] %v923
      %s931 = scalar_lea.vmem [#allocation1], 32
      %932 = vst [vmem:[%s931] ss:$2 sm:$0xff] %v924
      %v933 = vld.sshfl [vmem:[#allocation1] sm:$0xff pattern:$0x75316420]
      %v934 = vld.sshfl [vmem:[#allocation1 + $0x8] sm:$0xff pattern:$0x75316420]
      %v935 = vld.sshfl [vmem:[#allocation1 + $0x10] sm:$0xff pattern:$0x75316420]
      %v936 = vld.sshfl [vmem:[#allocation1 + $0x18] sm:$0xff pattern:$0x75316420]
      %v937 = vld.sshfl [vmem:[#allocation1 + $0x20] sm:$0xff pattern:$0x75316420]
      %v938 = vld.sshfl [vmem:[#allocation1 + $0x28] sm:$0xff pattern:$0x75316420]
      %939 = vrot.lane.b32.xlu0 %v933, 92
      %v940 = vpop.permute.xlu0 %939
      %941 = vrot.lane.b32.xlu0 %v934, 92
      %v942 = vpop.permute.xlu0 %941
      %943 = vrot.lane.b32.xlu0 %v935, 92
      %v944 = vpop.permute.xlu0 %943
      %945 = vrot.lane.b32.xlu0 %v936, 92
      %v946 = vpop.permute.xlu0 %945
      %947 = vrot.lane.b32.xlu0 %v937, 92
      %v948 = vpop.permute.xlu0 %947
      %949 = vrot.lane.b32.xlu0 %v938, 92
      %v950 = vpop.permute.xlu0 %949
      %vm951 = vcmask 752640
      %v952 = vsel %vm951, %v940, %v942
      %v953 = vsel %vm951, %v942, %v944
      %v954 = vsel %vm951, %v944, %v946
      %v955 = vsel %vm951, %v946, %v948
      %v956 = vsel %vm951, %v948, %v950
      %963 = vst [vmem:[#allocation2 + $0x90] sm:$0xf] %v952
      %964 = vst [vmem:[#allocation2 + $0x98] sm:$0xf] %v953
      %965 = vst [vmem:[#allocation2 + $0xa0] sm:$0xf] %v954
      %966 = vst [vmem:[#allocation2 + $0xa8] sm:$0xf] %v955
      %967 = vst [vmem:[#allocation2 + $0xb0] sm:$0xf] %v956
      %968 = vst.msk [vmem:[#allocation2 + $0xb8] sm:$0xf] %vm681, %v950
      %v969 = vld [vmem:[%s640] sm:$0xff]
      %v970 = vld [vmem:[%s640 + $0x8] sm:$0xff]
      %v971 = vld [vmem:[%s640 + $0x10] sm:$0xff]
      %s975 = scalar_lea.vmem [#allocation1], 1
      %976 = vst [vmem:[%s975] ss:$2 sm:$0xff] %v969
      %s977 = scalar_lea.vmem [#allocation1], 17
      %978 = vst [vmem:[%s977] ss:$2 sm:$0xff] %v970
      %s979 = scalar_lea.vmem [#allocation1], 33
      %980 = vst [vmem:[%s979] ss:$2 sm:$0xff] %v971
      %v981 = vld.sshfl [vmem:[#allocation1] sm:$0xff pattern:$0x75316420]
      %v982 = vld.sshfl [vmem:[#allocation1 + $0x8] sm:$0xff pattern:$0x75316420]
      %v983 = vld.sshfl [vmem:[#allocation1 + $0x10] sm:$0xff pattern:$0x75316420]
      %v984 = vld.sshfl [vmem:[#allocation1 + $0x18] sm:$0xff pattern:$0x75316420]
      %v985 = vld.sshfl [vmem:[#allocation1 + $0x20] sm:$0xff pattern:$0x75316420]
      %v986 = vld.sshfl [vmem:[#allocation1 + $0x28] sm:$0xff pattern:$0x75316420]
      %987 = vrot.lane.b32.xlu0 %v981, 91
      %v988 = vpop.permute.xlu0 %987
      %989 = vrot.lane.b32.xlu0 %v982, 91
      %v990 = vpop.permute.xlu0 %989
      %991 = vrot.lane.b32.xlu0 %v983, 91
      %v992 = vpop.permute.xlu0 %991
      %993 = vrot.lane.b32.xlu0 %v984, 91
      %v994 = vpop.permute.xlu0 %993
      %995 = vrot.lane.b32.xlu0 %v985, 91
      %v996 = vpop.permute.xlu0 %995
      %997 = vrot.lane.b32.xlu0 %v986, 91
      %v998 = vpop.permute.xlu0 %997
      %vm999 = vcmask 744448
      %v1000 = vsel %vm999, %v988, %v990
      %v1001 = vsel %vm999, %v990, %v992
      %v1002 = vsel %vm999, %v992, %v994
      %v1003 = vsel %vm999, %v994, %v996
      %v1004 = vsel %vm999, %v996, %v998
      %1011 = vst [vmem:[#allocation2 + $0x90] sm:$0xf0] %v1000
      %1012 = vst [vmem:[#allocation2 + $0x98] sm:$0xf0] %v1001
      %1013 = vst [vmem:[#allocation2 + $0xa0] sm:$0xf0] %v1002
      %1014 = vst [vmem:[#allocation2 + $0xa8] sm:$0xf0] %v1003
      %1015 = vst [vmem:[#allocation2 + $0xb0] sm:$0xf0] %v1004
      %1016 = vst.msk [vmem:[#allocation2 + $0xb8] sm:$0xf0] %vm730, %v998
      %v1017 = vld [vmem:[%s640] sm:$0xff]
      %v1018 = vld [vmem:[%s640 + $0x8] sm:$0xff]
      %v1019 = vld [vmem:[%s640 + $0x10] sm:$0xff]
      %1023 = vst [vmem:[#allocation1] ss:$2 sm:$0xff] %v1017
      %s1024 = scalar_lea.vmem [#allocation1], 16
      %1025 = vst [vmem:[%s1024] ss:$2 sm:$0xff] %v1018
      %s1026 = scalar_lea.vmem [#allocation1], 32
      %1027 = vst [vmem:[%s1026] ss:$2 sm:$0xff] %v1019
      %v1028 = vld.sshfl [vmem:[#allocation1] sm:$0xff pattern:$0x75316420]
      %v1029 = vld.sshfl [vmem:[#allocation1 + $0x8] sm:$0xff pattern:$0x75316420]
      %v1030 = vld.sshfl [vmem:[#allocation1 + $0x10] sm:$0xff pattern:$0x75316420]
      %v1031 = vld.sshfl [vmem:[#allocation1 + $0x18] sm:$0xff pattern:$0x75316420]
      %v1032 = vld.sshfl [vmem:[#allocation1 + $0x20] sm:$0xff pattern:$0x75316420]
      %v1033 = vld.sshfl [vmem:[#allocation1 + $0x28] sm:$0xff pattern:$0x75316420]
      %1034 = vrot.lane.b32.xlu0 %v1028, 90
      %v1035 = vpop.permute.xlu0 %1034
      %1036 = vrot.lane.b32.xlu0 %v1029, 90
      %v1037 = vpop.permute.xlu0 %1036
      %1038 = vrot.lane.b32.xlu0 %v1030, 90
      %v1039 = vpop.permute.xlu0 %1038
      %1040 = vrot.lane.b32.xlu0 %v1031, 90
      %v1041 = vpop.permute.xlu0 %1040
      %1042 = vrot.lane.b32.xlu0 %v1032, 90
      %v1043 = vpop.permute.xlu0 %1042
      %1044 = vrot.lane.b32.xlu0 %v1033, 90
      %v1045 = vpop.permute.xlu0 %1044
      %vm1046 = vcmask 736256
      %v1047 = vsel %vm1046, %v1035, %v1037
      %v1048 = vsel %vm1046, %v1037, %v1039
      %v1049 = vsel %vm1046, %v1039, %v1041
      %v1050 = vsel %vm1046, %v1041, %v1043
      %v1051 = vsel %vm1046, %v1043, %v1045
      %1058 = vst [vmem:[#allocation2 + $0xc0] sm:$0xf] %v1047
      %1059 = vst [vmem:[#allocation2 + $0xc8] sm:$0xf] %v1048
      %1060 = vst [vmem:[#allocation2 + $0xd0] sm:$0xf] %v1049
      %1061 = vst [vmem:[#allocation2 + $0xd8] sm:$0xf] %v1050
      %1062 = vst [vmem:[#allocation2 + $0xe0] sm:$0xf] %v1051
      %1063 = vst.msk [vmem:[#allocation2 + $0xe8] sm:$0xf] %vm681, %v1045
      %v1064 = vld [vmem:[%s5] sm:$0xff]
      %v1065 = vld [vmem:[#allocation2] sm:$0xff]
      %v1066 = vld [vmem:[#allocation2 + $0x8] sm:$0xff]
      %v1067 = vld [vmem:[#allocation2 + $0x10] sm:$0xff]
      %v1068 = vld [vmem:[#allocation2 + $0x18] sm:$0xff]
      %v1069 = vld [vmem:[#allocation2 + $0x20] sm:$0xff]
      %v1070 = vld [vmem:[#allocation2 + $0x28] sm:$0xff]
      %v1071 = vld [vmem:[#allocation2 + $0x30] sm:$0xff]
      %v1072 = vld [vmem:[#allocation2 + $0x38] sm:$0xff]
      %v1073 = vld [vmem:[#allocation2 + $0x40] sm:$0xff]
      %v1074 = vld [vmem:[#allocation2 + $0x48] sm:$0xff]
      %v1075 = vld [vmem:[#allocation2 + $0x50] sm:$0xff]
      %v1076 = vld [vmem:[#allocation2 + $0x58] sm:$0xff]
      %v1077 = vld [vmem:[#allocation2 + $0x60] sm:$0xff]
      %v1078 = vld [vmem:[#allocation2 + $0x68] sm:$0xff]
      %v1079 = vld [vmem:[#allocation2 + $0x70] sm:$0xff]
      %v1080 = vld [vmem:[#allocation2 + $0x78] sm:$0xff]
      %v1081 = vld [vmem:[#allocation2 + $0x80] sm:$0xff]
      %v1082 = vld [vmem:[#allocation2 + $0x88] sm:$0xff]
      %v1083 = vld [vmem:[#allocation2 + $0x90] sm:$0xff]
      %v1084 = vld [vmem:[#allocation2 + $0x98] sm:$0xff]
      %v1085 = vld [vmem:[#allocation2 + $0xa0] sm:$0xff]
      %v1086 = vld [vmem:[#allocation2 + $0xa8] sm:$0xff]
      %v1087 = vld [vmem:[#allocation2 + $0xb0] sm:$0xff]
      %v1088 = vld [vmem:[#allocation2 + $0xb8] sm:$0xff]
      %v1089 = vld [vmem:[#allocation2 + $0xc0] sm:$0xf]
      %v1090 = vld [vmem:[#allocation2 + $0xc8] sm:$0xf]
      %v1091 = vld [vmem:[#allocation2 + $0xd0] sm:$0xf]
      %v1092 = vld [vmem:[#allocation2 + $0xd8] sm:$0xf]
      %v1093 = vld [vmem:[#allocation2 + $0xe0] sm:$0xf]
      %v1094 = vld [vmem:[#allocation2 + $0xe8] sm:$0xf]
      %v1095 = vld [vmem:[%s6] sm:$0xff]
      %1097 = vset.pattern.permute.xlu0 0
      %1098 = vperm.xlu0 %1097, %v1095
      %v1099 = vpop.permute.xlu0 %1098
      %vm1101 = vcmask 293888
      %v1103 = vsel %vm1101, %v1064, 0
      %vm1105 = vcmask 1043456
      %v1107 = vsel %vm1105, %v1089, 0
      %v1110 = vsel %vm1105, %v1090, 0
      %v1113 = vsel %vm1105, %v1091, 0
      %v1116 = vsel %vm1105, %v1092, 0
      %v1119 = vsel %vm1105, %v1093, 0
      %v1122 = vsel %vm1105, %v1094, 0
      %1124 = vmatpush.msra.mxu0 0.0
      %1125 = vmatpush.msra.mxu0 0.0
      %1126 = vmatpush.msra.mxu0 0.0
      %1127 = vmatpush.msra.mxu0 0.0
      %1128 = vmatpush.msra.mxu0 0.0
      %1129 = vmatpush.msra.mxu0 0.0
      %1130 = vmatpush.msra.mxu0 0.0
      %1131 = vmatpush.msra.mxu0 0.0
      %1132 = vmatpush.msra.mxu0 0.0
      %1133 = vmatpush.msra.mxu0 0.0
      %1134 = vmatpush.msra.mxu0 0.0
      %1135 = vmatpush.msra.mxu0 %v1107
      %1136 = vmatpush.msra.mxu0 %v1083
      %1137 = vmatpush.msra.mxu0 %v1077
      %1138 = vmatpush.msra.mxu0 %v1071
      %1139 = vmatpush.msra.mxu0 %v1065
      %1140 = vmatmul.f32.gmra.mxu0 %v1103
      %v1141 = vpop.f32.mrf.mxu0
      %v1142 = vadd.f32 %v1099, %v1141
      %1143 = vdwg.mxu0
      %1144 = vmatpush.msra.mxu0 0.0
      %1145 = vmatpush.msra.mxu0 0.0
      %1146 = vmatpush.msra.mxu0 0.0
      %1147 = vmatpush.msra.mxu0 0.0
      %1148 = vmatpush.msra.mxu0 0.0
      %1149 = vmatpush.msra.mxu0 0.0
      %1150 = vmatpush.msra.mxu0 0.0
      %1151 = vmatpush.msra.mxu0 0.0
      %1152 = vmatpush.msra.mxu0 0.0
      %1153 = vmatpush.msra.mxu0 0.0
      %1154 = vmatpush.msra.mxu0 0.0
      %1155 = vmatpush.msra.mxu0 %v1110
      %1156 = vmatpush.msra.mxu0 %v1084
      %1157 = vmatpush.msra.mxu0 %v1078
      %1158 = vmatpush.msra.mxu0 %v1072
      %1159 = vmatpush.msra.mxu0 %v1066
      %1160 = vmatmul.f32.gmra.mxu0 %v1103
      %v1161 = vpop.f32.mrf.mxu0
      %v1162 = vadd.f32 %v1099, %v1161
      %1163 = vdwg.mxu0
      %1164 = vmatpush.msra.mxu0 0.0
      %1165 = vmatpush.msra.mxu0 0.0
      %1166 = vmatpush.msra.mxu0 0.0
      %1167 = vmatpush.msra.mxu0 0.0
      %1168 = vmatpush.msra.mxu0 0.0
      %1169 = vmatpush.msra.mxu0 0.0
      %1170 = vmatpush.msra.mxu0 0.0
      %1171 = vmatpush.msra.mxu0 0.0
      %1172 = vmatpush.msra.mxu0 0.0
      %1173 = vmatpush.msra.mxu0 0.0
      %1174 = vmatpush.msra.mxu0 0.0
      %1175 = vmatpush.msra.mxu0 %v1113
      %1176 = vmatpush.msra.mxu0 %v1085
      %1177 = vmatpush.msra.mxu0 %v1079
      %1178 = vmatpush.msra.mxu0 %v1073
      %1179 = vmatpush.msra.mxu0 %v1067
      %1180 = vmatmul.f32.gmra.mxu0 %v1103
      %v1181 = vpop.f32.mrf.mxu0
      %v1182 = vadd.f32 %v1099, %v1181
      %1183 = vdwg.mxu0
      %1184 = vmatpush.msra.mxu0 0.0
      %1185 = vmatpush.msra.mxu0 0.0
      %1186 = vmatpush.msra.mxu0 0.0
      %1187 = vmatpush.msra.mxu0 0.0
      %1188 = vmatpush.msra.mxu0 0.0
      %1189 = vmatpush.msra.mxu0 0.0
      %1190 = vmatpush.msra.mxu0 0.0
      %1191 = vmatpush.msra.mxu0 0.0
      %1192 = vmatpush.msra.mxu0 0.0
      %1193 = vmatpush.msra.mxu0 0.0
      %1194 = vmatpush.msra.mxu0 0.0
      %1195 = vmatpush.msra.mxu0 %v1116
      %1196 = vmatpush.msra.mxu0 %v1086
      %1197 = vmatpush.msra.mxu0 %v1080
      %1198 = vmatpush.msra.mxu0 %v1074
      %1199 = vmatpush.msra.mxu0 %v1068
      %1200 = vmatmul.f32.gmra.mxu0 %v1103
      %v1201 = vpop.f32.mrf.mxu0
      %v1202 = vadd.f32 %v1099, %v1201
      %1203 = vdwg.mxu0
      %1204 = vmatpush.msra.mxu0 0.0
      %1205 = vmatpush.msra.mxu0 0.0
      %1206 = vmatpush.msra.mxu0 0.0
      %1207 = vmatpush.msra.mxu0 0.0
      %1208 = vmatpush.msra.mxu0 0.0
      %1209 = vmatpush.msra.mxu0 0.0
      %1210 = vmatpush.msra.mxu0 0.0
      %1211 = vmatpush.msra.mxu0 0.0
      %1212 = vmatpush.msra.mxu0 0.0
      %1213 = vmatpush.msra.mxu0 0.0
      %1214 = vmatpush.msra.mxu0 0.0
      %1215 = vmatpush.msra.mxu0 %v1119
      %1216 = vmatpush.msra.mxu0 %v1087
      %1217 = vmatpush.msra.mxu0 %v1081
      %1218 = vmatpush.msra.mxu0 %v1075
      %1219 = vmatpush.msra.mxu0 %v1069
      %1220 = vmatmul.f32.gmra.mxu0 %v1103
      %v1221 = vpop.f32.mrf.mxu0
      %v1222 = vadd.f32 %v1099, %v1221
      %1223 = vdwg.mxu0
      %1224 = vmatpush.msra.mxu0 0.0
      %1225 = vmatpush.msra.mxu0 0.0
      %1226 = vmatpush.msra.mxu0 0.0
      %1227 = vmatpush.msra.mxu0 0.0
      %1228 = vmatpush.msra.mxu0 0.0
      %1229 = vmatpush.msra.mxu0 0.0
      %1230 = vmatpush.msra.mxu0 0.0
      %1231 = vmatpush.msra.mxu0 0.0
      %1232 = vmatpush.msra.mxu0 0.0
      %1233 = vmatpush.msra.mxu0 0.0
      %1234 = vmatpush.msra.mxu0 0.0
      %1235 = vmatpush.msra.mxu0 %v1122
      %1236 = vmatpush.msra.mxu0 %v1088
      %1237 = vmatpush.msra.mxu0 %v1082
      %1238 = vmatpush.msra.mxu0 %v1076
      %1239 = vmatpush.msra.mxu0 %v1070
      %1240 = vmatmul.f32.gmra.mxu0 %v1103
      %v1241 = vpop.f32.mrf.mxu0
      %v1242 = vadd.f32 %v1099, %v1241
      %1243 = vdwg.mxu0
      %v1244 = vmax.f32 %v1142, 0.0
      %v1245 = vmax.f32 %v1162, 0.0
      %v1246 = vmax.f32 %v1182, 0.0
      %v1247 = vmax.f32 %v1202, 0.0
      %v1248 = vmax.f32 %v1222, 0.0
      %v1249 = vmax.f32 %v1242, 0.0
      %1250 = vst [vmem:[#allocation2] sm:$0xff] %v1244
      %1251 = vst [vmem:[#allocation2 + $0x8] sm:$0xff] %v1245
      %1252 = vst [vmem:[#allocation2 + $0x10] sm:$0xff] %v1246
      %1253 = vst [vmem:[#allocation2 + $0x18] sm:$0xff] %v1247
      %1254 = vst [vmem:[#allocation2 + $0x20] sm:$0xff] %v1248
      %vm1255 = vcmask 343040
      %1256 = vst.msk [vmem:[#allocation2 + $0x28] sm:$0xff] %vm1255, %v1249
      %v1257 = vld [vmem:[#allocation2] sm:$0xff]
      %v1258 = vld [vmem:[#allocation2 + $0x8] sm:$0xff]
      %v1259 = vld [vmem:[#allocation2 + $0x10] sm:$0xff]
      %v1260 = vld [vmem:[#allocation2 + $0x18] sm:$0xff]
      %v1261 = vld [vmem:[#allocation2 + $0x20] sm:$0xff]
      %v1262 = vld [vmem:[#allocation2 + $0x28] sm:$0xff]
      %1269 = vrot.lane.b32.xlu0 %v1257, 110
      %v1270 = vpop.permute.xlu0 %1269
      %1271 = vrot.lane.b32.xlu0 %v1258, 110
      %v1272 = vpop.permute.xlu0 %1271
      %1273 = vrot.lane.b32.xlu0 %v1259, 110
      %v1274 = vpop.permute.xlu0 %1273
      %1275 = vrot.lane.b32.xlu0 %v1260, 110
      %v1276 = vpop.permute.xlu0 %1275
      %1277 = vrot.lane.b32.xlu0 %v1261, 110
      %v1278 = vpop.permute.xlu0 %1277
      %1279 = vrot.lane.b32.xlu0 %v1262, 110
      %v1280 = vpop.permute.xlu0 %1279
      %v1281 = vsel %vm809, %v1270, %v1272
      %v1282 = vsel %vm809, %v1272, %v1274
      %v1283 = vsel %vm809, %v1274, %v1276
      %v1284 = vsel %vm809, %v1276, %v1278
      %v1285 = vsel %vm809, %v1278, %v1280
      %v1292 = vmax.f32 %v1257, %v1281
      %v1293 = vmax.f32 %v1258, %v1282
      %v1294 = vmax.f32 %v1259, %v1283
      %v1295 = vmax.f32 %v1260, %v1284
      %v1296 = vmax.f32 %v1261, %v1285
      %v1297 = vmax.f32 %v1262, %v1280
      %1298 = vst [vmem:[#allocation2] sm:$0xff] %v1292
      %1299 = vst [vmem:[#allocation2 + $0x8] sm:$0xff] %v1293
      %1300 = vst [vmem:[#allocation2 + $0x10] sm:$0xff] %v1294
      %1301 = vst [vmem:[#allocation2 + $0x18] sm:$0xff] %v1295
      %1302 = vst [vmem:[#allocation2 + $0x20] sm:$0xff] %v1296
      %vm1303 = vcmask 195584
      %1304 = vst.msk [vmem:[#allocation2 + $0x28] sm:$0xff] %vm1303, %v1297
      %v1305 = vld [vmem:[#allocation2] sm:$0xff]
      %v1306 = vld [vmem:[#allocation2 + $0x8] sm:$0xff]
      %v1307 = vld [vmem:[#allocation2 + $0x10] sm:$0xff]
      %v1308 = vld [vmem:[#allocation2 + $0x18] sm:$0xff]
      %v1309 = vld [vmem:[#allocation2 + $0x20] sm:$0xff]
      %v1310 = vld [vmem:[#allocation2 + $0x28] sm:$0xff]
      %1317 = vrot.lane.b32.xlu0 %v1305, 127
      %v1318 = vpop.permute.xlu0 %1317
      %1319 = vrot.lane.b32.xlu0 %v1306, 127
      %v1320 = vpop.permute.xlu0 %1319
      %1321 = vrot.lane.b32.xlu0 %v1307, 127
      %v1322 = vpop.permute.xlu0 %1321
      %1323 = vrot.lane.b32.xlu0 %v1308, 127
      %v1324 = vpop.permute.xlu0 %1323
      %1325 = vrot.lane.b32.xlu0 %v1309, 127
      %v1326 = vpop.permute.xlu0 %1325
      %1327 = vrot.lane.b32.xlu0 %v1310, 127
      %v1328 = vpop.permute.xlu0 %1327
      %v1329 = vsel %vm713, %v1318, %v1320
      %v1330 = vsel %vm713, %v1320, %v1322
      %v1331 = vsel %vm713, %v1322, %v1324
      %v1332 = vsel %vm713, %v1324, %v1326
      %v1333 = vsel %vm713, %v1326, %v1328
      %v1340 = vmax.f32 %v1305, %v1329
      %v1341 = vmax.f32 %v1306, %v1330
      %v1342 = vmax.f32 %v1307, %v1331
      %v1343 = vmax.f32 %v1308, %v1332
      %v1344 = vmax.f32 %v1309, %v1333
      %v1345 = vmax.f32 %v1310, %v1328
      %v1346 = vlaneseq
      %v1347 = vshrl.u32 %v1346, 7
      %v1348 = vadd.s32 %v1347, 8
      %v1349 = vadd.s32 %v1347, 16
      %v1350 = vadd.s32 %v1347, 24
      %v1351 = vadd.s32 %v1347, 32
      %v1352 = vadd.s32 %v1347, 40
      %v1353 = vadd.s32 %v1347, 48
      %v1354 = vadd.s32 %v1347, 56
      %v1355 = vadd.s32 %v1347, 64
      %v1356 = vadd.s32 %v1347, 72
      %v1357 = vadd.s32 %v1347, 80
      %v1358 = vadd.s32 %v1347, 88
      %v1359 = vadd.s32 %v1347, 96
      %v1360 = vadd.s32 %v1347, 104
      %v1361 = vadd.s32 %v1347, 112
      %v1362 = vadd.s32 %v1347, 120
      %v1363 = vadd.s32 %v1347, 128
      %v1364 = vadd.s32 %v1347, 136
      %v1365 = vadd.s32 %v1347, 144
      %v1366 = vadd.s32 %v1347, 152
      %v1367 = vadd.s32 %v1347, 160
      %v1368 = vadd.s32 %v1347, 168
      %v1369 = vadd.s32 %v1347, 176
      %v1370 = vadd.s32 %v1347, 184
      %v1371 = vadd.s32 %v1347, 192
      %v1372 = vadd.s32 %v1347, 200
      %v1373 = vadd.s32 %v1347, 208
      %v1374 = vadd.s32 %v1347, 216
      %v1375 = vadd.s32 %v1347, 224
      %v1376 = vadd.s32 %v1347, 232
      %v1377 = vadd.s32 %v1347, 240
      %v1378 = vadd.s32 %v1347, 248
      %v1379 = vadd.s32 %v1347, 256
      %v1380 = vadd.s32 %v1347, 264
      %v1381 = vadd.s32 %v1347, 272
      %v1382 = vadd.s32 %v1347, 280
      %v1383 = vadd.s32 %v1347, 288
      %v1384 = vadd.s32 %v1347, 296
      %v1385 = vadd.s32 %v1347, 304
      %v1386 = vadd.s32 %v1347, 312
      %v1387 = vadd.s32 %v1347, 320
      %v1388 = vadd.s32 %v1347, 328
      %v1389 = vadd.s32 %v1347, 336
      %v1390 = vadd.s32 %v1347, 344
      %v1391 = vadd.s32 %v1347, 352
      %v1392 = vadd.s32 %v1347, 360
      %v1393 = vadd.s32 %v1347, 368
      %v1394 = vadd.s32 %v1347, 376
      %v1395 = vadd.s32 %v1347, 384
      %v1396 = vadd.s32 %v1347, 392
      %v1397 = vadd.s32 %v1347, 400
      %v1398 = vadd.s32 %v1347, 408
      %v1399 = vadd.s32 %v1347, 416
      %v1400 = vadd.s32 %v1347, 424
      %v1401 = vadd.s32 %v1347, 432
      %v1402 = vadd.s32 %v1347, 440
      %v1403 = vadd.s32 %v1347, 448
      %v1404 = vadd.s32 %v1347, 456
      %v1405 = vadd.s32 %v1347, 464
      %v1406 = vadd.s32 %v1347, 472
      %v1407 = vadd.s32 %v1347, 480
      %v1408 = vadd.s32 %v1347, 488
      %v1409 = vadd.s32 %v1347, 496
      %v1410 = vadd.s32 %v1347, 504
      %v1411 = vadd.s32 %v1347, 512
      %v1412 = vadd.s32 %v1347, 520
      %v1413 = vadd.s32 %v1347, 528
      %v1414 = vadd.s32 %v1347, 536
      %v1415 = vadd.s32 %v1347, 544
      %v1416 = vadd.s32 %v1347, 552
      %v1417 = vadd.s32 %v1347, 560
      %v1418 = vadd.s32 %v1347, 568
      %v1419 = vadd.s32 %v1347, 576
      %v1420 = vadd.s32 %v1347, 584
      %v1421 = vadd.s32 %v1347, 592
      %v1422 = vadd.s32 %v1347, 600
      %v1423 = vadd.s32 %v1347, 608
      %v1424 = vadd.s32 %v1347, 616
      %v1425 = vadd.s32 %v1347, 624
      %v1426 = vadd.s32 %v1347, 632
      %v1427 = vadd.s32 %v1347, 640
      %v1428 = vadd.s32 %v1347, 648
      %v1429 = vadd.s32 %v1347, 656
      %v1430 = vld [vmem:[%s2] sm:$0x3]
      %v1431 = vperm.slane %v1430, 0
      %v1432 = vperm.slane %v1430, 1
      %vm1433 = vcmp.eq.s32.totalorder %v1347, %v1431
      %vm1434 = vcmp.eq.s32.totalorder %v1347, %v1432
      %vm1435 = vcmp.eq.s32.totalorder %v1348, %v1431
      %vm1436 = vcmp.eq.s32.totalorder %v1348, %v1432
      %vm1437 = vcmp.eq.s32.totalorder %v1349, %v1431
      %vm1438 = vcmp.eq.s32.totalorder %v1349, %v1432
      %vm1439 = vcmp.eq.s32.totalorder %v1350, %v1431
      %vm1440 = vcmp.eq.s32.totalorder %v1350, %v1432
      %vm1441 = vcmp.eq.s32.totalorder %v1351, %v1431
      %vm1442 = vcmp.eq.s32.totalorder %v1351, %v1432
      %vm1443 = vcmp.eq.s32.totalorder %v1352, %v1431
      %vm1444 = vcmp.eq.s32.totalorder %v1352, %v1432
      %vm1445 = vcmp.eq.s32.totalorder %v1353, %v1431
      %vm1446 = vcmp.eq.s32.totalorder %v1353, %v1432
      %vm1447 = vcmp.eq.s32.totalorder %v1354, %v1431
      %vm1448 = vcmp.eq.s32.totalorder %v1354, %v1432
      %vm1449 = vcmp.eq.s32.totalorder %v1355, %v1431
      %vm1450 = vcmp.eq.s32.totalorder %v1355, %v1432
      %vm1451 = vcmp.eq.s32.totalorder %v1356, %v1431
      %vm1452 = vcmp.eq.s32.totalorder %v1356, %v1432
      %vm1453 = vcmp.eq.s32.totalorder %v1357, %v1431
      %vm1454 = vcmp.eq.s32.totalorder %v1357, %v1432
      %vm1455 = vcmp.eq.s32.totalorder %v1358, %v1431
      %vm1456 = vcmp.eq.s32.totalorder %v1358, %v1432
      %vm1457 = vcmp.eq.s32.totalorder %v1359, %v1431
      %vm1458 = vcmp.eq.s32.totalorder %v1359, %v1432
      %vm1459 = vcmp.eq.s32.totalorder %v1360, %v1431
      %vm1460 = vcmp.eq.s32.totalorder %v1360, %v1432
      %vm1461 = vcmp.eq.s32.totalorder %v1361, %v1431
      %vm1462 = vcmp.eq.s32.totalorder %v1361, %v1432
      %vm1463 = vcmp.eq.s32.totalorder %v1362, %v1431
      %vm1464 = vcmp.eq.s32.totalorder %v1362, %v1432
      %vm1465 = vcmp.eq.s32.totalorder %v1363, %v1431
      %vm1466 = vcmp.eq.s32.totalorder %v1363, %v1432
      %vm1467 = vcmp.eq.s32.totalorder %v1364, %v1431
      %vm1468 = vcmp.eq.s32.totalorder %v1364, %v1432
      %vm1469 = vcmp.eq.s32.totalorder %v1365, %v1431
      %vm1470 = vcmp.eq.s32.totalorder %v1365, %v1432
      %vm1471 = vcmp.eq.s32.totalorder %v1366, %v1431
      %vm1472 = vcmp.eq.s32.totalorder %v1366, %v1432
      %vm1473 = vcmp.eq.s32.totalorder %v1367, %v1431
      %vm1474 = vcmp.eq.s32.totalorder %v1367, %v1432
      %vm1475 = vcmp.eq.s32.totalorder %v1368, %v1431
      %vm1476 = vcmp.eq.s32.totalorder %v1368, %v1432
      %vm1477 = vcmp.eq.s32.totalorder %v1369, %v1431
      %vm1478 = vcmp.eq.s32.totalorder %v1369, %v1432
      %vm1479 = vcmp.eq.s32.totalorder %v1370, %v1431
      %vm1480 = vcmp.eq.s32.totalorder %v1370, %v1432
      %vm1481 = vcmp.eq.s32.totalorder %v1371, %v1431
      %vm1482 = vcmp.eq.s32.totalorder %v1371, %v1432
      %vm1483 = vcmp.eq.s32.totalorder %v1372, %v1431
      %vm1484 = vcmp.eq.s32.totalorder %v1372, %v1432
      %vm1485 = vcmp.eq.s32.totalorder %v1373, %v1431
      %vm1486 = vcmp.eq.s32.totalorder %v1373, %v1432
      %vm1487 = vcmp.eq.s32.totalorder %v1374, %v1431
      %vm1488 = vcmp.eq.s32.totalorder %v1374, %v1432
      %vm1489 = vcmp.eq.s32.totalorder %v1375, %v1431
      %vm1490 = vcmp.eq.s32.totalorder %v1375, %v1432
      %vm1491 = vcmp.eq.s32.totalorder %v1376, %v1431
      %vm1492 = vcmp.eq.s32.totalorder %v1376, %v1432
      %vm1493 = vcmp.eq.s32.totalorder %v1377, %v1431
      %vm1494 = vcmp.eq.s32.totalorder %v1377, %v1432
      %vm1495 = vcmp.eq.s32.totalorder %v1378, %v1431
      %vm1496 = vcmp.eq.s32.totalorder %v1378, %v1432
      %vm1497 = vcmp.eq.s32.totalorder %v1379, %v1431
      %vm1498 = vcmp.eq.s32.totalorder %v1379, %v1432
      %vm1499 = vcmp.eq.s32.totalorder %v1380, %v1431
      %vm1500 = vcmp.eq.s32.totalorder %v1380, %v1432
      %vm1501 = vcmp.eq.s32.totalorder %v1381, %v1431
      %vm1502 = vcmp.eq.s32.totalorder %v1381, %v1432
      %vm1503 = vcmp.eq.s32.totalorder %v1382, %v1431
      %vm1504 = vcmp.eq.s32.totalorder %v1382, %v1432
      %vm1505 = vcmp.eq.s32.totalorder %v1383, %v1431
      %vm1506 = vcmp.eq.s32.totalorder %v1383, %v1432
      %vm1507 = vcmp.eq.s32.totalorder %v1384, %v1431
      %vm1508 = vcmp.eq.s32.totalorder %v1384, %v1432
      %vm1509 = vcmp.eq.s32.totalorder %v1385, %v1431
      %vm1510 = vcmp.eq.s32.totalorder %v1385, %v1432
      %vm1511 = vcmp.eq.s32.totalorder %v1386, %v1431
      %vm1512 = vcmp.eq.s32.totalorder %v1386, %v1432
      %vm1513 = vcmp.eq.s32.totalorder %v1387, %v1431
      %vm1514 = vcmp.eq.s32.totalorder %v1387, %v1432
      %vm1515 = vcmp.eq.s32.totalorder %v1388, %v1431
      %vm1516 = vcmp.eq.s32.totalorder %v1388, %v1432
      %vm1517 = vcmp.eq.s32.totalorder %v1389, %v1431
      %vm1518 = vcmp.eq.s32.totalorder %v1389, %v1432
      %vm1519 = vcmp.eq.s32.totalorder %v1390, %v1431
      %vm1520 = vcmp.eq.s32.totalorder %v1390, %v1432
      %vm1521 = vcmp.eq.s32.totalorder %v1391, %v1431
      %vm1522 = vcmp.eq.s32.totalorder %v1391, %v1432
      %vm1523 = vcmp.eq.s32.totalorder %v1392, %v1431
      %vm1524 = vcmp.eq.s32.totalorder %v1392, %v1432
      %vm1525 = vcmp.eq.s32.totalorder %v1393, %v1431
      %vm1526 = vcmp.eq.s32.totalorder %v1393, %v1432
      %vm1527 = vcmp.eq.s32.totalorder %v1394, %v1431
      %vm1528 = vcmp.eq.s32.totalorder %v1394, %v1432
      %vm1529 = vcmp.eq.s32.totalorder %v1395, %v1431
      %vm1530 = vcmp.eq.s32.totalorder %v1395, %v1432
      %vm1531 = vcmp.eq.s32.totalorder %v1396, %v1431
      %vm1532 = vcmp.eq.s32.totalorder %v1396, %v1432
      %vm1533 = vcmp.eq.s32.totalorder %v1397, %v1431
      %vm1534 = vcmp.eq.s32.totalorder %v1397, %v1432
      %vm1535 = vcmp.eq.s32.totalorder %v1398, %v1431
      %vm1536 = vcmp.eq.s32.totalorder %v1398, %v1432
      %vm1537 = vcmp.eq.s32.totalorder %v1399, %v1431
      %vm1538 = vcmp.eq.s32.totalorder %v1399, %v1432
      %vm1539 = vcmp.eq.s32.totalorder %v1400, %v1431
      %vm1540 = vcmp.eq.s32.totalorder %v1400, %v1432
      %vm1541 = vcmp.eq.s32.totalorder %v1401, %v1431
      %vm1542 = vcmp.eq.s32.totalorder %v1401, %v1432
      %vm1543 = vcmp.eq.s32.totalorder %v1402, %v1431
      %vm1544 = vcmp.eq.s32.totalorder %v1402, %v1432
      %vm1545 = vcmp.eq.s32.totalorder %v1403, %v1431
      %vm1546 = vcmp.eq.s32.totalorder %v1403, %v1432
      %vm1547 = vcmp.eq.s32.totalorder %v1404, %v1431
      %vm1548 = vcmp.eq.s32.totalorder %v1404, %v1432
      %vm1549 = vcmp.eq.s32.totalorder %v1405, %v1431
      %vm1550 = vcmp.eq.s32.totalorder %v1405, %v1432
      %vm1551 = vcmp.eq.s32.totalorder %v1406, %v1431
      %vm1552 = vcmp.eq.s32.totalorder %v1406, %v1432
      %vm1553 = vcmp.eq.s32.totalorder %v1407, %v1431
      %vm1554 = vcmp.eq.s32.totalorder %v1407, %v1432
      %vm1555 = vcmp.eq.s32.totalorder %v1408, %v1431
      %vm1556 = vcmp.eq.s32.totalorder %v1408, %v1432
      %vm1557 = vcmp.eq.s32.totalorder %v1409, %v1431
      %vm1558 = vcmp.eq.s32.totalorder %v1409, %v1432
      %vm1559 = vcmp.eq.s32.totalorder %v1410, %v1431
      %vm1560 = vcmp.eq.s32.totalorder %v1410, %v1432
      %vm1561 = vcmp.eq.s32.totalorder %v1411, %v1431
      %vm1562 = vcmp.eq.s32.totalorder %v1411, %v1432
      %vm1563 = vcmp.eq.s32.totalorder %v1412, %v1431
      %vm1564 = vcmp.eq.s32.totalorder %v1412, %v1432
      %vm1565 = vcmp.eq.s32.totalorder %v1413, %v1431
      %vm1566 = vcmp.eq.s32.totalorder %v1413, %v1432
      %vm1567 = vcmp.eq.s32.totalorder %v1414, %v1431
      %vm1568 = vcmp.eq.s32.totalorder %v1414, %v1432
      %vm1569 = vcmp.eq.s32.totalorder %v1415, %v1431
      %vm1570 = vcmp.eq.s32.totalorder %v1415, %v1432
      %vm1571 = vcmp.eq.s32.totalorder %v1416, %v1431
      %vm1572 = vcmp.eq.s32.totalorder %v1416, %v1432
      %vm1573 = vcmp.eq.s32.totalorder %v1417, %v1431
      %vm1574 = vcmp.eq.s32.totalorder %v1417, %v1432
      %vm1575 = vcmp.eq.s32.totalorder %v1418, %v1431
      %vm1576 = vcmp.eq.s32.totalorder %v1418, %v1432
      %vm1577 = vcmp.eq.s32.totalorder %v1419, %v1431
      %vm1578 = vcmp.eq.s32.totalorder %v1419, %v1432
      %vm1579 = vcmp.eq.s32.totalorder %v1420, %v1431
      %vm1580 = vcmp.eq.s32.totalorder %v1420, %v1432
      %vm1581 = vcmp.eq.s32.totalorder %v1421, %v1431
      %vm1582 = vcmp.eq.s32.totalorder %v1421, %v1432
      %vm1583 = vcmp.eq.s32.totalorder %v1422, %v1431
      %vm1584 = vcmp.eq.s32.totalorder %v1422, %v1432
      %vm1585 = vcmp.eq.s32.totalorder %v1423, %v1431
      %vm1586 = vcmp.eq.s32.totalorder %v1423, %v1432
      %vm1587 = vcmp.eq.s32.totalorder %v1424, %v1431
      %vm1588 = vcmp.eq.s32.totalorder %v1424, %v1432
      %vm1589 = vcmp.eq.s32.totalorder %v1425, %v1431
      %vm1590 = vcmp.eq.s32.totalorder %v1425, %v1432
      %vm1591 = vcmp.eq.s32.totalorder %v1426, %v1431
      %vm1592 = vcmp.eq.s32.totalorder %v1426, %v1432
      %vm1593 = vcmp.eq.s32.totalorder %v1427, %v1431
      %vm1594 = vcmp.eq.s32.totalorder %v1427, %v1432
      %vm1595 = vcmp.eq.s32.totalorder %v1428, %v1431
      %vm1596 = vcmp.eq.s32.totalorder %v1428, %v1432
      %vm1597 = vcmp.eq.s32.totalorder %v1429, %v1431
      %vm1598 = vcmp.eq.s32.totalorder %v1429, %v1432
      %v1599 = vsel %vm1433, 1.0, 0.0
      %v1600 = vsel %vm1434, 1.0, 0.0
      %v1601 = vsel %vm1435, 1.0, 0.0
      %v1602 = vsel %vm1436, 1.0, 0.0
      %v1603 = vsel %vm1437, 1.0, 0.0
      %v1604 = vsel %vm1438, 1.0, 0.0
      %v1605 = vsel %vm1439, 1.0, 0.0
      %v1606 = vsel %vm1440, 1.0, 0.0
      %v1607 = vsel %vm1441, 1.0, 0.0
      %v1608 = vsel %vm1442, 1.0, 0.0
      %v1609 = vsel %vm1443, 1.0, 0.0
      %v1610 = vsel %vm1444, 1.0, 0.0
      %v1611 = vsel %vm1445, 1.0, 0.0
      %v1612 = vsel %vm1446, 1.0, 0.0
      %v1613 = vsel %vm1447, 1.0, 0.0
      %v1614 = vsel %vm1448, 1.0, 0.0
      %v1615 = vsel %vm1449, 1.0, 0.0
      %v1616 = vsel %vm1450, 1.0, 0.0
      %v1617 = vsel %vm1451, 1.0, 0.0
      %v1618 = vsel %vm1452, 1.0, 0.0
      %v1619 = vsel %vm1453, 1.0, 0.0
      %v1620 = vsel %vm1454, 1.0, 0.0
      %v1621 = vsel %vm1455, 1.0, 0.0
      %v1622 = vsel %vm1456, 1.0, 0.0
      %v1623 = vsel %vm1457, 1.0, 0.0
      %v1624 = vsel %vm1458, 1.0, 0.0
      %v1625 = vsel %vm1459, 1.0, 0.0
      %v1626 = vsel %vm1460, 1.0, 0.0
      %v1627 = vsel %vm1461, 1.0, 0.0
      %v1628 = vsel %vm1462, 1.0, 0.0
      %v1629 = vsel %vm1463, 1.0, 0.0
      %v1630 = vsel %vm1464, 1.0, 0.0
      %v1631 = vsel %vm1465, 1.0, 0.0
      %v1632 = vsel %vm1466, 1.0, 0.0
      %v1633 = vsel %vm1467, 1.0, 0.0
      %v1634 = vsel %vm1468, 1.0, 0.0
      %v1635 = vsel %vm1469, 1.0, 0.0
      %v1636 = vsel %vm1470, 1.0, 0.0
      %v1637 = vsel %vm1471, 1.0, 0.0
      %v1638 = vsel %vm1472, 1.0, 0.0
      %v1639 = vsel %vm1473, 1.0, 0.0
      %v1640 = vsel %vm1474, 1.0, 0.0
      %v1641 = vsel %vm1475, 1.0, 0.0
      %v1642 = vsel %vm1476, 1.0, 0.0
      %v1643 = vsel %vm1477, 1.0, 0.0
      %v1644 = vsel %vm1478, 1.0, 0.0
      %v1645 = vsel %vm1479, 1.0, 0.0
      %v1646 = vsel %vm1480, 1.0, 0.0
      %v1647 = vsel %vm1481, 1.0, 0.0
      %v1648 = vsel %vm1482, 1.0, 0.0
      %v1649 = vsel %vm1483, 1.0, 0.0
      %v1650 = vsel %vm1484, 1.0, 0.0
      %v1651 = vsel %vm1485, 1.0, 0.0
      %v1652 = vsel %vm1486, 1.0, 0.0
      %v1653 = vsel %vm1487, 1.0, 0.0
      %v1654 = vsel %vm1488, 1.0, 0.0
      %v1655 = vsel %vm1489, 1.0, 0.0
      %v1656 = vsel %vm1490, 1.0, 0.0
      %v1657 = vsel %vm1491, 1.0, 0.0
      %v1658 = vsel %vm1492, 1.0, 0.0
      %v1659 = vsel %vm1493, 1.0, 0.0
      %v1660 = vsel %vm1494, 1.0, 0.0
      %v1661 = vsel %vm1495, 1.0, 0.0
      %v1662 = vsel %vm1496, 1.0, 0.0
      %v1663 = vsel %vm1497, 1.0, 0.0
      %v1664 = vsel %vm1498, 1.0, 0.0
      %v1665 = vsel %vm1499, 1.0, 0.0
      %v1666 = vsel %vm1500, 1.0, 0.0
      %v1667 = vsel %vm1501, 1.0, 0.0
      %v1668 = vsel %vm1502, 1.0, 0.0
      %v1669 = vsel %vm1503, 1.0, 0.0
      %v1670 = vsel %vm1504, 1.0, 0.0
      %v1671 = vsel %vm1505, 1.0, 0.0
      %v1672 = vsel %vm1506, 1.0, 0.0
      %v1673 = vsel %vm1507, 1.0, 0.0
      %v1674 = vsel %vm1508, 1.0, 0.0
      %v1675 = vsel %vm1509, 1.0, 0.0
      %v1676 = vsel %vm1510, 1.0, 0.0
      %v1677 = vsel %vm1511, 1.0, 0.0
      %v1678 = vsel %vm1512, 1.0, 0.0
      %v1679 = vsel %vm1513, 1.0, 0.0
      %v1680 = vsel %vm1514, 1.0, 0.0
      %v1681 = vsel %vm1515, 1.0, 0.0
      %v1682 = vsel %vm1516, 1.0, 0.0
      %v1683 = vsel %vm1517, 1.0, 0.0
      %v1684 = vsel %vm1518, 1.0, 0.0
      %v1685 = vsel %vm1519, 1.0, 0.0
      %v1686 = vsel %vm1520, 1.0, 0.0
      %v1687 = vsel %vm1521, 1.0, 0.0
      %v1688 = vsel %vm1522, 1.0, 0.0
      %v1689 = vsel %vm1523, 1.0, 0.0
      %v1690 = vsel %vm1524, 1.0, 0.0
      %v1691 = vsel %vm1525, 1.0, 0.0
      %v1692 = vsel %vm1526, 1.0, 0.0
      %v1693 = vsel %vm1527, 1.0, 0.0
      %v1694 = vsel %vm1528, 1.0, 0.0
      %v1695 = vsel %vm1529, 1.0, 0.0
      %v1696 = vsel %vm1530, 1.0, 0.0
      %v1697 = vsel %vm1531, 1.0, 0.0
      %v1698 = vsel %vm1532, 1.0, 0.0
      %v1699 = vsel %vm1533, 1.0, 0.0
      %v1700 = vsel %vm1534, 1.0, 0.0
      %v1701 = vsel %vm1535, 1.0, 0.0
      %v1702 = vsel %vm1536, 1.0, 0.0
      %v1703 = vsel %vm1537, 1.0, 0.0
      %v1704 = vsel %vm1538, 1.0, 0.0
      %v1705 = vsel %vm1539, 1.0, 0.0
      %v1706 = vsel %vm1540, 1.0, 0.0
      %v1707 = vsel %vm1541, 1.0, 0.0
      %v1708 = vsel %vm1542, 1.0, 0.0
      %v1709 = vsel %vm1543, 1.0, 0.0
      %v1710 = vsel %vm1544, 1.0, 0.0
      %v1711 = vsel %vm1545, 1.0, 0.0
      %v1712 = vsel %vm1546, 1.0, 0.0
      %v1713 = vsel %vm1547, 1.0, 0.0
      %v1714 = vsel %vm1548, 1.0, 0.0
      %v1715 = vsel %vm1549, 1.0, 0.0
      %v1716 = vsel %vm1550, 1.0, 0.0
      %v1717 = vsel %vm1551, 1.0, 0.0
      %v1718 = vsel %vm1552, 1.0, 0.0
      %v1719 = vsel %vm1553, 1.0, 0.0
      %v1720 = vsel %vm1554, 1.0, 0.0
      %v1721 = vsel %vm1555, 1.0, 0.0
      %v1722 = vsel %vm1556, 1.0, 0.0
      %v1723 = vsel %vm1557, 1.0, 0.0
      %v1724 = vsel %vm1558, 1.0, 0.0
      %v1725 = vsel %vm1559, 1.0, 0.0
      %v1726 = vsel %vm1560, 1.0, 0.0
      %v1727 = vsel %vm1561, 1.0, 0.0
      %v1728 = vsel %vm1562, 1.0, 0.0
      %v1729 = vsel %vm1563, 1.0, 0.0
      %v1730 = vsel %vm1564, 1.0, 0.0
      %v1731 = vsel %vm1565, 1.0, 0.0
      %v1732 = vsel %vm1566, 1.0, 0.0
      %v1733 = vsel %vm1567, 1.0, 0.0
      %v1734 = vsel %vm1568, 1.0, 0.0
      %v1735 = vsel %vm1569, 1.0, 0.0
      %v1736 = vsel %vm1570, 1.0, 0.0
      %v1737 = vsel %vm1571, 1.0, 0.0
      %v1738 = vsel %vm1572, 1.0, 0.0
      %v1739 = vsel %vm1573, 1.0, 0.0
      %v1740 = vsel %vm1574, 1.0, 0.0
      %v1741 = vsel %vm1575, 1.0, 0.0
      %v1742 = vsel %vm1576, 1.0, 0.0
      %v1743 = vsel %vm1577, 1.0, 0.0
      %v1744 = vsel %vm1578, 1.0, 0.0
      %v1745 = vsel %vm1579, 1.0, 0.0
      %v1746 = vsel %vm1580, 1.0, 0.0
      %v1747 = vsel %vm1581, 1.0, 0.0
      %v1748 = vsel %vm1582, 1.0, 0.0
      %v1749 = vsel %vm1583, 1.0, 0.0
      %v1750 = vsel %vm1584, 1.0, 0.0
      %v1751 = vsel %vm1585, 1.0, 0.0
      %v1752 = vsel %vm1586, 1.0, 0.0
      %v1753 = vsel %vm1587, 1.0, 0.0
      %v1754 = vsel %vm1588, 1.0, 0.0
      %v1755 = vsel %vm1589, 1.0, 0.0
      %v1756 = vsel %vm1590, 1.0, 0.0
      %v1757 = vsel %vm1591, 1.0, 0.0
      %v1758 = vsel %vm1592, 1.0, 0.0
      %v1759 = vsel %vm1593, 1.0, 0.0
      %v1760 = vsel %vm1594, 1.0, 0.0
      %v1761 = vsel %vm1595, 1.0, 0.0
      %v1762 = vsel %vm1596, 1.0, 0.0
      %v1763 = vsel %vm1597, 1.0, 0.0
      %v1764 = vsel %vm1598, 1.0, 0.0
      %vm1765 = vcmask 187392
      %v1767 = vsel %vm1765, %v1345, 0
      %vm1769 = vcmask 1046528
      %v1771 = vsel %vm1769, %v1763, 0
      %v1774 = vsel %vm1769, %v1764, 0
      %1776 = vmatpush.msra.mxu0 %v1629
      %1777 = vmatpush.msra.mxu0 %v1627
      %1778 = vmatpush.msra.mxu0 %v1625
      %1779 = vmatpush.msra.mxu0 %v1623
      %1780 = vmatpush.msra.mxu0 %v1621
      %1781 = vmatpush.msra.mxu0 %v1619
      %1782 = vmatpush.msra.mxu0 %v1617
      %1783 = vmatpush.msra.mxu0 %v1615
      %1784 = vmatpush.msra.mxu0 %v1613
      %1785 = vmatpush.msra.mxu0 %v1611
      %1786 = vmatpush.msra.mxu0 %v1609
      %1787 = vmatpush.msra.mxu0 %v1607
      %1788 = vmatpush.msra.mxu0 %v1605
      %1789 = vmatpush.msra.mxu0 %v1603
      %1790 = vmatpush.msra.mxu0 %v1601
      %1791 = vmatpush.msra.mxu0 %v1599
      %1792 = vmatmul.f32.gmra.mxu0 %v1340
      %v1793 = vpop.f32.mrf.mxu0
      %v1794 = vadd.f32 0.0, %v1793
      %1795 = vdwg.mxu0
      %1796 = vmatpush.msra.mxu0 %v1661
      %1797 = vmatpush.msra.mxu0 %v1659
      %1798 = vmatpush.msra.mxu0 %v1657
      %1799 = vmatpush.msra.mxu0 %v1655
      %1800 = vmatpush.msra.mxu0 %v1653
      %1801 = vmatpush.msra.mxu0 %v1651
      %1802 = vmatpush.msra.mxu0 %v1649
      %1803 = vmatpush.msra.mxu0 %v1647
      %1804 = vmatpush.msra.mxu0 %v1645
      %1805 = vmatpush.msra.mxu0 %v1643
      %1806 = vmatpush.msra.mxu0 %v1641
      %1807 = vmatpush.msra.mxu0 %v1639
      %1808 = vmatpush.msra.mxu0 %v1637
      %1809 = vmatpush.msra.mxu0 %v1635
      %1810 = vmatpush.msra.mxu0 %v1633
      %1811 = vmatpush.msra.mxu0 %v1631
      %1812 = vmatmul.f32.gmra.mxu0 %v1341
      %v1813 = vpop.f32.mrf.mxu0
      %v1814 = vadd.f32 %v1794, %v1813
      %1815 = vdwg.mxu0
      %1816 = vmatpush.msra.mxu0 %v1693
      %1817 = vmatpush.msra.mxu0 %v1691
      %1818 = vmatpush.msra.mxu0 %v1689
      %1819 = vmatpush.msra.mxu0 %v1687
      %1820 = vmatpush.msra.mxu0 %v1685
      %1821 = vmatpush.msra.mxu0 %v1683
      %1822 = vmatpush.msra.mxu0 %v1681
      %1823 = vmatpush.msra.mxu0 %v1679
      %1824 = vmatpush.msra.mxu0 %v1677
      %1825 = vmatpush.msra.mxu0 %v1675
      %1826 = vmatpush.msra.mxu0 %v1673
      %1827 = vmatpush.msra.mxu0 %v1671
      %1828 = vmatpush.msra.mxu0 %v1669
      %1829 = vmatpush.msra.mxu0 %v1667
      %1830 = vmatpush.msra.mxu0 %v1665
      %1831 = vmatpush.msra.mxu0 %v1663
      %1832 = vmatmul.f32.gmra.mxu0 %v1342
      %v1833 = vpop.f32.mrf.mxu0
      %v1834 = vadd.f32 %v1814, %v1833
      %1835 = vdwg.mxu0
      %1836 = vmatpush.msra.mxu0 %v1725
      %1837 = vmatpush.msra.mxu0 %v1723
      %1838 = vmatpush.msra.mxu0 %v1721
      %1839 = vmatpush.msra.mxu0 %v1719
      %1840 = vmatpush.msra.mxu0 %v1717
      %1841 = vmatpush.msra.mxu0 %v1715
      %1842 = vmatpush.msra.mxu0 %v1713
      %1843 = vmatpush.msra.mxu0 %v1711
      %1844 = vmatpush.msra.mxu0 %v1709
      %1845 = vmatpush.msra.mxu0 %v1707
      %1846 = vmatpush.msra.mxu0 %v1705
      %1847 = vmatpush.msra.mxu0 %v1703
      %1848 = vmatpush.msra.mxu0 %v1701
      %1849 = vmatpush.msra.mxu0 %v1699
      %1850 = vmatpush.msra.mxu0 %v1697
      %1851 = vmatpush.msra.mxu0 %v1695
      %1852 = vmatmul.f32.gmra.mxu0 %v1343
      %v1853 = vpop.f32.mrf.mxu0
      %v1854 = vadd.f32 %v1834, %v1853
      %1855 = vdwg.mxu0
      %1856 = vmatpush.msra.mxu0 %v1757
      %1857 = vmatpush.msra.mxu0 %v1755
      %1858 = vmatpush.msra.mxu0 %v1753
      %1859 = vmatpush.msra.mxu0 %v1751
      %1860 = vmatpush.msra.mxu0 %v1749
      %1861 = vmatpush.msra.mxu0 %v1747
      %1862 = vmatpush.msra.mxu0 %v1745
      %1863 = vmatpush.msra.mxu0 %v1743
      %1864 = vmatpush.msra.mxu0 %v1741
      %1865 = vmatpush.msra.mxu0 %v1739
      %1866 = vmatpush.msra.mxu0 %v1737
      %1867 = vmatpush.msra.mxu0 %v1735
      %1868 = vmatpush.msra.mxu0 %v1733
      %1869 = vmatpush.msra.mxu0 %v1731
      %1870 = vmatpush.msra.mxu0 %v1729
      %1871 = vmatpush.msra.mxu0 %v1727
      %1872 = vmatmul.f32.gmra.mxu0 %v1344
      %v1873 = vpop.f32.mrf.mxu0
      %v1874 = vadd.f32 %v1854, %v1873
      %1875 = vdwg.mxu0
      %1876 = vmatpush.msra.mxu0 0.0
      %1877 = vmatpush.msra.mxu0 0.0
      %1878 = vmatpush.msra.mxu0 0.0
      %1879 = vmatpush.msra.mxu0 0.0
      %1880 = vmatpush.msra.mxu0 0.0
      %1881 = vmatpush.msra.mxu0 0.0
      %1882 = vmatpush.msra.mxu0 0.0
      %1883 = vmatpush.msra.mxu0 0.0
      %1884 = vmatpush.msra.mxu0 0.0
      %1885 = vmatpush.msra.mxu0 0.0
      %1886 = vmatpush.msra.mxu0 0.0
      %1887 = vmatpush.msra.mxu0 0.0
      %1888 = vmatpush.msra.mxu0 0.0
      %1889 = vmatpush.msra.mxu0 %v1771
      %1890 = vmatpush.msra.mxu0 %v1761
      %1891 = vmatpush.msra.mxu0 %v1759
      %1892 = vmatmul.f32.gmra.mxu0 %v1767
      %v1893 = vpop.f32.mrf.mxu0
      %v1894 = vadd.f32 %v1874, %v1893
      %1895 = vdwg.mxu0
      %1896 = vmatpush.msra.mxu0 %v1630
      %1897 = vmatpush.msra.mxu0 %v1628
      %1898 = vmatpush.msra.mxu0 %v1626
      %1899 = vmatpush.msra.mxu0 %v1624
      %1900 = vmatpush.msra.mxu0 %v1622
      %1901 = vmatpush.msra.mxu0 %v1620
      %1902 = vmatpush.msra.mxu0 %v1618
      %1903 = vmatpush.msra.mxu0 %v1616
      %1904 = vmatpush.msra.mxu0 %v1614
      %1905 = vmatpush.msra.mxu0 %v1612
      %1906 = vmatpush.msra.mxu0 %v1610
      %1907 = vmatpush.msra.mxu0 %v1608
      %1908 = vmatpush.msra.mxu0 %v1606
      %1909 = vmatpush.msra.mxu0 %v1604
      %1910 = vmatpush.msra.mxu0 %v1602
      %1911 = vmatpush.msra.mxu0 %v1600
      %1912 = vmatmul.f32.gmra.mxu0 %v1340
      %v1913 = vpop.f32.mrf.mxu0
      %v1914 = vadd.f32 0.0, %v1913
      %1915 = vdwg.mxu0
      %1916 = vmatpush.msra.mxu0 %v1662
      %1917 = vmatpush.msra.mxu0 %v1660
      %1918 = vmatpush.msra.mxu0 %v1658
      %1919 = vmatpush.msra.mxu0 %v1656
      %1920 = vmatpush.msra.mxu0 %v1654
      %1921 = vmatpush.msra.mxu0 %v1652
      %1922 = vmatpush.msra.mxu0 %v1650
      %1923 = vmatpush.msra.mxu0 %v1648
      %1924 = vmatpush.msra.mxu0 %v1646
      %1925 = vmatpush.msra.mxu0 %v1644
      %1926 = vmatpush.msra.mxu0 %v1642
      %1927 = vmatpush.msra.mxu0 %v1640
      %1928 = vmatpush.msra.mxu0 %v1638
      %1929 = vmatpush.msra.mxu0 %v1636
      %1930 = vmatpush.msra.mxu0 %v1634
      %1931 = vmatpush.msra.mxu0 %v1632
      %1932 = vmatmul.f32.gmra.mxu0 %v1341
      %v1933 = vpop.f32.mrf.mxu0
      %v1934 = vadd.f32 %v1914, %v1933
      %1935 = vdwg.mxu0
      %1936 = vmatpush.msra.mxu0 %v1694
      %1937 = vmatpush.msra.mxu0 %v1692
      %1938 = vmatpush.msra.mxu0 %v1690
      %1939 = vmatpush.msra.mxu0 %v1688
      %1940 = vmatpush.msra.mxu0 %v1686
      %1941 = vmatpush.msra.mxu0 %v1684
      %1942 = vmatpush.msra.mxu0 %v1682
      %1943 = vmatpush.msra.mxu0 %v1680
      %1944 = vmatpush.msra.mxu0 %v1678
      %1945 = vmatpush.msra.mxu0 %v1676
      %1946 = vmatpush.msra.mxu0 %v1674
      %1947 = vmatpush.msra.mxu0 %v1672
      %1948 = vmatpush.msra.mxu0 %v1670
      %1949 = vmatpush.msra.mxu0 %v1668
      %1950 = vmatpush.msra.mxu0 %v1666
      %1951 = vmatpush.msra.mxu0 %v1664
      %1952 = vmatmul.f32.gmra.mxu0 %v1342
      %v1953 = vpop.f32.mrf.mxu0
      %v1954 = vadd.f32 %v1934, %v1953
      %1955 = vdwg.mxu0
      %1956 = vmatpush.msra.mxu0 %v1726
      %1957 = vmatpush.msra.mxu0 %v1724
      %1958 = vmatpush.msra.mxu0 %v1722
      %1959 = vmatpush.msra.mxu0 %v1720
      %1960 = vmatpush.msra.mxu0 %v1718
      %1961 = vmatpush.msra.mxu0 %v1716
      %1962 = vmatpush.msra.mxu0 %v1714
      %1963 = vmatpush.msra.mxu0 %v1712
      %1964 = vmatpush.msra.mxu0 %v1710
      %1965 = vmatpush.msra.mxu0 %v1708
      %1966 = vmatpush.msra.mxu0 %v1706
      %1967 = vmatpush.msra.mxu0 %v1704
      %1968 = vmatpush.msra.mxu0 %v1702
      %1969 = vmatpush.msra.mxu0 %v1700
      %1970 = vmatpush.msra.mxu0 %v1698
      %1971 = vmatpush.msra.mxu0 %v1696
      %1972 = vmatmul.f32.gmra.mxu0 %v1343
      %v1973 = vpop.f32.mrf.mxu0
      %v1974 = vadd.f32 %v1954, %v1973
      %1975 = vdwg.mxu0
      %1976 = vmatpush.msra.mxu0 %v1758
      %1977 = vmatpush.msra.mxu0 %v1756
      %1978 = vmatpush.msra.mxu0 %v1754
      %1979 = vmatpush.msra.mxu0 %v1752
      %1980 = vmatpush.msra.mxu0 %v1750
      %1981 = vmatpush.msra.mxu0 %v1748
      %1982 = vmatpush.msra.mxu0 %v1746
      %1983 = vmatpush.msra.mxu0 %v1744
      %1984 = vmatpush.msra.mxu0 %v1742
      %1985 = vmatpush.msra.mxu0 %v1740
      %1986 = vmatpush.msra.mxu0 %v1738
      %1987 = vmatpush.msra.mxu0 %v1736
      %1988 = vmatpush.msra.mxu0 %v1734
      %1989 = vmatpush.msra.mxu0 %v1732
      %1990 = vmatpush.msra.mxu0 %v1730
      %1991 = vmatpush.msra.mxu0 %v1728
      %1992 = vmatmul.f32.gmra.mxu0 %v1344
      %v1993 = vpop.f32.mrf.mxu0
      %v1994 = vadd.f32 %v1974, %v1993
      %1995 = vdwg.mxu0
      %1996 = vmatpush.msra.mxu0 0.0
      %1997 = vmatpush.msra.mxu0 0.0
      %1998 = vmatpush.msra.mxu0 0.0
      %1999 = vmatpush.msra.mxu0 0.0
      %2000 = vmatpush.msra.mxu0 0.0
      %2001 = vmatpush.msra.mxu0 0.0
      %2002 = vmatpush.msra.mxu0 0.0
      %2003 = vmatpush.msra.mxu0 0.0
      %2004 = vmatpush.msra.mxu0 0.0
      %2005 = vmatpush.msra.mxu0 0.0
      %2006 = vmatpush.msra.mxu0 0.0
      %2007 = vmatpush.msra.mxu0 0.0
      %2008 = vmatpush.msra.mxu0 0.0
      %2009 = vmatpush.msra.mxu0 %v1774
      %2010 = vmatpush.msra.mxu0 %v1762
      %2011 = vmatpush.msra.mxu0 %v1760
      %2012 = vmatmul.f32.gmra.mxu0 %v1767
      %v2013 = vpop.f32.mrf.mxu0
      %v2014 = vadd.f32 %v1994, %v2013
      %2015 = vdwg.mxu0
      %2016 = vst [vmem:[#allocation3] sm:$0xff] %v1894
      %vm2017 = vcmask 916480
      %2018 = vst.msk [vmem:[#allocation3 + $0x8] sm:$0xff] %vm2017, %v2014
      %v2019 = vld [vmem:[#allocation3] sm:$0xff]
      %v2020 = vld [vmem:[#allocation3 + $0x8] sm:$0xff]
      %2021 = vst [vmem:[#allocation4] sm:$0xff] %v2019
      %2022 = vst.msk [vmem:[#allocation4 + $0x8] sm:$0xff] %vm1046, %v2020
      %v2023 = vld [vmem:[#allocation3] sm:$0xff]
      %v2024 = vld [vmem:[#allocation3 + $0x8] sm:$0xff]
      %2027 = vrot.lane.b32.xlu0 %v2023, 127
      %v2028 = vpop.permute.xlu0 %2027
      %2029 = vrot.lane.b32.xlu0 %v2024, 127
      %v2030 = vpop.permute.xlu0 %2029
      %v2031 = vsel %vm713, %v2028, %v2030
      %2034 = vst [vmem:[#allocation4 + $0x10] sm:$0xff] %v2031
      %2035 = vst.msk [vmem:[#allocation4 + $0x18] sm:$0xff] %vm1046, %v2030
      %v2036 = vld [vmem:[#allocation3] sm:$0xff]
      %v2037 = vld [vmem:[#allocation3 + $0x8] sm:$0xff]
      %2040 = vrot.lane.b32.xlu0 %v2036, 126
      %v2041 = vpop.permute.xlu0 %2040
      %2042 = vrot.lane.b32.xlu0 %v2037, 126
      %v2043 = vpop.permute.xlu0 %2042
      %v2044 = vsel %vm761, %v2041, %v2043
      %2047 = vst [vmem:[#allocation4 + $0x20] sm:$0xff] %v2044
      %2048 = vst.msk [vmem:[#allocation4 + $0x28] sm:$0xff] %vm1046, %v2043
      %v2049 = vld [vmem:[#allocation3] sm:$0xff]
      %v2050 = vld [vmem:[#allocation3 + $0x8] sm:$0xff]
      %2053 = vrot.lane.b32.xlu0 %v2049, 118
      %v2054 = vpop.permute.xlu0 %2053
      %2055 = vrot.lane.b32.xlu0 %v2050, 118
      %v2056 = vpop.permute.xlu0 %2055
      %vm2057 = vcmask 965632
      %v2058 = vsel %vm2057, %v2054, %v2056
      %2061 = vst [vmem:[#allocation4 + $0x30] sm:$0xff] %v2058
      %2062 = vst.msk [vmem:[#allocation4 + $0x38] sm:$0xff] %vm1046, %v2056
      %v2063 = vld [vmem:[#allocation3] sm:$0xff]
      %v2064 = vld [vmem:[#allocation3 + $0x8] sm:$0xff]
      %2067 = vrot.lane.b32.xlu0 %v2063, 117
      %v2068 = vpop.permute.xlu0 %2067
      %2069 = vrot.lane.b32.xlu0 %v2064, 117
      %v2070 = vpop.permute.xlu0 %2069
      %vm2071 = vcmask 957440
      %v2072 = vsel %vm2071, %v2068, %v2070
      %2075 = vst [vmem:[#allocation4 + $0x40] sm:$0xff] %v2072
      %2076 = vst.msk [vmem:[#allocation4 + $0x48] sm:$0xff] %vm1046, %v2070
      %v2077 = vld [vmem:[#allocation3] sm:$0xff]
      %v2078 = vld [vmem:[#allocation3 + $0x8] sm:$0xff]
      %2081 = vrot.lane.b32.xlu0 %v2077, 116
      %v2082 = vpop.permute.xlu0 %2081
      %2083 = vrot.lane.b32.xlu0 %v2078, 116
      %v2084 = vpop.permute.xlu0 %2083
      %vm2085 = vcmask 949248
      %v2086 = vsel %vm2085, %v2082, %v2084
      %2089 = vst [vmem:[#allocation4 + $0x50] sm:$0xff] %v2086
      %2090 = vst.msk [vmem:[#allocation4 + $0x58] sm:$0xff] %vm1046, %v2084
      %v2091 = vld [vmem:[#allocation3] sm:$0xff]
      %v2092 = vld [vmem:[#allocation3 + $0x8] sm:$0xff]
      %2095 = vrot.lane.b32.xlu0 %v2091, 108
      %v2096 = vpop.permute.xlu0 %2095
      %2097 = vrot.lane.b32.xlu0 %v2092, 108
      %v2098 = vpop.permute.xlu0 %2097
      %v2099 = vsel %vm904, %v2096, %v2098
      %2102 = vst [vmem:[#allocation4 + $0x60] sm:$0xff] %v2099
      %2103 = vst.msk [vmem:[#allocation4 + $0x68] sm:$0xff] %vm1046, %v2098
      %v2104 = vld [vmem:[#allocation3] sm:$0xff]
      %v2105 = vld [vmem:[#allocation3 + $0x8] sm:$0xff]
      %2108 = vrot.lane.b32.xlu0 %v2104, 107
      %v2109 = vpop.permute.xlu0 %2108
      %2110 = vrot.lane.b32.xlu0 %v2105, 107
      %v2111 = vpop.permute.xlu0 %2110
      %vm2112 = vcmask 875520
      %v2113 = vsel %vm2112, %v2109, %v2111
      %2116 = vst [vmem:[#allocation4 + $0x70] sm:$0xff] %v2113
      %2117 = vst.msk [vmem:[#allocation4 + $0x78] sm:$0xff] %vm1046, %v2111
      %v2118 = vld [vmem:[#allocation3] sm:$0xff]
      %v2119 = vld [vmem:[#allocation3 + $0x8] sm:$0xff]
      %2122 = vrot.lane.b32.xlu0 %v2118, 106
      %v2123 = vpop.permute.xlu0 %2122
      %2124 = vrot.lane.b32.xlu0 %v2119, 106
      %v2125 = vpop.permute.xlu0 %2124
      %vm2126 = vcmask 867328
      %v2127 = vsel %vm2126, %v2123, %v2125
      %2130 = vst [vmem:[#allocation4 + $0x80] sm:$0xff] %v2127
      %2131 = vst.msk [vmem:[#allocation4 + $0x88] sm:$0xff] %vm1046, %v2125
      %v2132 = vld [vmem:[%s7] sm:$0xff]
      %v2133 = vld [vmem:[%s7 + $0x8] sm:$0xff]
      %v2134 = vld [vmem:[#allocation4] sm:$0xff]
      %v2135 = vld [vmem:[#allocation4 + $0x8] sm:$0xff]
      %v2136 = vld [vmem:[#allocation4 + $0x10] sm:$0xff]
      %v2137 = vld [vmem:[#allocation4 + $0x18] sm:$0xff]
      %v2138 = vld [vmem:[#allocation4 + $0x20] sm:$0xff]
      %v2139 = vld [vmem:[#allocation4 + $0x28] sm:$0xff]
      %v2140 = vld [vmem:[#allocation4 + $0x30] sm:$0xff]
      %v2141 = vld [vmem:[#allocation4 + $0x38] sm:$0xff]
      %v2142 = vld [vmem:[#allocation4 + $0x40] sm:$0xff]
      %v2143 = vld [vmem:[#allocation4 + $0x48] sm:$0xff]
      %v2144 = vld [vmem:[#allocation4 + $0x50] sm:$0xff]
      %v2145 = vld [vmem:[#allocation4 + $0x58] sm:$0xff]
      %v2146 = vld [vmem:[#allocation4 + $0x60] sm:$0xff]
      %v2147 = vld [vmem:[#allocation4 + $0x68] sm:$0xff]
      %v2148 = vld [vmem:[#allocation4 + $0x70] sm:$0xff]
      %v2149 = vld [vmem:[#allocation4 + $0x78] sm:$0xff]
      %v2150 = vld [vmem:[#allocation4 + $0x80] sm:$0xff]
      %v2151 = vld [vmem:[#allocation4 + $0x88] sm:$0xff]
      %v2152 = vld [vmem:[%s8] sm:$0xff]
      %v2153 = vld [vmem:[%s8 + $0x8] sm:$0xff]
      %2155 = vset.pattern.permute.xlu0 0
      %2156 = vperm.xlu0 %2155, %v2152
      %v2157 = vpop.permute.xlu0 %2156
      %2160 = vset.pattern.permute.xlu0 0
      %2161 = vperm.xlu0 %2160, %v2153
      %v2162 = vpop.permute.xlu0 %2161
      %vm2164 = vcmask 588800
      %v2166 = vsel %vm2164, %v2132, 0
      %v2169 = vsel %vm2164, %v2133, 0
      %2171 = vmatpush.msra.mxu0 0.0
      %2172 = vmatpush.msra.mxu0 0.0
      %2173 = vmatpush.msra.mxu0 0.0
      %2174 = vmatpush.msra.mxu0 0.0
      %2175 = vmatpush.msra.mxu0 0.0
      %2176 = vmatpush.msra.mxu0 0.0
      %2177 = vmatpush.msra.mxu0 0.0
      %2178 = vmatpush.msra.mxu0 %v2150
      %2179 = vmatpush.msra.mxu0 %v2148
      %2180 = vmatpush.msra.mxu0 %v2146
      %2181 = vmatpush.msra.mxu0 %v2144
      %2182 = vmatpush.msra.mxu0 %v2142
      %2183 = vmatpush.msra.mxu0 %v2140
      %2184 = vmatpush.msra.mxu0 %v2138
      %2185 = vmatpush.msra.mxu0 %v2136
      %2186 = vmatpush.msra.mxu0 %v2134
      %2187 = vmatmul.f32.gmra.mxu0 %v2166
      %v2188 = vpop.f32.mrf.mxu0
      %v2189 = vadd.f32 %v2157, %v2188
      %2190 = vmatmul.f32.gmra.mxu0 %v2169
      %v2191 = vpop.f32.mrf.mxu0
      %v2192 = vadd.f32 %v2162, %v2191
      %2193 = vdwg.mxu0
      %2194 = vmatpush.msra.mxu0 0.0
      %2195 = vmatpush.msra.mxu0 0.0
      %2196 = vmatpush.msra.mxu0 0.0
      %2197 = vmatpush.msra.mxu0 0.0
      %2198 = vmatpush.msra.mxu0 0.0
      %2199 = vmatpush.msra.mxu0 0.0
      %2200 = vmatpush.msra.mxu0 0.0
      %2201 = vmatpush.msra.mxu0 %v2151
      %2202 = vmatpush.msra.mxu0 %v2149
      %2203 = vmatpush.msra.mxu0 %v2147
      %2204 = vmatpush.msra.mxu0 %v2145
      %2205 = vmatpush.msra.mxu0 %v2143
      %2206 = vmatpush.msra.mxu0 %v2141
      %2207 = vmatpush.msra.mxu0 %v2139
      %2208 = vmatpush.msra.mxu0 %v2137
      %2209 = vmatpush.msra.mxu0 %v2135
      %2210 = vmatmul.f32.gmra.mxu0 %v2166
      %v2211 = vpop.f32.mrf.mxu0
      %v2212 = vadd.f32 %v2157, %v2211
      %2213 = vmatmul.f32.gmra.mxu0 %v2169
      %v2214 = vpop.f32.mrf.mxu0
      %v2215 = vadd.f32 %v2162, %v2214
      %2216 = vdwg.mxu0
      %v2217 = vmax.f32 %v2189, 0.0
      %v2218 = vmax.f32 %v2212, 0.0
      %v2219 = vmax.f32 %v2192, 0.0
      %v2220 = vmax.f32 %v2215, 0.0
      %2221 = vst [vmem:[#allocation4] sm:$0xff] %v2217
      %2222 = vst.msk [vmem:[#allocation4 + $0x8] sm:$0xff] %vm1046, %v2218
      %2223 = vst [vmem:[#allocation4 + $0x10] sm:$0xff] %v2219
      %2224 = vst.msk [vmem:[#allocation4 + $0x18] sm:$0xff] %vm1046, %v2220
      %v2225 = vld [vmem:[#allocation4] sm:$0xff]
      %v2226 = vld [vmem:[#allocation4 + $0x8] sm:$0xff]
      %v2227 = vld [vmem:[#allocation4 + $0x10] sm:$0xff]
      %v2228 = vld [vmem:[#allocation4 + $0x18] sm:$0xff]
      %2233 = vrot.lane.b32.xlu0 %v2225, 118
      %v2234 = vpop.permute.xlu0 %2233
      %2235 = vrot.lane.b32.xlu0 %v2226, 118
      %v2236 = vpop.permute.xlu0 %2235
      %2237 = vrot.lane.b32.xlu0 %v2227, 118
      %v2238 = vpop.permute.xlu0 %2237
      %2239 = vrot.lane.b32.xlu0 %v2228, 118
      %v2240 = vpop.permute.xlu0 %2239
      %v2241 = vsel %vm2057, %v2234, %v2236
      %v2242 = vsel %vm2057, %v2238, %v2240
      %v2247 = vmax.f32 %v2225, %v2241
      %v2248 = vmax.f32 %v2226, %v2236
      %v2249 = vmax.f32 %v2227, %v2242
      %v2250 = vmax.f32 %v2228, %v2240
      %2251 = vst [vmem:[#allocation4] sm:$0xff] %v2247
      %vm2252 = vcmask 654336
      %2253 = vst.msk [vmem:[#allocation4 + $0x8] sm:$0xff] %vm2252, %v2248
      %2254 = vst [vmem:[#allocation4 + $0x10] sm:$0xff] %v2249
      %2255 = vst.msk [vmem:[#allocation4 + $0x18] sm:$0xff] %vm2252, %v2250
      %v2256 = vld [vmem:[#allocation4] sm:$0xff]
      %v2257 = vld [vmem:[#allocation4 + $0x8] sm:$0xff]
      %v2258 = vld [vmem:[#allocation4 + $0x10] sm:$0xff]
      %v2259 = vld [vmem:[#allocation4 + $0x18] sm:$0xff]
      %2264 = vrot.lane.b32.xlu0 %v2256, 127
      %v2265 = vpop.permute.xlu0 %2264
      %2266 = vrot.lane.b32.xlu0 %v2257, 127
      %v2267 = vpop.permute.xlu0 %2266
      %2268 = vrot.lane.b32.xlu0 %v2258, 127
      %v2269 = vpop.permute.xlu0 %2268
      %2270 = vrot.lane.b32.xlu0 %v2259, 127
      %v2271 = vpop.permute.xlu0 %2270
      %v2272 = vsel %vm713, %v2265, %v2267
      %v2273 = vsel %vm713, %v2269, %v2271
      %v2278 = vmax.f32 %v2256, %v2272
      %v2279 = vmax.f32 %v2257, %v2267
      %v2280 = vmax.f32 %v2258, %v2273
      %v2281 = vmax.f32 %v2259, %v2271
      %v2282 = vld [vmem:[%s3] sm:$0x1]
      %v2283 = vperm.slane %v2282, 0
      %vm2284 = vcmp.eq.s32.totalorder %v1347, %v2283
      %vm2285 = vcmp.eq.s32.totalorder %v1348, %v2283
      %vm2286 = vcmp.eq.s32.totalorder %v1349, %v2283
      %vm2287 = vcmp.eq.s32.totalorder %v1350, %v2283
      %vm2288 = vcmp.eq.s32.totalorder %v1351, %v2283
      %vm2289 = vcmp.eq.s32.totalorder %v1352, %v2283
      %vm2290 = vcmp.eq.s32.totalorder %v1353, %v2283
      %vm2291 = vcmp.eq.s32.totalorder %v1354, %v2283
      %vm2292 = vcmp.eq.s32.totalorder %v1355, %v2283
      %vm2293 = vcmp.eq.s32.totalorder %v1356, %v2283
      %vm2294 = vcmp.eq.s32.totalorder %v1357, %v2283
      %vm2295 = vcmp.eq.s32.totalorder %v1358, %v2283
      %vm2296 = vcmp.eq.s32.totalorder %v1359, %v2283
      %vm2297 = vcmp.eq.s32.totalorder %v1360, %v2283
      %vm2298 = vcmp.eq.s32.totalorder %v1361, %v2283
      %vm2299 = vcmp.eq.s32.totalorder %v1362, %v2283
      %vm2300 = vcmp.eq.s32.totalorder %v1363, %v2283
      %vm2301 = vcmp.eq.s32.totalorder %v1364, %v2283
      %vm2302 = vcmp.eq.s32.totalorder %v1365, %v2283
      %vm2303 = vcmp.eq.s32.totalorder %v1366, %v2283
      %vm2304 = vcmp.eq.s32.totalorder %v1367, %v2283
      %vm2305 = vcmp.eq.s32.totalorder %v1368, %v2283
      %vm2306 = vcmp.eq.s32.totalorder %v1369, %v2283
      %vm2307 = vcmp.eq.s32.totalorder %v1370, %v2283
      %vm2308 = vcmp.eq.s32.totalorder %v1371, %v2283
      %vm2309 = vcmp.eq.s32.totalorder %v1372, %v2283
      %v2310 = vsel %vm2284, 1.0, 0.0
      %v2311 = vsel %vm2285, 1.0, 0.0
      %v2312 = vsel %vm2286, 1.0, 0.0
      %v2313 = vsel %vm2287, 1.0, 0.0
      %v2314 = vsel %vm2288, 1.0, 0.0
      %v2315 = vsel %vm2289, 1.0, 0.0
      %v2316 = vsel %vm2290, 1.0, 0.0
      %v2317 = vsel %vm2291, 1.0, 0.0
      %v2318 = vsel %vm2292, 1.0, 0.0
      %v2319 = vsel %vm2293, 1.0, 0.0
      %v2320 = vsel %vm2294, 1.0, 0.0
      %v2321 = vsel %vm2295, 1.0, 0.0
      %v2322 = vsel %vm2296, 1.0, 0.0
      %v2323 = vsel %vm2297, 1.0, 0.0
      %v2324 = vsel %vm2298, 1.0, 0.0
      %v2325 = vsel %vm2299, 1.0, 0.0
      %v2326 = vsel %vm2300, 1.0, 0.0
      %v2327 = vsel %vm2301, 1.0, 0.0
      %v2328 = vsel %vm2302, 1.0, 0.0
      %v2329 = vsel %vm2303, 1.0, 0.0
      %v2330 = vsel %vm2304, 1.0, 0.0
      %v2331 = vsel %vm2305, 1.0, 0.0
      %v2332 = vsel %vm2306, 1.0, 0.0
      %v2333 = vsel %vm2307, 1.0, 0.0
      %v2334 = vsel %vm2308, 1.0, 0.0
      %v2335 = vsel %vm2309, 1.0, 0.0
      %vm2336 = vcmask 646144
      %v2338 = vsel %vm2336, %v2279, 0
      %v2341 = vsel %vm2336, %v2281, 0
      %v2344 = vsel %vm1769, %v2335, 0
      %2346 = vmatpush.msra.mxu0 %v2325
      %2347 = vmatpush.msra.mxu0 %v2324
      %2348 = vmatpush.msra.mxu0 %v2323
      %2349 = vmatpush.msra.mxu0 %v2322
      %2350 = vmatpush.msra.mxu0 %v2321
      %2351 = vmatpush.msra.mxu0 %v2320
      %2352 = vmatpush.msra.mxu0 %v2319
      %2353 = vmatpush.msra.mxu0 %v2318
      %2354 = vmatpush.msra.mxu0 %v2317
      %2355 = vmatpush.msra.mxu0 %v2316
      %2356 = vmatpush.msra.mxu0 %v2315
      %2357 = vmatpush.msra.mxu0 %v2314
      %2358 = vmatpush.msra.mxu0 %v2313
      %2359 = vmatpush.msra.mxu0 %v2312
      %2360 = vmatpush.msra.mxu0 %v2311
      %2361 = vmatpush.msra.mxu0 %v2310
      %2362 = vmatmul.f32.gmra.mxu0 %v2278
      %v2363 = vpop.f32.mrf.mxu0
      %v2364 = vadd.f32 0.0, %v2363
      %2365 = vmatmul.f32.gmra.mxu0 %v2280
      %v2366 = vpop.f32.mrf.mxu0
      %v2367 = vadd.f32 0.0, %v2366
      %2368 = vdwg.mxu0
      %2369 = vmatpush.msra.mxu0 0.0
      %2370 = vmatpush.msra.mxu0 0.0
      %2371 = vmatpush.msra.mxu0 0.0
      %2372 = vmatpush.msra.mxu0 0.0
      %2373 = vmatpush.msra.mxu0 0.0
      %2374 = vmatpush.msra.mxu0 0.0
      %2375 = vmatpush.msra.mxu0 %v2344
      %2376 = vmatpush.msra.mxu0 %v2334
      %2377 = vmatpush.msra.mxu0 %v2333
      %2378 = vmatpush.msra.mxu0 %v2332
      %2379 = vmatpush.msra.mxu0 %v2331
      %2380 = vmatpush.msra.mxu0 %v2330
      %2381 = vmatpush.msra.mxu0 %v2329
      %2382 = vmatpush.msra.mxu0 %v2328
      %2383 = vmatpush.msra.mxu0 %v2327
      %2384 = vmatpush.msra.mxu0 %v2326
      %2385 = vmatmul.f32.gmra.mxu0 %v2338
      %v2386 = vpop.f32.mrf.mxu0
      %v2387 = vadd.f32 %v2364, %v2386
      %2388 = vmatmul.f32.gmra.mxu0 %v2341
      %v2389 = vpop.f32.mrf.mxu0
      %v2390 = vadd.f32 %v2367, %v2389
      %2391 = vdwg.mxu0
      %vm2392 = vcmask 785408
      %2393 = vst.msk [vmem:[#allocation5] sm:$0xff] %vm2392, %v2387
      %2394 = vst.msk [vmem:[#allocation5 + $0x8] sm:$0xff] %vm2392, %v2390
      %v2395 = vld [vmem:[#allocation5] sm:$0xff]
      %v2396 = vld [vmem:[#allocation5 + $0x8] sm:$0xff]
      %vm2397 = vcmask 670720
      %2398 = vst.msk [vmem:[#allocation6] sm:$0xff] %vm2397, %v2395
      %2399 = vst.msk [vmem:[#allocation6 + $0x8] sm:$0xff] %vm2397, %v2396
      %v2400 = vld [vmem:[#allocation5] sm:$0xff]
      %v2401 = vld [vmem:[#allocation5 + $0x8] sm:$0xff]
      %2404 = vrot.lane.b32.xlu0 %v2400, 127
      %v2405 = vpop.permute.xlu0 %2404
      %2406 = vrot.lane.b32.xlu0 %v2401, 127
      %v2407 = vpop.permute.xlu0 %2406
      %2410 = vst.msk [vmem:[#allocation6 + $0x10] sm:$0xff] %vm2397, %v2405
      %2411 = vst.msk [vmem:[#allocation6 + $0x18] sm:$0xff] %vm2397, %v2407
      %v2412 = vld [vmem:[#allocation5] sm:$0xff]
      %v2413 = vld [vmem:[#allocation5 + $0x8] sm:$0xff]
      %2416 = vrot.lane.b32.xlu0 %v2412, 126
      %v2417 = vpop.permute.xlu0 %2416
      %2418 = vrot.lane.b32.xlu0 %v2413, 126
      %v2419 = vpop.permute.xlu0 %2418
      %2422 = vst.msk [vmem:[#allocation6 + $0x20] sm:$0xff] %vm2397, %v2417
      %2423 = vst.msk [vmem:[#allocation6 + $0x28] sm:$0xff] %vm2397, %v2419
      %v2424 = vld [vmem:[#allocation5] sm:$0xff]
      %v2425 = vld [vmem:[#allocation5 + $0x8] sm:$0xff]
      %2428 = vrot.lane.b32.xlu0 %v2424, 122
      %v2429 = vpop.permute.xlu0 %2428
      %2430 = vrot.lane.b32.xlu0 %v2425, 122
      %v2431 = vpop.permute.xlu0 %2430
      %2434 = vst.msk [vmem:[#allocation6 + $0x30] sm:$0xff] %vm2397, %v2429
      %2435 = vst.msk [vmem:[#allocation6 + $0x38] sm:$0xff] %vm2397, %v2431
      %v2436 = vld [vmem:[#allocation5] sm:$0xff]
      %v2437 = vld [vmem:[#allocation5 + $0x8] sm:$0xff]
      %2440 = vrot.lane.b32.xlu0 %v2436, 121
      %v2441 = vpop.permute.xlu0 %2440
      %2442 = vrot.lane.b32.xlu0 %v2437, 121
      %v2443 = vpop.permute.xlu0 %2442
      %2446 = vst.msk [vmem:[#allocation6 + $0x40] sm:$0xff] %vm2397, %v2441
      %2447 = vst.msk [vmem:[#allocation6 + $0x48] sm:$0xff] %vm2397, %v2443
      %v2448 = vld [vmem:[#allocation5] sm:$0xff]
      %v2449 = vld [vmem:[#allocation5 + $0x8] sm:$0xff]
      %2452 = vrot.lane.b32.xlu0 %v2448, 120
      %v2453 = vpop.permute.xlu0 %2452
      %2454 = vrot.lane.b32.xlu0 %v2449, 120
      %v2455 = vpop.permute.xlu0 %2454
      %2458 = vst.msk [vmem:[#allocation6 + $0x50] sm:$0xff] %vm2397, %v2453
      %2459 = vst.msk [vmem:[#allocation6 + $0x58] sm:$0xff] %vm2397, %v2455
      %v2460 = vld [vmem:[#allocation5] sm:$0xff]
      %v2461 = vld [vmem:[#allocation5 + $0x8] sm:$0xff]
      %2464 = vrot.lane.b32.xlu0 %v2460, 116
      %v2465 = vpop.permute.xlu0 %2464
      %2466 = vrot.lane.b32.xlu0 %v2461, 116
      %v2467 = vpop.permute.xlu0 %2466
      %2470 = vst.msk [vmem:[#allocation6 + $0x60] sm:$0xff] %vm2397, %v2465
      %2471 = vst.msk [vmem:[#allocation6 + $0x68] sm:$0xff] %vm2397, %v2467
      %v2472 = vld [vmem:[#allocation5] sm:$0xff]
      %v2473 = vld [vmem:[#allocation5 + $0x8] sm:$0xff]
      %2476 = vrot.lane.b32.xlu0 %v2472, 115
      %v2477 = vpop.permute.xlu0 %2476
      %2478 = vrot.lane.b32.xlu0 %v2473, 115
      %v2479 = vpop.permute.xlu0 %2478
      %2482 = vst.msk [vmem:[#allocation6 + $0x70] sm:$0xff] %vm2397, %v2477
      %2483 = vst.msk [vmem:[#allocation6 + $0x78] sm:$0xff] %vm2397, %v2479
      %v2484 = vld [vmem:[#allocation5] sm:$0xff]
      %v2485 = vld [vmem:[#allocation5 + $0x8] sm:$0xff]
      %2488 = vrot.lane.b32.xlu0 %v2484, 114
      %v2489 = vpop.permute.xlu0 %2488
      %2490 = vrot.lane.b32.xlu0 %v2485, 114
      %v2491 = vpop.permute.xlu0 %2490
      %2494 = vst.msk [vmem:[#allocation6 + $0x80] sm:$0xff] %vm2397, %v2489
      %2495 = vst.msk [vmem:[#allocation6 + $0x88] sm:$0xff] %vm2397, %v2491
      %v2496 = vld [vmem:[%s9] sm:$0xff]
      %v2497 = vld [vmem:[%s9 + $0x8] sm:$0xff]
      %v2498 = vld [vmem:[%s9 + $0x10] sm:$0xff]
      %v2499 = vld [vmem:[%s9 + $0x18] sm:$0xff]
      %v2500 = vld [vmem:[%s9 + $0x20] sm:$0xff]
      %v2501 = vld [vmem:[%s9 + $0x28] sm:$0xff]
      %v2502 = vld [vmem:[%s9 + $0x30] sm:$0xff]
      %v2503 = vld [vmem:[%s9 + $0x38] sm:$0xff]
      %v2504 = vld [vmem:[%s9 + $0x40] sm:$0xff]
      %v2505 = vld [vmem:[%s9 + $0x48] sm:$0xff]
      %v2506 = vld [vmem:[%s9 + $0x50] sm:$0xff]
      %v2507 = vld [vmem:[%s9 + $0x58] sm:$0xff]
      %v2508 = vld [vmem:[%s9 + $0x60] sm:$0xff]
      %v2509 = vld [vmem:[%s9 + $0x68] sm:$0xff]
      %v2510 = vld [vmem:[%s9 + $0x70] sm:$0xff]
      %v2511 = vld [vmem:[%s9 + $0x78] sm:$0xff]
      %v2512 = vld [vmem:[#allocation6] sm:$0xff]
      %v2513 = vld [vmem:[#allocation6 + $0x8] sm:$0xff]
      %v2514 = vld [vmem:[#allocation6 + $0x10] sm:$0xff]
      %v2515 = vld [vmem:[#allocation6 + $0x18] sm:$0xff]
      %v2516 = vld [vmem:[#allocation6 + $0x20] sm:$0xff]
      %v2517 = vld [vmem:[#allocation6 + $0x28] sm:$0xff]
      %v2518 = vld [vmem:[#allocation6 + $0x30] sm:$0xff]
      %v2519 = vld [vmem:[#allocation6 + $0x38] sm:$0xff]
      %v2520 = vld [vmem:[#allocation6 + $0x40] sm:$0xff]
      %v2521 = vld [vmem:[#allocation6 + $0x48] sm:$0xff]
      %v2522 = vld [vmem:[#allocation6 + $0x50] sm:$0xff]
      %v2523 = vld [vmem:[#allocation6 + $0x58] sm:$0xff]
      %v2524 = vld [vmem:[#allocation6 + $0x60] sm:$0xff]
      %v2525 = vld [vmem:[#allocation6 + $0x68] sm:$0xff]
      %v2526 = vld [vmem:[#allocation6 + $0x70] sm:$0xff]
      %v2527 = vld [vmem:[#allocation6 + $0x78] sm:$0xff]
      %v2528 = vld [vmem:[#allocation6 + $0x80] sm:$0xff]
      %v2529 = vld [vmem:[#allocation6 + $0x88] sm:$0xff]
      %v2530 = vld [vmem:[%s10] sm:$0xff]
      %v2531 = vld [vmem:[%s10 + $0x8] sm:$0xff]
      %v2532 = vld [vmem:[%s10 + $0x10] sm:$0xff]
      %v2533 = vld [vmem:[%s10 + $0x18] sm:$0xff]
      %v2534 = vld [vmem:[%s10 + $0x20] sm:$0xff]
      %v2535 = vld [vmem:[%s10 + $0x28] sm:$0xff]
      %v2536 = vld [vmem:[%s10 + $0x30] sm:$0xff]
      %v2537 = vld [vmem:[%s10 + $0x38] sm:$0xff]
      %2539 = vset.pattern.permute.xlu0 0
      %2540 = vperm.xlu0 %2539, %v2530
      %v2541 = vpop.permute.xlu0 %2540
      %2544 = vset.pattern.permute.xlu0 0
      %2545 = vperm.xlu0 %2544, %v2531
      %v2546 = vpop.permute.xlu0 %2545
      %2549 = vset.pattern.permute.xlu0 0
      %2550 = vperm.xlu0 %2549, %v2532
      %v2551 = vpop.permute.xlu0 %2550
      %2554 = vset.pattern.permute.xlu0 0
      %2555 = vperm.xlu0 %2554, %v2533
      %v2556 = vpop.permute.xlu0 %2555
      %2559 = vset.pattern.permute.xlu0 0
      %2560 = vperm.xlu0 %2559, %v2534
      %v2561 = vpop.permute.xlu0 %2560
      %2564 = vset.pattern.permute.xlu0 0
      %2565 = vperm.xlu0 %2564, %v2535
      %v2566 = vpop.permute.xlu0 %2565
      %2569 = vset.pattern.permute.xlu0 0
      %2570 = vperm.xlu0 %2569, %v2536
      %v2571 = vpop.permute.xlu0 %2570
      %2574 = vset.pattern.permute.xlu0 0
      %2575 = vperm.xlu0 %2574, %v2537
      %v2576 = vpop.permute.xlu0 %2575
      %vm2578 = vcmask 130048
      %v2580 = vsel %vm2578, %v2497, 0
      %v2583 = vsel %vm2578, %v2499, 0
      %v2586 = vsel %vm2578, %v2501, 0
      %v2589 = vsel %vm2578, %v2503, 0
      %v2592 = vsel %vm2578, %v2505, 0
      %v2595 = vsel %vm2578, %v2507, 0
      %v2598 = vsel %vm2578, %v2509, 0
      %v2601 = vsel %vm2578, %v2511, 0
      %2603 = vmatpush.msra.mxu0 %v2527
      %2604 = vmatpush.msra.mxu0 %v2526
      %2605 = vmatpush.msra.mxu0 %v2525
      %2606 = vmatpush.msra.mxu0 %v2524
      %2607 = vmatpush.msra.mxu0 %v2523
      %2608 = vmatpush.msra.mxu0 %v2522
      %2609 = vmatpush.msra.mxu0 %v2521
      %2610 = vmatpush.msra.mxu0 %v2520
      %2611 = vmatpush.msra.mxu0 %v2519
      %2612 = vmatpush.msra.mxu0 %v2518
      %2613 = vmatpush.msra.mxu0 %v2517
      %2614 = vmatpush.msra.mxu0 %v2516
      %2615 = vmatpush.msra.mxu0 %v2515
      %2616 = vmatpush.msra.mxu0 %v2514
      %2617 = vmatpush.msra.mxu0 %v2513
      %2618 = vmatpush.msra.mxu0 %v2512
      %2619 = vmatmul.f32.gmra.mxu0 %v2496
      %v2620 = vpop.f32.mrf.mxu0
      %v2621 = vadd.f32 %v2541, %v2620
      %2622 = vmatmul.f32.gmra.mxu0 %v2498
      %v2623 = vpop.f32.mrf.mxu0
      %v2624 = vadd.f32 %v2546, %v2623
      %2625 = vmatmul.f32.gmra.mxu0 %v2500
      %v2626 = vpop.f32.mrf.mxu0
      %v2627 = vadd.f32 %v2551, %v2626
      %2628 = vmatmul.f32.gmra.mxu0 %v2502
      %v2629 = vpop.f32.mrf.mxu0
      %v2630 = vadd.f32 %v2556, %v2629
      %2631 = vmatmul.f32.gmra.mxu0 %v2504
      %v2632 = vpop.f32.mrf.mxu0
      %v2633 = vadd.f32 %v2561, %v2632
      %2634 = vmatmul.f32.gmra.mxu0 %v2506
      %v2635 = vpop.f32.mrf.mxu0
      %v2636 = vadd.f32 %v2566, %v2635
      %2637 = vmatmul.f32.gmra.mxu0 %v2508
      %v2638 = vpop.f32.mrf.mxu0
      %v2639 = vadd.f32 %v2571, %v2638
      %2640 = vmatmul.f32.gmra.mxu0 %v2510
      %v2641 = vpop.f32.mrf.mxu0
      %v2642 = vadd.f32 %v2576, %v2641
      %2643 = vdwg.mxu0
      %2644 = vmatpush.msra.mxu0 0.0
      %2645 = vmatpush.msra.mxu0 0.0
      %2646 = vmatpush.msra.mxu0 0.0
      %2647 = vmatpush.msra.mxu0 0.0
      %2648 = vmatpush.msra.mxu0 0.0
      %2649 = vmatpush.msra.mxu0 0.0
      %2650 = vmatpush.msra.mxu0 0.0
      %2651 = vmatpush.msra.mxu0 0.0
      %2652 = vmatpush.msra.mxu0 0.0
      %2653 = vmatpush.msra.mxu0 0.0
      %2654 = vmatpush.msra.mxu0 0.0
      %2655 = vmatpush.msra.mxu0 0.0
      %2656 = vmatpush.msra.mxu0 0.0
      %2657 = vmatpush.msra.mxu0 0.0
      %2658 = vmatpush.msra.mxu0 %v2529
      %2659 = vmatpush.msra.mxu0 %v2528
      %2660 = vmatmul.f32.gmra.mxu0 %v2580
      %v2661 = vpop.f32.mrf.mxu0
      %v2662 = vadd.f32 %v2621, %v2661
      %2663 = vmatmul.f32.gmra.mxu0 %v2583
      %v2664 = vpop.f32.mrf.mxu0
      %v2665 = vadd.f32 %v2624, %v2664
      %2666 = vmatmul.f32.gmra.mxu0 %v2586
      %v2667 = vpop.f32.mrf.mxu0
      %v2668 = vadd.f32 %v2627, %v2667
      %2669 = vmatmul.f32.gmra.mxu0 %v2589
      %v2670 = vpop.f32.mrf.mxu0
      %v2671 = vadd.f32 %v2630, %v2670
      %2672 = vmatmul.f32.gmra.mxu0 %v2592
      %v2673 = vpop.f32.mrf.mxu0
      %v2674 = vadd.f32 %v2633, %v2673
      %2675 = vmatmul.f32.gmra.mxu0 %v2595
      %v2676 = vpop.f32.mrf.mxu0
      %v2677 = vadd.f32 %v2636, %v2676
      %2678 = vmatmul.f32.gmra.mxu0 %v2598
      %v2679 = vpop.f32.mrf.mxu0
      %v2680 = vadd.f32 %v2639, %v2679
      %2681 = vmatmul.f32.gmra.mxu0 %v2601
      %v2682 = vpop.f32.mrf.mxu0
      %v2683 = vadd.f32 %v2642, %v2682
      %2684 = vdwg.mxu0
      %v2685 = vmax.f32 %v2662, 0.0
      %v2686 = vmax.f32 %v2665, 0.0
      %v2687 = vmax.f32 %v2668, 0.0
      %v2688 = vmax.f32 %v2671, 0.0
      %v2689 = vmax.f32 %v2674, 0.0
      %v2690 = vmax.f32 %v2677, 0.0
      %v2691 = vmax.f32 %v2680, 0.0
      %v2692 = vmax.f32 %v2683, 0.0
      %2693 = vst.msk [vmem:[#allocation6] sm:$0xff] %vm2397, %v2685
      %2694 = vst.msk [vmem:[#allocation6 + $0x8] sm:$0xff] %vm2397, %v2686
      %2695 = vst.msk [vmem:[#allocation6 + $0x10] sm:$0xff] %vm2397, %v2687
      %2696 = vst.msk [vmem:[#allocation6 + $0x18] sm:$0xff] %vm2397, %v2688
      %2697 = vst.msk [vmem:[#allocation6 + $0x20] sm:$0xff] %vm2397, %v2689
      %2698 = vst.msk [vmem:[#allocation6 + $0x28] sm:$0xff] %vm2397, %v2690
      %2699 = vst.msk [vmem:[#allocation6 + $0x30] sm:$0xff] %vm2397, %v2691
      %2700 = vst.msk [vmem:[#allocation6 + $0x38] sm:$0xff] %vm2397, %v2692
      %v2701 = vld [vmem:[#allocation6] sm:$0xff]
      %v2702 = vld [vmem:[#allocation6 + $0x8] sm:$0xff]
      %v2703 = vld [vmem:[#allocation6 + $0x10] sm:$0xff]
      %v2704 = vld [vmem:[#allocation6 + $0x18] sm:$0xff]
      %v2705 = vld [vmem:[#allocation6 + $0x20] sm:$0xff]
      %v2706 = vld [vmem:[#allocation6 + $0x28] sm:$0xff]
      %v2707 = vld [vmem:[#allocation6 + $0x30] sm:$0xff]
      %v2708 = vld [vmem:[#allocation6 + $0x38] sm:$0xff]
      %2717 = vrot.lane.b32.xlu0 %v2701, 122
      %v2718 = vpop.permute.xlu0 %2717
      %2719 = vrot.lane.b32.xlu0 %v2702, 122
      %v2720 = vpop.permute.xlu0 %2719
      %2721 = vrot.lane.b32.xlu0 %v2703, 122
      %v2722 = vpop.permute.xlu0 %2721
      %2723 = vrot.lane.b32.xlu0 %v2704, 122
      %v2724 = vpop.permute.xlu0 %2723
      %2725 = vrot.lane.b32.xlu0 %v2705, 122
      %v2726 = vpop.permute.xlu0 %2725
      %2727 = vrot.lane.b32.xlu0 %v2706, 122
      %v2728 = vpop.permute.xlu0 %2727
      %2729 = vrot.lane.b32.xlu0 %v2707, 122
      %v2730 = vpop.permute.xlu0 %2729
      %2731 = vrot.lane.b32.xlu0 %v2708, 122
      %v2732 = vpop.permute.xlu0 %2731
      %v2741 = vmax.f32 %v2701, %v2718
      %v2742 = vmax.f32 %v2702, %v2720
      %v2743 = vmax.f32 %v2703, %v2722
      %v2744 = vmax.f32 %v2704, %v2724
      %v2745 = vmax.f32 %v2705, %v2726
      %v2746 = vmax.f32 %v2706, %v2728
      %v2747 = vmax.f32 %v2707, %v2730
      %v2748 = vmax.f32 %v2708, %v2732
      %vm2749 = vcmask 621568
      %2750 = vst.msk [vmem:[#allocation6] sm:$0xff] %vm2749, %v2741
      %2751 = vst.msk [vmem:[#allocation6 + $0x8] sm:$0xff] %vm2749, %v2742
      %2752 = vst.msk [vmem:[#allocation6 + $0x10] sm:$0xff] %vm2749, %v2743
      %2753 = vst.msk [vmem:[#allocation6 + $0x18] sm:$0xff] %vm2749, %v2744
      %2754 = vst.msk [vmem:[#allocation6 + $0x20] sm:$0xff] %vm2749, %v2745
      %2755 = vst.msk [vmem:[#allocation6 + $0x28] sm:$0xff] %vm2749, %v2746
      %2756 = vst.msk [vmem:[#allocation6 + $0x30] sm:$0xff] %vm2749, %v2747
      %2757 = vst.msk [vmem:[#allocation6 + $0x38] sm:$0xff] %vm2749, %v2748
      %v2758 = vld [vmem:[#allocation6] sm:$0xff]
      %v2759 = vld [vmem:[#allocation6 + $0x8] sm:$0xff]
      %v2760 = vld [vmem:[#allocation6 + $0x10] sm:$0xff]
      %v2761 = vld [vmem:[#allocation6 + $0x18] sm:$0xff]
      %v2762 = vld [vmem:[#allocation6 + $0x20] sm:$0xff]
      %v2763 = vld [vmem:[#allocation6 + $0x28] sm:$0xff]
      %v2764 = vld [vmem:[#allocation6 + $0x30] sm:$0xff]
      %v2765 = vld [vmem:[#allocation6 + $0x38] sm:$0xff]
      %2774 = vrot.lane.b32.xlu0 %v2758, 127
      %v2775 = vpop.permute.xlu0 %2774
      %2776 = vrot.lane.b32.xlu0 %v2759, 127
      %v2777 = vpop.permute.xlu0 %2776
      %2778 = vrot.lane.b32.xlu0 %v2760, 127
      %v2779 = vpop.permute.xlu0 %2778
      %2780 = vrot.lane.b32.xlu0 %v2761, 127
      %v2781 = vpop.permute.xlu0 %2780
      %2782 = vrot.lane.b32.xlu0 %v2762, 127
      %v2783 = vpop.permute.xlu0 %2782
      %2784 = vrot.lane.b32.xlu0 %v2763, 127
      %v2785 = vpop.permute.xlu0 %2784
      %2786 = vrot.lane.b32.xlu0 %v2764, 127
      %v2787 = vpop.permute.xlu0 %2786
      %2788 = vrot.lane.b32.xlu0 %v2765, 127
      %v2789 = vpop.permute.xlu0 %2788
      %v2798 = vmax.f32 %v2758, %v2775
      %v2799 = vmax.f32 %v2759, %v2777
      %v2800 = vmax.f32 %v2760, %v2779
      %v2801 = vmax.f32 %v2761, %v2781
      %v2802 = vmax.f32 %v2762, %v2783
      %v2803 = vmax.f32 %v2763, %v2785
      %v2804 = vmax.f32 %v2764, %v2787
      %v2805 = vmax.f32 %v2765, %v2789
      %v2806 = vld [vmem:[%s4] sm:$0x1]
      %v2807 = vperm.slane %v2806, 0
      %vm2808 = vcmp.eq.s32.totalorder %v1347, %v2807
      %vm2809 = vcmp.eq.s32.totalorder %v1348, %v2807
      %vm2810 = vcmp.eq.s32.totalorder %v1349, %v2807
      %vm2811 = vcmp.eq.s32.totalorder %v1350, %v2807
      %vm2812 = vcmp.eq.s32.totalorder %v1351, %v2807
      %vm2813 = vcmp.eq.s32.totalorder %v1352, %v2807
      %vm2814 = vcmp.eq.s32.totalorder %v1353, %v2807
      %vm2815 = vcmp.eq.s32.totalorder %v1354, %v2807
      %vm2816 = vcmp.eq.s32.totalorder %v1355, %v2807
      %vm2817 = vcmp.eq.s32.totalorder %v1356, %v2807
      %v2818 = vsel %vm2808, 1.0, 0.0
      %v2819 = vsel %vm2809, 1.0, 0.0
      %v2820 = vsel %vm2810, 1.0, 0.0
      %v2821 = vsel %vm2811, 1.0, 0.0
      %v2822 = vsel %vm2812, 1.0, 0.0
      %v2823 = vsel %vm2813, 1.0, 0.0
      %v2824 = vsel %vm2814, 1.0, 0.0
      %v2825 = vsel %vm2815, 1.0, 0.0
      %v2826 = vsel %vm2816, 1.0, 0.0
      %v2827 = vsel %vm2817, 1.0, 0.0
      %vm2828 = vcmask 613376
      %v2830 = vsel %vm2828, %v2798, 0
      %v2833 = vsel %vm2828, %v2799, 0
      %v2836 = vsel %vm2828, %v2800, 0
      %v2839 = vsel %vm2828, %v2801, 0
      %v2842 = vsel %vm2828, %v2802, 0
      %v2845 = vsel %vm2828, %v2803, 0
      %v2848 = vsel %vm2828, %v2804, 0
      %v2851 = vsel %vm2828, %v2805, 0
      %vm2853 = vcmask 1042432
      %v2855 = vsel %vm2853, %v2827, 0
      %2857 = vmatpush.msra.mxu0 0.0
      %2858 = vmatpush.msra.mxu0 0.0
      %2859 = vmatpush.msra.mxu0 0.0
      %2860 = vmatpush.msra.mxu0 0.0
      %2861 = vmatpush.msra.mxu0 0.0
      %2862 = vmatpush.msra.mxu0 0.0
      %2863 = vmatpush.msra.mxu0 %v2855
      %2864 = vmatpush.msra.mxu0 %v2826
      %2865 = vmatpush.msra.mxu0 %v2825
      %2866 = vmatpush.msra.mxu0 %v2824
      %2867 = vmatpush.msra.mxu0 %v2823
      %2868 = vmatpush.msra.mxu0 %v2822
      %2869 = vmatpush.msra.mxu0 %v2821
      %2870 = vmatpush.msra.mxu0 %v2820
      %2871 = vmatpush.msra.mxu0 %v2819
      %2872 = vmatpush.msra.mxu0 %v2818
      %2873 = vmatmul.f32.gmra.mxu0 %v2830
      %v2874 = vpop.f32.mrf.mxu0
      %v2875 = vadd.f32 0.0, %v2874
      %2876 = vmatmul.f32.gmra.mxu0 %v2833
      %v2877 = vpop.f32.mrf.mxu0
      %v2878 = vadd.f32 0.0, %v2877
      %2879 = vmatmul.f32.gmra.mxu0 %v2836
      %v2880 = vpop.f32.mrf.mxu0
      %v2881 = vadd.f32 0.0, %v2880
      %2882 = vmatmul.f32.gmra.mxu0 %v2839
      %v2883 = vpop.f32.mrf.mxu0
      %v2884 = vadd.f32 0.0, %v2883
      %2885 = vmatmul.f32.gmra.mxu0 %v2842
      %v2886 = vpop.f32.mrf.mxu0
      %v2887 = vadd.f32 0.0, %v2886
      %2888 = vmatmul.f32.gmra.mxu0 %v2845
      %v2889 = vpop.f32.mrf.mxu0
      %v2890 = vadd.f32 0.0, %v2889
      %2891 = vmatmul.f32.gmra.mxu0 %v2848
      %v2892 = vpop.f32.mrf.mxu0
      %v2893 = vadd.f32 0.0, %v2892
      %2894 = vmatmul.f32.gmra.mxu0 %v2851
      %v2895 = vpop.f32.mrf.mxu0
      %v2896 = vadd.f32 0.0, %v2895
      %2897 = vdwg.mxu0
      %vm2898 = vcmask 64512
      %2899 = vst.msk [vmem:[#allocation6] sm:$0xff] %vm2898, %v2875
      %2900 = vst.msk [vmem:[#allocation6 + $0x8] sm:$0xff] %vm2898, %v2878
      %2901 = vst.msk [vmem:[#allocation6 + $0x10] sm:$0xff] %vm2898, %v2881
      %2902 = vst.msk [vmem:[#allocation6 + $0x18] sm:$0xff] %vm2898, %v2884
      %2903 = vst.msk [vmem:[#allocation6 + $0x20] sm:$0xff] %vm2898, %v2887
      %2904 = vst.msk [vmem:[#allocation6 + $0x28] sm:$0xff] %vm2898, %v2890
      %2905 = vst.msk [vmem:[#allocation6 + $0x30] sm:$0xff] %vm2898, %v2893
      %2906 = vst.msk [vmem:[#allocation6 + $0x38] sm:$0xff] %vm2898, %v2896
      %v2907 = vld [vmem:[%s13] sm:$0xff]
      %v2908 = vld [vmem:[%s13 + $0x8] sm:$0xff]
      %v2909 = vld [vmem:[%s13 + $0x10] sm:$0xff]
      %v2910 = vld [vmem:[%s13 + $0x18] sm:$0xff]
      %v2911 = vld [vmem:[%s13 + $0x20] sm:$0xff]
      %v2912 = vld [vmem:[%s13 + $0x28] sm:$0xff]
      %v2913 = vld [vmem:[%s13 + $0x30] sm:$0xff]
      %v2914 = vld [vmem:[%s13 + $0x38] sm:$0xff]
      %v2915 = vld [vmem:[%s13 + $0x40] sm:$0xff]
      %v2916 = vld [vmem:[%s13 + $0x48] sm:$0xff]
      %v2917 = vld [vmem:[%s13 + $0x50] sm:$0xff]
      %v2918 = vld [vmem:[%s13 + $0x58] sm:$0xff]
      %v2919 = vld [vmem:[%s13 + $0x60] sm:$0xff]
      %v2920 = vld [vmem:[%s13 + $0x68] sm:$0xff]
      %v2921 = vld [vmem:[%s13 + $0x70] sm:$0xff]
      %v2922 = vld [vmem:[%s13 + $0x78] sm:$0xff]
      %v2923 = vld [vmem:[%s13 + $0x80] sm:$0xff]
      %v2924 = vld [vmem:[%s13 + $0x88] sm:$0xff]
      %v2925 = vld [vmem:[%s13 + $0x90] sm:$0xff]
      %v2926 = vld [vmem:[%s13 + $0x98] sm:$0xff]
      %v2927 = vld [vmem:[%s13 + $0xa0] sm:$0xff]
      %v2928 = vld [vmem:[%s13 + $0xa8] sm:$0xff]
      %v2929 = vld [vmem:[%s13 + $0xb0] sm:$0xff]
      %v2930 = vld [vmem:[%s13 + $0xb8] sm:$0xff]
      %v2931 = vld [vmem:[%s13 + $0xc0] sm:$0xff]
      %v2932 = vld [vmem:[%s13 + $0xc8] sm:$0xff]
      %v2933 = vld [vmem:[%s13 + $0xd0] sm:$0xff]
      %v2934 = vld [vmem:[%s13 + $0xd8] sm:$0xff]
      %v2935 = vld [vmem:[%s13 + $0xe0] sm:$0xff]
      %v2936 = vld [vmem:[%s13 + $0xe8] sm:$0xff]
      %v2937 = vld [vmem:[%s12] sm:$0xff]
      %v2938 = vld [vmem:[%s12 + $0x8] sm:$0xff]
      %v2939 = vld [vmem:[%s12 + $0x10] sm:$0xff]
      %v2940 = vld [vmem:[%s12 + $0x18] sm:$0xff]
      %v2941 = vld [vmem:[%s12 + $0x20] sm:$0xff]
      %v2942 = vld [vmem:[%s12 + $0x28] sm:$0xff]
      %v2943 = vld [vmem:[%s12 + $0x30] sm:$0xff]
      %v2944 = vld [vmem:[%s12 + $0x38] sm:$0xff]
      %v2945 = vld [vmem:[%s12 + $0x40] sm:$0xff]
      %v2946 = vld [vmem:[%s12 + $0x48] sm:$0xff]
      %v2947 = vld [vmem:[%s12 + $0x50] sm:$0xff]
      %v2948 = vld [vmem:[%s12 + $0x58] sm:$0xff]
      %v2949 = vld [vmem:[%s12 + $0x60] sm:$0xff]
      %v2950 = vld [vmem:[%s12 + $0x68] sm:$0xff]
      %v2951 = vld [vmem:[%s12 + $0x70] sm:$0xff]
      %v2952 = vld [vmem:[%s12 + $0x78] sm:$0xff]
      %v2953 = vld [vmem:[%s12 + $0x80] sm:$0xff]
      %v2954 = vld [vmem:[%s12 + $0x88] sm:$0xff]
      %v2955 = vld [vmem:[%s12 + $0x90] sm:$0xff]
      %v2956 = vld [vmem:[%s12 + $0x98] sm:$0xff]
      %v2957 = vld [vmem:[%s12 + $0xa0] sm:$0xff]
      %v2958 = vld [vmem:[%s12 + $0xa8] sm:$0xff]
      %v2959 = vld [vmem:[%s12 + $0xb0] sm:$0xff]
      %v2960 = vld [vmem:[%s12 + $0xb8] sm:$0xff]
      %v2961 = vld [vmem:[%s12 + $0xc0] sm:$0xff]
      %v2962 = vld [vmem:[%s12 + $0xc8] sm:$0xff]
      %v2963 = vld [vmem:[%s12 + $0xd0] sm:$0xff]
      %v2964 = vld [vmem:[%s12 + $0xd8] sm:$0xff]
      %v2965 = vld [vmem:[%s12 + $0xe0] sm:$0xff]
      %v2966 = vld [vmem:[%s12 + $0xe8] sm:$0xff]
      %v2967 = vld [vmem:[%s645] sm:$0xff]
      %v2968 = vld [vmem:[%s645 + $0x8] sm:$0xff]
      %v2969 = vld [vmem:[%s645 + $0x10] sm:$0xff]
      %v2970 = vld [vmem:[%s645 + $0x18] sm:$0xff]
      %v2971 = vld [vmem:[%s645 + $0x20] sm:$0xff]
      %v2972 = vld [vmem:[%s645 + $0x28] sm:$0xff]
      %v2973 = vld [vmem:[%s645 + $0x30] sm:$0xff]
      %v2974 = vld [vmem:[%s645 + $0x38] sm:$0xff]
      %vm2975 = vcmask 523264
      %v2977 = vsel %vm2975, %v2937, 0
      %v2980 = vsel %vm2975, %v2938, 0
      %v2983 = vsel %vm2975, %v2939, 0
      %v2986 = vsel %vm2975, %v2940, 0
      %v2989 = vsel %vm2975, %v2941, 0
      %v2992 = vsel %vm2975, %v2942, 0
      %v2995 = vsel %vm2975, %v2943, 0
      %v2998 = vsel %vm2975, %v2944, 0
      %v3001 = vsel %vm2975, %v2945, 0
      %v3004 = vsel %vm2975, %v2946, 0
      %v3007 = vsel %vm2975, %v2947, 0
      %v3010 = vsel %vm2975, %v2948, 0
      %v3013 = vsel %vm2975, %v2949, 0
      %v3016 = vsel %vm2975, %v2950, 0
      %v3019 = vsel %vm2975, %v2951, 0
      %v3022 = vsel %vm2975, %v2952, 0
      %v3025 = vsel %vm2975, %v2953, 0
      %v3028 = vsel %vm2975, %v2954, 0
      %v3031 = vsel %vm2975, %v2955, 0
      %v3034 = vsel %vm2975, %v2956, 0
      %v3037 = vsel %vm2975, %v2957, 0
      %v3040 = vsel %vm2975, %v2958, 0
      %v3043 = vsel %vm2975, %v2959, 0
      %v3046 = vsel %vm2975, %v2960, 0
      %v3049 = vsel %vm2975, %v2961, 0
      %v3052 = vsel %vm2975, %v2962, 0
      %v3055 = vsel %vm2975, %v2963, 0
      %v3058 = vsel %vm2975, %v2964, 0
      %v3061 = vsel %vm2975, %v2965, 0
      %v3064 = vsel %vm2975, %v2966, 0
      %3066 = vmatpush.msra.mxu0 0.0
      %3067 = vmatpush.msra.mxu0 0.0
      %3068 = vmatpush.msra.mxu0 0.0
      %3069 = vmatpush.msra.mxu0 0.0
      %3070 = vmatpush.msra.mxu0 0.0
      %3071 = vmatpush.msra.mxu0 0.0
      %3072 = vmatpush.msra.mxu0 0.0
      %3073 = vmatpush.msra.mxu0 0.0
      %3074 = vmatpush.msra.mxu0 %v2974
      %3075 = vmatpush.msra.mxu0 %v2973
      %3076 = vmatpush.msra.mxu0 %v2972
      %3077 = vmatpush.msra.mxu0 %v2971
      %3078 = vmatpush.msra.mxu0 %v2970
      %3079 = vmatpush.msra.mxu0 %v2969
      %3080 = vmatpush.msra.mxu0 %v2968
      %3081 = vmatpush.msra.mxu0 %v2967
      %3082 = vmatmul.f32.gmra.mxu0 %v2977
      %v3083 = vpop.f32.mrf.mxu0
      %v3084 = vadd.f32 0.0, %v3083
      %3085 = vmatmul.f32.gmra.mxu0 %v2980
      %v3086 = vpop.f32.mrf.mxu0
      %v3087 = vadd.f32 0.0, %v3086
      %3088 = vmatmul.f32.gmra.mxu0 %v2983
      %v3089 = vpop.f32.mrf.mxu0
      %v3090 = vadd.f32 0.0, %v3089
      %3091 = vmatmul.f32.gmra.mxu0 %v2986
      %v3092 = vpop.f32.mrf.mxu0
      %v3093 = vadd.f32 0.0, %v3092
      %3094 = vmatmul.f32.gmra.mxu0 %v2989
      %v3095 = vpop.f32.mrf.mxu0
      %v3096 = vadd.f32 0.0, %v3095
      %3097 = vmatmul.f32.gmra.mxu0 %v2992
      %v3098 = vpop.f32.mrf.mxu0
      %v3099 = vadd.f32 0.0, %v3098
      %3100 = vmatmul.f32.gmra.mxu0 %v2995
      %v3101 = vpop.f32.mrf.mxu0
      %v3102 = vadd.f32 0.0, %v3101
      %3103 = vmatmul.f32.gmra.mxu0 %v2998
      %v3104 = vpop.f32.mrf.mxu0
      %v3105 = vadd.f32 0.0, %v3104
      %3106 = vmatmul.f32.gmra.mxu0 %v3001
      %v3107 = vpop.f32.mrf.mxu0
      %v3108 = vadd.f32 0.0, %v3107
      %3109 = vmatmul.f32.gmra.mxu0 %v3004
      %v3110 = vpop.f32.mrf.mxu0
      %v3111 = vadd.f32 0.0, %v3110
      %3112 = vmatmul.f32.gmra.mxu0 %v3007
      %v3113 = vpop.f32.mrf.mxu0
      %v3114 = vadd.f32 0.0, %v3113
      %3115 = vmatmul.f32.gmra.mxu0 %v3010
      %v3116 = vpop.f32.mrf.mxu0
      %v3117 = vadd.f32 0.0, %v3116
      %3118 = vmatmul.f32.gmra.mxu0 %v3013
      %v3119 = vpop.f32.mrf.mxu0
      %v3120 = vadd.f32 0.0, %v3119
      %3121 = vmatmul.f32.gmra.mxu0 %v3016
      %v3122 = vpop.f32.mrf.mxu0
      %v3123 = vadd.f32 0.0, %v3122
      %3124 = vmatmul.f32.gmra.mxu0 %v3019
      %v3125 = vpop.f32.mrf.mxu0
      %v3126 = vadd.f32 0.0, %v3125
      %3127 = vmatmul.f32.gmra.mxu0 %v3022
      %v3128 = vpop.f32.mrf.mxu0
      %v3129 = vadd.f32 0.0, %v3128
      %3130 = vmatmul.f32.gmra.mxu0 %v3025
      %v3131 = vpop.f32.mrf.mxu0
      %v3132 = vadd.f32 0.0, %v3131
      %3133 = vmatmul.f32.gmra.mxu0 %v3028
      %v3134 = vpop.f32.mrf.mxu0
      %v3135 = vadd.f32 0.0, %v3134
      %3136 = vmatmul.f32.gmra.mxu0 %v3031
      %v3137 = vpop.f32.mrf.mxu0
      %v3138 = vadd.f32 0.0, %v3137
      %3139 = vmatmul.f32.gmra.mxu0 %v3034
      %v3140 = vpop.f32.mrf.mxu0
      %v3141 = vadd.f32 0.0, %v3140
      %3142 = vmatmul.f32.gmra.mxu0 %v3037
      %v3143 = vpop.f32.mrf.mxu0
      %v3144 = vadd.f32 0.0, %v3143
      %3145 = vmatmul.f32.gmra.mxu0 %v3040
      %v3146 = vpop.f32.mrf.mxu0
      %v3147 = vadd.f32 0.0, %v3146
      %3148 = vmatmul.f32.gmra.mxu0 %v3043
      %v3149 = vpop.f32.mrf.mxu0
      %v3150 = vadd.f32 0.0, %v3149
      %3151 = vmatmul.f32.gmra.mxu0 %v3046
      %v3152 = vpop.f32.mrf.mxu0
      %v3153 = vadd.f32 0.0, %v3152
      %3154 = vmatmul.f32.gmra.mxu0 %v3049
      %v3155 = vpop.f32.mrf.mxu0
      %v3156 = vadd.f32 0.0, %v3155
      %3157 = vmatmul.f32.gmra.mxu0 %v3052
      %v3158 = vpop.f32.mrf.mxu0
      %v3159 = vadd.f32 0.0, %v3158
      %3160 = vmatmul.f32.gmra.mxu0 %v3055
      %v3161 = vpop.f32.mrf.mxu0
      %v3162 = vadd.f32 0.0, %v3161
      %3163 = vmatmul.f32.gmra.mxu0 %v3058
      %v3164 = vpop.f32.mrf.mxu0
      %v3165 = vadd.f32 0.0, %v3164
      %3166 = vmatmul.f32.gmra.mxu0 %v3061
      %v3167 = vpop.f32.mrf.mxu0
      %v3168 = vadd.f32 0.0, %v3167
      %3169 = vmatmul.f32.gmra.mxu0 %v3064
      %v3170 = vpop.f32.mrf.mxu0
      %v3171 = vadd.f32 0.0, %v3170
      %3172 = vdwg.mxu0
      %3174 = vset.pattern.permute.xlu0 0
      %3175 = vperm.xlu0 %3174, %v2907
      %v3176 = vpop.permute.xlu0 %3175
      %3179 = vset.pattern.permute.xlu0 0
      %3180 = vperm.xlu0 %3179, %v2908
      %v3181 = vpop.permute.xlu0 %3180
      %3184 = vset.pattern.permute.xlu0 0
      %3185 = vperm.xlu0 %3184, %v2909
      %v3186 = vpop.permute.xlu0 %3185
      %3189 = vset.pattern.permute.xlu0 0
      %3190 = vperm.xlu0 %3189, %v2910
      %v3191 = vpop.permute.xlu0 %3190
      %3194 = vset.pattern.permute.xlu0 0
      %3195 = vperm.xlu0 %3194, %v2911
      %v3196 = vpop.permute.xlu0 %3195
      %3199 = vset.pattern.permute.xlu0 0
      %3200 = vperm.xlu0 %3199, %v2912
      %v3201 = vpop.permute.xlu0 %3200
      %3204 = vset.pattern.permute.xlu0 0
      %3205 = vperm.xlu0 %3204, %v2913
      %v3206 = vpop.permute.xlu0 %3205
      %3209 = vset.pattern.permute.xlu0 0
      %3210 = vperm.xlu0 %3209, %v2914
      %v3211 = vpop.permute.xlu0 %3210
      %3214 = vset.pattern.permute.xlu0 0
      %3215 = vperm.xlu0 %3214, %v2915
      %v3216 = vpop.permute.xlu0 %3215
      %3219 = vset.pattern.permute.xlu0 0
      %3220 = vperm.xlu0 %3219, %v2916
      %v3221 = vpop.permute.xlu0 %3220
      %3224 = vset.pattern.permute.xlu0 0
      %3225 = vperm.xlu0 %3224, %v2917
      %v3226 = vpop.permute.xlu0 %3225
      %3229 = vset.pattern.permute.xlu0 0
      %3230 = vperm.xlu0 %3229, %v2918
      %v3231 = vpop.permute.xlu0 %3230
      %3234 = vset.pattern.permute.xlu0 0
      %3235 = vperm.xlu0 %3234, %v2919
      %v3236 = vpop.permute.xlu0 %3235
      %3239 = vset.pattern.permute.xlu0 0
      %3240 = vperm.xlu0 %3239, %v2920
      %v3241 = vpop.permute.xlu0 %3240
      %3244 = vset.pattern.permute.xlu0 0
      %3245 = vperm.xlu0 %3244, %v2921
      %v3246 = vpop.permute.xlu0 %3245
      %3249 = vset.pattern.permute.xlu0 0
      %3250 = vperm.xlu0 %3249, %v2922
      %v3251 = vpop.permute.xlu0 %3250
      %3254 = vset.pattern.permute.xlu0 0
      %3255 = vperm.xlu0 %3254, %v2923
      %v3256 = vpop.permute.xlu0 %3255
      %3259 = vset.pattern.permute.xlu0 0
      %3260 = vperm.xlu0 %3259, %v2924
      %v3261 = vpop.permute.xlu0 %3260
      %3264 = vset.pattern.permute.xlu0 0
      %3265 = vperm.xlu0 %3264, %v2925
      %v3266 = vpop.permute.xlu0 %3265
      %3269 = vset.pattern.permute.xlu0 0
      %3270 = vperm.xlu0 %3269, %v2926
      %v3271 = vpop.permute.xlu0 %3270
      %3274 = vset.pattern.permute.xlu0 0
      %3275 = vperm.xlu0 %3274, %v2927
      %v3276 = vpop.permute.xlu0 %3275
      %3279 = vset.pattern.permute.xlu0 0
      %3280 = vperm.xlu0 %3279, %v2928
      %v3281 = vpop.permute.xlu0 %3280
      %3284 = vset.pattern.permute.xlu0 0
      %3285 = vperm.xlu0 %3284, %v2929
      %v3286 = vpop.permute.xlu0 %3285
      %3289 = vset.pattern.permute.xlu0 0
      %3290 = vperm.xlu0 %3289, %v2930
      %v3291 = vpop.permute.xlu0 %3290
      %3294 = vset.pattern.permute.xlu0 0
      %3295 = vperm.xlu0 %3294, %v2931
      %v3296 = vpop.permute.xlu0 %3295
      %3299 = vset.pattern.permute.xlu0 0
      %3300 = vperm.xlu0 %3299, %v2932
      %v3301 = vpop.permute.xlu0 %3300
      %3304 = vset.pattern.permute.xlu0 0
      %3305 = vperm.xlu0 %3304, %v2933
      %v3306 = vpop.permute.xlu0 %3305
      %3309 = vset.pattern.permute.xlu0 0
      %3310 = vperm.xlu0 %3309, %v2934
      %v3311 = vpop.permute.xlu0 %3310
      %3314 = vset.pattern.permute.xlu0 0
      %3315 = vperm.xlu0 %3314, %v2935
      %v3316 = vpop.permute.xlu0 %3315
      %3319 = vset.pattern.permute.xlu0 0
      %3320 = vperm.xlu0 %3319, %v2936
      %v3321 = vpop.permute.xlu0 %3320
      %v3323 = vadd.f32 %v3176, %v3084
      %v3324 = vadd.f32 %v3181, %v3087
      %v3325 = vadd.f32 %v3186, %v3090
      %v3326 = vadd.f32 %v3191, %v3093
      %v3327 = vadd.f32 %v3196, %v3096
      %v3328 = vadd.f32 %v3201, %v3099
      %v3329 = vadd.f32 %v3206, %v3102
      %v3330 = vadd.f32 %v3211, %v3105
      %v3331 = vadd.f32 %v3216, %v3108
      %v3332 = vadd.f32 %v3221, %v3111
      %v3333 = vadd.f32 %v3226, %v3114
      %v3334 = vadd.f32 %v3231, %v3117
      %v3335 = vadd.f32 %v3236, %v3120
      %v3336 = vadd.f32 %v3241, %v3123
      %v3337 = vadd.f32 %v3246, %v3126
      %v3338 = vadd.f32 %v3251, %v3129
      %v3339 = vadd.f32 %v3256, %v3132
      %v3340 = vadd.f32 %v3261, %v3135
      %v3341 = vadd.f32 %v3266, %v3138
      %v3342 = vadd.f32 %v3271, %v3141
      %v3343 = vadd.f32 %v3276, %v3144
      %v3344 = vadd.f32 %v3281, %v3147
      %v3345 = vadd.f32 %v3286, %v3150
      %v3346 = vadd.f32 %v3291, %v3153
      %v3347 = vadd.f32 %v3296, %v3156
      %v3348 = vadd.f32 %v3301, %v3159
      %v3349 = vadd.f32 %v3306, %v3162
      %v3350 = vadd.f32 %v3311, %v3165
      %v3351 = vadd.f32 %v3316, %v3168
      %v3352 = vadd.f32 %v3321, %v3171
      %v3353 = vld [vmem:[%s11] sm:$0xff]
      %v3354 = vld [vmem:[%s11 + $0x8] sm:$0xff]
      %v3355 = vld [vmem:[%s11 + $0x10] sm:$0xff]
      %v3356 = vld [vmem:[%s11 + $0x18] sm:$0xff]
      %v3357 = vld [vmem:[%s11 + $0x20] sm:$0xff]
      %v3358 = vld [vmem:[%s11 + $0x28] sm:$0xff]
      %v3359 = vld [vmem:[%s11 + $0x30] sm:$0xff]
      %v3360 = vld [vmem:[%s11 + $0x38] sm:$0xff]
      %v3361 = vld [vmem:[%s11 + $0x40] sm:$0xff]
      %v3362 = vld [vmem:[%s11 + $0x48] sm:$0xff]
      %v3363 = vld [vmem:[%s11 + $0x50] sm:$0xff]
      %v3364 = vld [vmem:[%s11 + $0x58] sm:$0xff]
      %v3365 = vld [vmem:[%s11 + $0x60] sm:$0xff]
      %v3366 = vld [vmem:[%s11 + $0x68] sm:$0xff]
      %v3367 = vld [vmem:[%s11 + $0x70] sm:$0xff]
      %v3368 = vld [vmem:[%s11 + $0x78] sm:$0xff]
      %v3369 = vld [vmem:[%s11 + $0x80] sm:$0xff]
      %v3370 = vld [vmem:[%s11 + $0x88] sm:$0xff]
      %v3371 = vld [vmem:[%s11 + $0x90] sm:$0xff]
      %v3372 = vld [vmem:[%s11 + $0x98] sm:$0xff]
      %v3373 = vld [vmem:[%s11 + $0xa0] sm:$0xff]
      %v3374 = vld [vmem:[%s11 + $0xa8] sm:$0xff]
      %v3375 = vld [vmem:[%s11 + $0xb0] sm:$0xff]
      %v3376 = vld [vmem:[%s11 + $0xb8] sm:$0xff]
      %v3377 = vld [vmem:[%s11 + $0xc0] sm:$0xff]
      %v3378 = vld [vmem:[%s11 + $0xc8] sm:$0xff]
      %v3379 = vld [vmem:[%s11 + $0xd0] sm:$0xff]
      %v3380 = vld [vmem:[%s11 + $0xd8] sm:$0xff]
      %v3381 = vld [vmem:[%s11 + $0xe0] sm:$0xff]
      %v3382 = vld [vmem:[%s11 + $0xe8] sm:$0xff]
      %v3383 = vld [vmem:[#allocation6] sm:$0xff]
      %v3384 = vld [vmem:[#allocation6 + $0x8] sm:$0xff]
      %v3385 = vld [vmem:[#allocation6 + $0x10] sm:$0xff]
      %v3386 = vld [vmem:[#allocation6 + $0x18] sm:$0xff]
      %v3387 = vld [vmem:[#allocation6 + $0x20] sm:$0xff]
      %v3388 = vld [vmem:[#allocation6 + $0x28] sm:$0xff]
      %v3389 = vld [vmem:[#allocation6 + $0x30] sm:$0xff]
      %v3390 = vld [vmem:[#allocation6 + $0x38] sm:$0xff]
      %v3392 = vsel %vm2975, %v3353, 0
      %v3395 = vsel %vm2975, %v3354, 0
      %v3398 = vsel %vm2975, %v3355, 0
      %v3401 = vsel %vm2975, %v3356, 0
      %v3404 = vsel %vm2975, %v3357, 0
      %v3407 = vsel %vm2975, %v3358, 0
      %v3410 = vsel %vm2975, %v3359, 0
      %v3413 = vsel %vm2975, %v3360, 0
      %v3416 = vsel %vm2975, %v3361, 0
      %v3419 = vsel %vm2975, %v3362, 0
      %v3422 = vsel %vm2975, %v3363, 0
      %v3425 = vsel %vm2975, %v3364, 0
      %v3428 = vsel %vm2975, %v3365, 0
      %v3431 = vsel %vm2975, %v3366, 0
      %v3434 = vsel %vm2975, %v3367, 0
      %v3437 = vsel %vm2975, %v3368, 0
      %v3440 = vsel %vm2975, %v3369, 0
      %v3443 = vsel %vm2975, %v3370, 0
      %v3446 = vsel %vm2975, %v3371, 0
      %v3449 = vsel %vm2975, %v3372, 0
      %v3452 = vsel %vm2975, %v3373, 0
      %v3455 = vsel %vm2975, %v3374, 0
      %v3458 = vsel %vm2975, %v3375, 0
      %v3461 = vsel %vm2975, %v3376, 0
      %v3464 = vsel %vm2975, %v3377, 0
      %v3467 = vsel %vm2975, %v3378, 0
      %v3470 = vsel %vm2975, %v3379, 0
      %v3473 = vsel %vm2975, %v3380, 0
      %v3476 = vsel %vm2975, %v3381, 0
      %v3479 = vsel %vm2975, %v3382, 0
      %3481 = vmatpush.msra.mxu0 0.0
      %3482 = vmatpush.msra.mxu0 0.0
      %3483 = vmatpush.msra.mxu0 0.0
      %3484 = vmatpush.msra.mxu0 0.0
      %3485 = vmatpush.msra.mxu0 0.0
      %3486 = vmatpush.msra.mxu0 0.0
      %3487 = vmatpush.msra.mxu0 0.0
      %3488 = vmatpush.msra.mxu0 0.0
      %3489 = vmatpush.msra.mxu0 %v3390
      %3490 = vmatpush.msra.mxu0 %v3389
      %3491 = vmatpush.msra.mxu0 %v3388
      %3492 = vmatpush.msra.mxu0 %v3387
      %3493 = vmatpush.msra.mxu0 %v3386
      %3494 = vmatpush.msra.mxu0 %v3385
      %3495 = vmatpush.msra.mxu0 %v3384
      %3496 = vmatpush.msra.mxu0 %v3383
      %3497 = vmatmul.f32.gmra.mxu0 %v3392
      %v3498 = vpop.f32.mrf.mxu0
      %v3499 = vadd.f32 0.0, %v3498
      %3500 = vmatmul.f32.gmra.mxu0 %v3395
      %v3501 = vpop.f32.mrf.mxu0
      %v3502 = vadd.f32 0.0, %v3501
      %3503 = vmatmul.f32.gmra.mxu0 %v3398
      %v3504 = vpop.f32.mrf.mxu0
      %v3505 = vadd.f32 0.0, %v3504
      %3506 = vmatmul.f32.gmra.mxu0 %v3401
      %v3507 = vpop.f32.mrf.mxu0
      %v3508 = vadd.f32 0.0, %v3507
      %3509 = vmatmul.f32.gmra.mxu0 %v3404
      %v3510 = vpop.f32.mrf.mxu0
      %v3511 = vadd.f32 0.0, %v3510
      %3512 = vmatmul.f32.gmra.mxu0 %v3407
      %v3513 = vpop.f32.mrf.mxu0
      %v3514 = vadd.f32 0.0, %v3513
      %3515 = vmatmul.f32.gmra.mxu0 %v3410
      %v3516 = vpop.f32.mrf.mxu0
      %v3517 = vadd.f32 0.0, %v3516
      %3518 = vmatmul.f32.gmra.mxu0 %v3413
      %v3519 = vpop.f32.mrf.mxu0
      %v3520 = vadd.f32 0.0, %v3519
      %3521 = vmatmul.f32.gmra.mxu0 %v3416
      %v3522 = vpop.f32.mrf.mxu0
      %v3523 = vadd.f32 0.0, %v3522
      %3524 = vmatmul.f32.gmra.mxu0 %v3419
      %v3525 = vpop.f32.mrf.mxu0
      %v3526 = vadd.f32 0.0, %v3525
      %3527 = vmatmul.f32.gmra.mxu0 %v3422
      %v3528 = vpop.f32.mrf.mxu0
      %v3529 = vadd.f32 0.0, %v3528
      %3530 = vmatmul.f32.gmra.mxu0 %v3425
      %v3531 = vpop.f32.mrf.mxu0
      %v3532 = vadd.f32 0.0, %v3531
      %3533 = vmatmul.f32.gmra.mxu0 %v3428
      %v3534 = vpop.f32.mrf.mxu0
      %v3535 = vadd.f32 0.0, %v3534
      %3536 = vmatmul.f32.gmra.mxu0 %v3431
      %v3537 = vpop.f32.mrf.mxu0
      %v3538 = vadd.f32 0.0, %v3537
      %3539 = vmatmul.f32.gmra.mxu0 %v3434
      %v3540 = vpop.f32.mrf.mxu0
      %v3541 = vadd.f32 0.0, %v3540
      %3542 = vmatmul.f32.gmra.mxu0 %v3437
      %v3543 = vpop.f32.mrf.mxu0
      %v3544 = vadd.f32 0.0, %v3543
      %3545 = vmatmul.f32.gmra.mxu0 %v3440
      %v3546 = vpop.f32.mrf.mxu0
      %v3547 = vadd.f32 0.0, %v3546
      %3548 = vmatmul.f32.gmra.mxu0 %v3443
      %v3549 = vpop.f32.mrf.mxu0
      %v3550 = vadd.f32 0.0, %v3549
      %3551 = vmatmul.f32.gmra.mxu0 %v3446
      %v3552 = vpop.f32.mrf.mxu0
      %v3553 = vadd.f32 0.0, %v3552
      %3554 = vmatmul.f32.gmra.mxu0 %v3449
      %v3555 = vpop.f32.mrf.mxu0
      %v3556 = vadd.f32 0.0, %v3555
      %3557 = vmatmul.f32.gmra.mxu0 %v3452
      %v3558 = vpop.f32.mrf.mxu0
      %v3559 = vadd.f32 0.0, %v3558
      %3560 = vmatmul.f32.gmra.mxu0 %v3455
      %v3561 = vpop.f32.mrf.mxu0
      %v3562 = vadd.f32 0.0, %v3561
      %3563 = vmatmul.f32.gmra.mxu0 %v3458
      %v3564 = vpop.f32.mrf.mxu0
      %v3565 = vadd.f32 0.0, %v3564
      %3566 = vmatmul.f32.gmra.mxu0 %v3461
      %v3567 = vpop.f32.mrf.mxu0
      %v3568 = vadd.f32 0.0, %v3567
      %3569 = vmatmul.f32.gmra.mxu0 %v3464
      %v3570 = vpop.f32.mrf.mxu0
      %v3571 = vadd.f32 0.0, %v3570
      %3572 = vmatmul.f32.gmra.mxu0 %v3467
      %v3573 = vpop.f32.mrf.mxu0
      %v3574 = vadd.f32 0.0, %v3573
      %3575 = vmatmul.f32.gmra.mxu0 %v3470
      %v3576 = vpop.f32.mrf.mxu0
      %v3577 = vadd.f32 0.0, %v3576
      %3578 = vmatmul.f32.gmra.mxu0 %v3473
      %v3579 = vpop.f32.mrf.mxu0
      %v3580 = vadd.f32 0.0, %v3579
      %3581 = vmatmul.f32.gmra.mxu0 %v3476
      %v3582 = vpop.f32.mrf.mxu0
      %v3583 = vadd.f32 0.0, %v3582
      %3584 = vmatmul.f32.gmra.mxu0 %v3479
      %v3585 = vpop.f32.mrf.mxu0
      %v3586 = vadd.f32 0.0, %v3585
      %3587 = vdwg.mxu0
      %v3588 = vadd.f32 %v3323, %v3499
      %v3589 = vadd.f32 %v3324, %v3502
      %v3590 = vadd.f32 %v3325, %v3505
      %v3591 = vadd.f32 %v3326, %v3508
      %v3592 = vadd.f32 %v3327, %v3511
      %v3593 = vadd.f32 %v3328, %v3514
      %v3594 = vadd.f32 %v3329, %v3517
      %v3595 = vadd.f32 %v3330, %v3520
      %v3596 = vadd.f32 %v3331, %v3523
      %v3597 = vadd.f32 %v3332, %v3526
      %v3598 = vadd.f32 %v3333, %v3529
      %v3599 = vadd.f32 %v3334, %v3532
      %v3600 = vadd.f32 %v3335, %v3535
      %v3601 = vadd.f32 %v3336, %v3538
      %v3602 = vadd.f32 %v3337, %v3541
      %v3603 = vadd.f32 %v3338, %v3544
      %v3604 = vadd.f32 %v3339, %v3547
      %v3605 = vadd.f32 %v3340, %v3550
      %v3606 = vadd.f32 %v3341, %v3553
      %v3607 = vadd.f32 %v3342, %v3556
      %v3608 = vadd.f32 %v3343, %v3559
      %v3609 = vadd.f32 %v3344, %v3562
      %v3610 = vadd.f32 %v3345, %v3565
      %v3611 = vadd.f32 %v3346, %v3568
      %v3612 = vadd.f32 %v3347, %v3571
      %v3613 = vadd.f32 %v3348, %v3574
      %v3614 = vadd.f32 %v3349, %v3577
      %v3615 = vadd.f32 %v3350, %v3580
      %v3616 = vadd.f32 %v3351, %v3583
      %v3617 = vadd.f32 %v3352, %v3586
      %s3618 = scalar_lea.vmem %s11, 240
      %v3619 = vld [vmem:[%s3618] sm:$0xff]
      %v3620 = vld [vmem:[%s3618 + $0x8] sm:$0xff]
      %v3621 = vld [vmem:[%s3618 + $0x10] sm:$0xff]
      %v3622 = vld [vmem:[%s3618 + $0x18] sm:$0xff]
      %v3623 = vld [vmem:[%s3618 + $0x20] sm:$0xff]
      %v3624 = vld [vmem:[%s3618 + $0x28] sm:$0xff]
      %v3625 = vld [vmem:[%s3618 + $0x30] sm:$0xff]
      %v3626 = vld [vmem:[%s3618 + $0x38] sm:$0xff]
      %v3627 = vld [vmem:[%s3618 + $0x40] sm:$0xff]
      %v3628 = vld [vmem:[%s3618 + $0x48] sm:$0xff]
      %v3629 = vld [vmem:[%s3618 + $0x50] sm:$0xff]
      %v3630 = vld [vmem:[%s3618 + $0x58] sm:$0xff]
      %v3631 = vld [vmem:[%s3618 + $0x60] sm:$0xff]
      %v3632 = vld [vmem:[%s3618 + $0x68] sm:$0xff]
      %v3633 = vld [vmem:[%s3618 + $0x70] sm:$0xff]
      %v3634 = vld [vmem:[%s3618 + $0x78] sm:$0xff]
      %v3635 = vld [vmem:[%s3618 + $0x80] sm:$0xff]
      %v3636 = vld [vmem:[%s3618 + $0x88] sm:$0xff]
      %v3637 = vld [vmem:[%s3618 + $0x90] sm:$0xff]
      %v3638 = vld [vmem:[%s3618 + $0x98] sm:$0xff]
      %v3639 = vld [vmem:[%s3618 + $0xa0] sm:$0xff]
      %v3640 = vld [vmem:[%s3618 + $0xa8] sm:$0xff]
      %v3641 = vld [vmem:[%s3618 + $0xb0] sm:$0xff]
      %v3642 = vld [vmem:[%s3618 + $0xb8] sm:$0xff]
      %v3643 = vld [vmem:[%s3618 + $0xc0] sm:$0xff]
      %v3644 = vld [vmem:[%s3618 + $0xc8] sm:$0xff]
      %v3645 = vld [vmem:[%s3618 + $0xd0] sm:$0xff]
      %v3646 = vld [vmem:[%s3618 + $0xd8] sm:$0xff]
      %v3647 = vld [vmem:[%s3618 + $0xe0] sm:$0xff]
      %v3648 = vld [vmem:[%s3618 + $0xe8] sm:$0xff]
      %3657 = vrot.lane.b32.xlu0 %v3383, 126
      %v3658 = vpop.permute.xlu0 %3657
      %3659 = vrot.lane.b32.xlu0 %v3384, 126
      %v3660 = vpop.permute.xlu0 %3659
      %3661 = vrot.lane.b32.xlu0 %v3385, 126
      %v3662 = vpop.permute.xlu0 %3661
      %3663 = vrot.lane.b32.xlu0 %v3386, 126
      %v3664 = vpop.permute.xlu0 %3663
      %3665 = vrot.lane.b32.xlu0 %v3387, 126
      %v3666 = vpop.permute.xlu0 %3665
      %3667 = vrot.lane.b32.xlu0 %v3388, 126
      %v3668 = vpop.permute.xlu0 %3667
      %3669 = vrot.lane.b32.xlu0 %v3389, 126
      %v3670 = vpop.permute.xlu0 %3669
      %3671 = vrot.lane.b32.xlu0 %v3390, 126
      %v3672 = vpop.permute.xlu0 %3671
      %v3682 = vsel %vm2975, %v3619, 0
      %v3685 = vsel %vm2975, %v3620, 0
      %v3688 = vsel %vm2975, %v3621, 0
      %v3691 = vsel %vm2975, %v3622, 0
      %v3694 = vsel %vm2975, %v3623, 0
      %v3697 = vsel %vm2975, %v3624, 0
      %v3700 = vsel %vm2975, %v3625, 0
      %v3703 = vsel %vm2975, %v3626, 0
      %v3706 = vsel %vm2975, %v3627, 0
      %v3709 = vsel %vm2975, %v3628, 0
      %v3712 = vsel %vm2975, %v3629, 0
      %v3715 = vsel %vm2975, %v3630, 0
      %v3718 = vsel %vm2975, %v3631, 0
      %v3721 = vsel %vm2975, %v3632, 0
      %v3724 = vsel %vm2975, %v3633, 0
      %v3727 = vsel %vm2975, %v3634, 0
      %v3730 = vsel %vm2975, %v3635, 0
      %v3733 = vsel %vm2975, %v3636, 0
      %v3736 = vsel %vm2975, %v3637, 0
      %v3739 = vsel %vm2975, %v3638, 0
      %v3742 = vsel %vm2975, %v3639, 0
      %v3745 = vsel %vm2975, %v3640, 0
      %v3748 = vsel %vm2975, %v3641, 0
      %v3751 = vsel %vm2975, %v3642, 0
      %v3754 = vsel %vm2975, %v3643, 0
      %v3757 = vsel %vm2975, %v3644, 0
      %v3760 = vsel %vm2975, %v3645, 0
      %v3763 = vsel %vm2975, %v3646, 0
      %v3766 = vsel %vm2975, %v3647, 0
      %v3769 = vsel %vm2975, %v3648, 0
      %3771 = vmatpush.msra.mxu0 0.0
      %3772 = vmatpush.msra.mxu0 0.0
      %3773 = vmatpush.msra.mxu0 0.0
      %3774 = vmatpush.msra.mxu0 0.0
      %3775 = vmatpush.msra.mxu0 0.0
      %3776 = vmatpush.msra.mxu0 0.0
      %3777 = vmatpush.msra.mxu0 0.0
      %3778 = vmatpush.msra.mxu0 0.0
      %3779 = vmatpush.msra.mxu0 %v3672
      %3780 = vmatpush.msra.mxu0 %v3670
      %3781 = vmatpush.msra.mxu0 %v3668
      %3782 = vmatpush.msra.mxu0 %v3666
      %3783 = vmatpush.msra.mxu0 %v3664
      %3784 = vmatpush.msra.mxu0 %v3662
      %3785 = vmatpush.msra.mxu0 %v3660
      %3786 = vmatpush.msra.mxu0 %v3658
      %3787 = vmatmul.f32.gmra.mxu0 %v3682
      %v3788 = vpop.f32.mrf.mxu0
      %v3789 = vadd.f32 0.0, %v3788
      %3790 = vmatmul.f32.gmra.mxu0 %v3685
      %v3791 = vpop.f32.mrf.mxu0
      %v3792 = vadd.f32 0.0, %v3791
      %3793 = vmatmul.f32.gmra.mxu0 %v3688
      %v3794 = vpop.f32.mrf.mxu0
      %v3795 = vadd.f32 0.0, %v3794
      %3796 = vmatmul.f32.gmra.mxu0 %v3691
      %v3797 = vpop.f32.mrf.mxu0
      %v3798 = vadd.f32 0.0, %v3797
      %3799 = vmatmul.f32.gmra.mxu0 %v3694
      %v3800 = vpop.f32.mrf.mxu0
      %v3801 = vadd.f32 0.0, %v3800
      %3802 = vmatmul.f32.gmra.mxu0 %v3697
      %v3803 = vpop.f32.mrf.mxu0
      %v3804 = vadd.f32 0.0, %v3803
      %3805 = vmatmul.f32.gmra.mxu0 %v3700
      %v3806 = vpop.f32.mrf.mxu0
      %v3807 = vadd.f32 0.0, %v3806
      %3808 = vmatmul.f32.gmra.mxu0 %v3703
      %v3809 = vpop.f32.mrf.mxu0
      %v3810 = vadd.f32 0.0, %v3809
      %3811 = vmatmul.f32.gmra.mxu0 %v3706
      %v3812 = vpop.f32.mrf.mxu0
      %v3813 = vadd.f32 0.0, %v3812
      %3814 = vmatmul.f32.gmra.mxu0 %v3709
      %v3815 = vpop.f32.mrf.mxu0
      %v3816 = vadd.f32 0.0, %v3815
      %3817 = vmatmul.f32.gmra.mxu0 %v3712
      %v3818 = vpop.f32.mrf.mxu0
      %v3819 = vadd.f32 0.0, %v3818
      %3820 = vmatmul.f32.gmra.mxu0 %v3715
      %v3821 = vpop.f32.mrf.mxu0
      %v3822 = vadd.f32 0.0, %v3821
      %3823 = vmatmul.f32.gmra.mxu0 %v3718
      %v3824 = vpop.f32.mrf.mxu0
      %v3825 = vadd.f32 0.0, %v3824
      %3826 = vmatmul.f32.gmra.mxu0 %v3721
      %v3827 = vpop.f32.mrf.mxu0
      %v3828 = vadd.f32 0.0, %v3827
      %3829 = vmatmul.f32.gmra.mxu0 %v3724
      %v3830 = vpop.f32.mrf.mxu0
      %v3831 = vadd.f32 0.0, %v3830
      %3832 = vmatmul.f32.gmra.mxu0 %v3727
      %v3833 = vpop.f32.mrf.mxu0
      %v3834 = vadd.f32 0.0, %v3833
      %3835 = vmatmul.f32.gmra.mxu0 %v3730
      %v3836 = vpop.f32.mrf.mxu0
      %v3837 = vadd.f32 0.0, %v3836
      %3838 = vmatmul.f32.gmra.mxu0 %v3733
      %v3839 = vpop.f32.mrf.mxu0
      %v3840 = vadd.f32 0.0, %v3839
      %3841 = vmatmul.f32.gmra.mxu0 %v3736
      %v3842 = vpop.f32.mrf.mxu0
      %v3843 = vadd.f32 0.0, %v3842
      %3844 = vmatmul.f32.gmra.mxu0 %v3739
      %v3845 = vpop.f32.mrf.mxu0
      %v3846 = vadd.f32 0.0, %v3845
      %3847 = vmatmul.f32.gmra.mxu0 %v3742
      %v3848 = vpop.f32.mrf.mxu0
      %v3849 = vadd.f32 0.0, %v3848
      %3850 = vmatmul.f32.gmra.mxu0 %v3745
      %v3851 = vpop.f32.mrf.mxu0
      %v3852 = vadd.f32 0.0, %v3851
      %3853 = vmatmul.f32.gmra.mxu0 %v3748
      %v3854 = vpop.f32.mrf.mxu0
      %v3855 = vadd.f32 0.0, %v3854
      %3856 = vmatmul.f32.gmra.mxu0 %v3751
      %v3857 = vpop.f32.mrf.mxu0
      %v3858 = vadd.f32 0.0, %v3857
      %3859 = vmatmul.f32.gmra.mxu0 %v3754
      %v3860 = vpop.f32.mrf.mxu0
      %v3861 = vadd.f32 0.0, %v3860
      %3862 = vmatmul.f32.gmra.mxu0 %v3757
      %v3863 = vpop.f32.mrf.mxu0
      %v3864 = vadd.f32 0.0, %v3863
      %3865 = vmatmul.f32.gmra.mxu0 %v3760
      %v3866 = vpop.f32.mrf.mxu0
      %v3867 = vadd.f32 0.0, %v3866
      %3868 = vmatmul.f32.gmra.mxu0 %v3763
      %v3869 = vpop.f32.mrf.mxu0
      %v3870 = vadd.f32 0.0, %v3869
      %3871 = vmatmul.f32.gmra.mxu0 %v3766
      %v3872 = vpop.f32.mrf.mxu0
      %v3873 = vadd.f32 0.0, %v3872
      %3874 = vmatmul.f32.gmra.mxu0 %v3769
      %v3875 = vpop.f32.mrf.mxu0
      %v3876 = vadd.f32 0.0, %v3875
      %3877 = vdwg.mxu0
      %v3878 = vadd.f32 %v3588, %v3789
      %v3879 = vadd.f32 %v3589, %v3792
      %v3880 = vadd.f32 %v3590, %v3795
      %v3881 = vadd.f32 %v3591, %v3798
      %v3882 = vadd.f32 %v3592, %v3801
      %v3883 = vadd.f32 %v3593, %v3804
      %v3884 = vadd.f32 %v3594, %v3807
      %v3885 = vadd.f32 %v3595, %v3810
      %v3886 = vadd.f32 %v3596, %v3813
      %v3887 = vadd.f32 %v3597, %v3816
      %v3888 = vadd.f32 %v3598, %v3819
      %v3889 = vadd.f32 %v3599, %v3822
      %v3890 = vadd.f32 %v3600, %v3825
      %v3891 = vadd.f32 %v3601, %v3828
      %v3892 = vadd.f32 %v3602, %v3831
      %v3893 = vadd.f32 %v3603, %v3834
      %v3894 = vadd.f32 %v3604, %v3837
      %v3895 = vadd.f32 %v3605, %v3840
      %v3896 = vadd.f32 %v3606, %v3843
      %v3897 = vadd.f32 %v3607, %v3846
      %v3898 = vadd.f32 %v3608, %v3849
      %v3899 = vadd.f32 %v3609, %v3852
      %v3900 = vadd.f32 %v3610, %v3855
      %v3901 = vadd.f32 %v3611, %v3858
      %v3902 = vadd.f32 %v3612, %v3861
      %v3903 = vadd.f32 %v3613, %v3864
      %v3904 = vadd.f32 %v3614, %v3867
      %v3905 = vadd.f32 %v3615, %v3870
      %v3906 = vadd.f32 %v3616, %v3873
      %v3907 = vadd.f32 %v3617, %v3876
      %s3908 = scalar_lea.vmem %s11, 480
      %v3909 = vld [vmem:[%s3908] sm:$0xff]
      %v3910 = vld [vmem:[%s3908 + $0x8] sm:$0xff]
      %v3911 = vld [vmem:[%s3908 + $0x10] sm:$0xff]
      %v3912 = vld [vmem:[%s3908 + $0x18] sm:$0xff]
      %v3913 = vld [vmem:[%s3908 + $0x20] sm:$0xff]
      %v3914 = vld [vmem:[%s3908 + $0x28] sm:$0xff]
      %v3915 = vld [vmem:[%s3908 + $0x30] sm:$0xff]
      %v3916 = vld [vmem:[%s3908 + $0x38] sm:$0xff]
      %v3917 = vld [vmem:[%s3908 + $0x40] sm:$0xff]
      %v3918 = vld [vmem:[%s3908 + $0x48] sm:$0xff]
      %v3919 = vld [vmem:[%s3908 + $0x50] sm:$0xff]
      %v3920 = vld [vmem:[%s3908 + $0x58] sm:$0xff]
      %v3921 = vld [vmem:[%s3908 + $0x60] sm:$0xff]
      %v3922 = vld [vmem:[%s3908 + $0x68] sm:$0xff]
      %v3923 = vld [vmem:[%s3908 + $0x70] sm:$0xff]
      %v3924 = vld [vmem:[%s3908 + $0x78] sm:$0xff]
      %v3925 = vld [vmem:[%s3908 + $0x80] sm:$0xff]
      %v3926 = vld [vmem:[%s3908 + $0x88] sm:$0xff]
      %v3927 = vld [vmem:[%s3908 + $0x90] sm:$0xff]
      %v3928 = vld [vmem:[%s3908 + $0x98] sm:$0xff]
      %v3929 = vld [vmem:[%s3908 + $0xa0] sm:$0xff]
      %v3930 = vld [vmem:[%s3908 + $0xa8] sm:$0xff]
      %v3931 = vld [vmem:[%s3908 + $0xb0] sm:$0xff]
      %v3932 = vld [vmem:[%s3908 + $0xb8] sm:$0xff]
      %v3933 = vld [vmem:[%s3908 + $0xc0] sm:$0xff]
      %v3934 = vld [vmem:[%s3908 + $0xc8] sm:$0xff]
      %v3935 = vld [vmem:[%s3908 + $0xd0] sm:$0xff]
      %v3936 = vld [vmem:[%s3908 + $0xd8] sm:$0xff]
      %v3937 = vld [vmem:[%s3908 + $0xe0] sm:$0xff]
      %v3938 = vld [vmem:[%s3908 + $0xe8] sm:$0xff]
      %3939 = vrot.lane.b32.xlu0 %v3383, 124
      %v3940 = vpop.permute.xlu0 %3939
      %3941 = vrot.lane.b32.xlu0 %v3384, 124
      %v3942 = vpop.permute.xlu0 %3941
      %3943 = vrot.lane.b32.xlu0 %v3385, 124
      %v3944 = vpop.permute.xlu0 %3943
      %3945 = vrot.lane.b32.xlu0 %v3386, 124
      %v3946 = vpop.permute.xlu0 %3945
      %3947 = vrot.lane.b32.xlu0 %v3387, 124
      %v3948 = vpop.permute.xlu0 %3947
      %3949 = vrot.lane.b32.xlu0 %v3388, 124
      %v3950 = vpop.permute.xlu0 %3949
      %3951 = vrot.lane.b32.xlu0 %v3389, 124
      %v3952 = vpop.permute.xlu0 %3951
      %3953 = vrot.lane.b32.xlu0 %v3390, 124
      %v3954 = vpop.permute.xlu0 %3953
      %v3964 = vsel %vm2975, %v3909, 0
      %v3967 = vsel %vm2975, %v3910, 0
      %v3970 = vsel %vm2975, %v3911, 0
      %v3973 = vsel %vm2975, %v3912, 0
      %v3976 = vsel %vm2975, %v3913, 0
      %v3979 = vsel %vm2975, %v3914, 0
      %v3982 = vsel %vm2975, %v3915, 0
      %v3985 = vsel %vm2975, %v3916, 0
      %v3988 = vsel %vm2975, %v3917, 0
      %v3991 = vsel %vm2975, %v3918, 0
      %v3994 = vsel %vm2975, %v3919, 0
      %v3997 = vsel %vm2975, %v3920, 0
      %v4000 = vsel %vm2975, %v3921, 0
      %v4003 = vsel %vm2975, %v3922, 0
      %v4006 = vsel %vm2975, %v3923, 0
      %v4009 = vsel %vm2975, %v3924, 0
      %v4012 = vsel %vm2975, %v3925, 0
      %v4015 = vsel %vm2975, %v3926, 0
      %v4018 = vsel %vm2975, %v3927, 0
      %v4021 = vsel %vm2975, %v3928, 0
      %v4024 = vsel %vm2975, %v3929, 0
      %v4027 = vsel %vm2975, %v3930, 0
      %v4030 = vsel %vm2975, %v3931, 0
      %v4033 = vsel %vm2975, %v3932, 0
      %v4036 = vsel %vm2975, %v3933, 0
      %v4039 = vsel %vm2975, %v3934, 0
      %v4042 = vsel %vm2975, %v3935, 0
      %v4045 = vsel %vm2975, %v3936, 0
      %v4048 = vsel %vm2975, %v3937, 0
      %v4051 = vsel %vm2975, %v3938, 0
      %4053 = vmatpush.msra.mxu0 0.0
      %4054 = vmatpush.msra.mxu0 0.0
      %4055 = vmatpush.msra.mxu0 0.0
      %4056 = vmatpush.msra.mxu0 0.0
      %4057 = vmatpush.msra.mxu0 0.0
      %4058 = vmatpush.msra.mxu0 0.0
      %4059 = vmatpush.msra.mxu0 0.0
      %4060 = vmatpush.msra.mxu0 0.0
      %4061 = vmatpush.msra.mxu0 %v3954
      %4062 = vmatpush.msra.mxu0 %v3952
      %4063 = vmatpush.msra.mxu0 %v3950
      %4064 = vmatpush.msra.mxu0 %v3948
      %4065 = vmatpush.msra.mxu0 %v3946
      %4066 = vmatpush.msra.mxu0 %v3944
      %4067 = vmatpush.msra.mxu0 %v3942
      %4068 = vmatpush.msra.mxu0 %v3940
      %4069 = vmatmul.f32.gmra.mxu0 %v3964
      %v4070 = vpop.f32.mrf.mxu0
      %v4071 = vadd.f32 0.0, %v4070
      %4072 = vmatmul.f32.gmra.mxu0 %v3967
      %v4073 = vpop.f32.mrf.mxu0
      %v4074 = vadd.f32 0.0, %v4073
      %4075 = vmatmul.f32.gmra.mxu0 %v3970
      %v4076 = vpop.f32.mrf.mxu0
      %v4077 = vadd.f32 0.0, %v4076
      %4078 = vmatmul.f32.gmra.mxu0 %v3973
      %v4079 = vpop.f32.mrf.mxu0
      %v4080 = vadd.f32 0.0, %v4079
      %4081 = vmatmul.f32.gmra.mxu0 %v3976
      %v4082 = vpop.f32.mrf.mxu0
      %v4083 = vadd.f32 0.0, %v4082
      %4084 = vmatmul.f32.gmra.mxu0 %v3979
      %v4085 = vpop.f32.mrf.mxu0
      %v4086 = vadd.f32 0.0, %v4085
      %4087 = vmatmul.f32.gmra.mxu0 %v3982
      %v4088 = vpop.f32.mrf.mxu0
      %v4089 = vadd.f32 0.0, %v4088
      %4090 = vmatmul.f32.gmra.mxu0 %v3985
      %v4091 = vpop.f32.mrf.mxu0
      %v4092 = vadd.f32 0.0, %v4091
      %4093 = vmatmul.f32.gmra.mxu0 %v3988
      %v4094 = vpop.f32.mrf.mxu0
      %v4095 = vadd.f32 0.0, %v4094
      %4096 = vmatmul.f32.gmra.mxu0 %v3991
      %v4097 = vpop.f32.mrf.mxu0
      %v4098 = vadd.f32 0.0, %v4097
      %4099 = vmatmul.f32.gmra.mxu0 %v3994
      %v4100 = vpop.f32.mrf.mxu0
      %v4101 = vadd.f32 0.0, %v4100
      %4102 = vmatmul.f32.gmra.mxu0 %v3997
      %v4103 = vpop.f32.mrf.mxu0
      %v4104 = vadd.f32 0.0, %v4103
      %4105 = vmatmul.f32.gmra.mxu0 %v4000
      %v4106 = vpop.f32.mrf.mxu0
      %v4107 = vadd.f32 0.0, %v4106
      %4108 = vmatmul.f32.gmra.mxu0 %v4003
      %v4109 = vpop.f32.mrf.mxu0
      %v4110 = vadd.f32 0.0, %v4109
      %4111 = vmatmul.f32.gmra.mxu0 %v4006
      %v4112 = vpop.f32.mrf.mxu0
      %v4113 = vadd.f32 0.0, %v4112
      %4114 = vmatmul.f32.gmra.mxu0 %v4009
      %v4115 = vpop.f32.mrf.mxu0
      %v4116 = vadd.f32 0.0, %v4115
      %4117 = vmatmul.f32.gmra.mxu0 %v4012
      %v4118 = vpop.f32.mrf.mxu0
      %v4119 = vadd.f32 0.0, %v4118
      %4120 = vmatmul.f32.gmra.mxu0 %v4015
      %v4121 = vpop.f32.mrf.mxu0
      %v4122 = vadd.f32 0.0, %v4121
      %4123 = vmatmul.f32.gmra.mxu0 %v4018
      %v4124 = vpop.f32.mrf.mxu0
      %v4125 = vadd.f32 0.0, %v4124
      %4126 = vmatmul.f32.gmra.mxu0 %v4021
      %v4127 = vpop.f32.mrf.mxu0
      %v4128 = vadd.f32 0.0, %v4127
      %4129 = vmatmul.f32.gmra.mxu0 %v4024
      %v4130 = vpop.f32.mrf.mxu0
      %v4131 = vadd.f32 0.0, %v4130
      %4132 = vmatmul.f32.gmra.mxu0 %v4027
      %v4133 = vpop.f32.mrf.mxu0
      %v4134 = vadd.f32 0.0, %v4133
      %4135 = vmatmul.f32.gmra.mxu0 %v4030
      %v4136 = vpop.f32.mrf.mxu0
      %v4137 = vadd.f32 0.0, %v4136
      %4138 = vmatmul.f32.gmra.mxu0 %v4033
      %v4139 = vpop.f32.mrf.mxu0
      %v4140 = vadd.f32 0.0, %v4139
      %4141 = vmatmul.f32.gmra.mxu0 %v4036
      %v4142 = vpop.f32.mrf.mxu0
      %v4143 = vadd.f32 0.0, %v4142
      %4144 = vmatmul.f32.gmra.mxu0 %v4039
      %v4145 = vpop.f32.mrf.mxu0
      %v4146 = vadd.f32 0.0, %v4145
      %4147 = vmatmul.f32.gmra.mxu0 %v4042
      %v4148 = vpop.f32.mrf.mxu0
      %v4149 = vadd.f32 0.0, %v4148
      %4150 = vmatmul.f32.gmra.mxu0 %v4045
      %v4151 = vpop.f32.mrf.mxu0
      %v4152 = vadd.f32 0.0, %v4151
      %4153 = vmatmul.f32.gmra.mxu0 %v4048
      %v4154 = vpop.f32.mrf.mxu0
      %v4155 = vadd.f32 0.0, %v4154
      %4156 = vmatmul.f32.gmra.mxu0 %v4051
      %v4157 = vpop.f32.mrf.mxu0
      %v4158 = vadd.f32 0.0, %v4157
      %4159 = vdwg.mxu0
      %v4160 = vadd.f32 %v3878, %v4071
      %v4161 = vadd.f32 %v3879, %v4074
      %v4162 = vadd.f32 %v3880, %v4077
      %v4163 = vadd.f32 %v3881, %v4080
      %v4164 = vadd.f32 %v3882, %v4083
      %v4165 = vadd.f32 %v3883, %v4086
      %v4166 = vadd.f32 %v3884, %v4089
      %v4167 = vadd.f32 %v3885, %v4092
      %v4168 = vadd.f32 %v3886, %v4095
      %v4169 = vadd.f32 %v3887, %v4098
      %v4170 = vadd.f32 %v3888, %v4101
      %v4171 = vadd.f32 %v3889, %v4104
      %v4172 = vadd.f32 %v3890, %v4107
      %v4173 = vadd.f32 %v3891, %v4110
      %v4174 = vadd.f32 %v3892, %v4113
      %v4175 = vadd.f32 %v3893, %v4116
      %v4176 = vadd.f32 %v3894, %v4119
      %v4177 = vadd.f32 %v3895, %v4122
      %v4178 = vadd.f32 %v3896, %v4125
      %v4179 = vadd.f32 %v3897, %v4128
      %v4180 = vadd.f32 %v3898, %v4131
      %v4181 = vadd.f32 %v3899, %v4134
      %v4182 = vadd.f32 %v3900, %v4137
      %v4183 = vadd.f32 %v3901, %v4140
      %v4184 = vadd.f32 %v3902, %v4143
      %v4185 = vadd.f32 %v3903, %v4146
      %v4186 = vadd.f32 %v3904, %v4149
      %v4187 = vadd.f32 %v3905, %v4152
      %v4188 = vadd.f32 %v3906, %v4155
      %v4189 = vadd.f32 %v3907, %v4158
      %s4190 = scalar_lea.vmem %s11, 720
      %v4191 = vld [vmem:[%s4190] sm:$0xff]
      %v4192 = vld [vmem:[%s4190 + $0x8] sm:$0xff]
      %v4193 = vld [vmem:[%s4190 + $0x10] sm:$0xff]
      %v4194 = vld [vmem:[%s4190 + $0x18] sm:$0xff]
      %v4195 = vld [vmem:[%s4190 + $0x20] sm:$0xff]
      %v4196 = vld [vmem:[%s4190 + $0x28] sm:$0xff]
      %v4197 = vld [vmem:[%s4190 + $0x30] sm:$0xff]
      %v4198 = vld [vmem:[%s4190 + $0x38] sm:$0xff]
      %v4199 = vld [vmem:[%s4190 + $0x40] sm:$0xff]
      %v4200 = vld [vmem:[%s4190 + $0x48] sm:$0xff]
      %v4201 = vld [vmem:[%s4190 + $0x50] sm:$0xff]
      %v4202 = vld [vmem:[%s4190 + $0x58] sm:$0xff]
      %v4203 = vld [vmem:[%s4190 + $0x60] sm:$0xff]
      %v4204 = vld [vmem:[%s4190 + $0x68] sm:$0xff]
      %v4205 = vld [vmem:[%s4190 + $0x70] sm:$0xff]
      %v4206 = vld [vmem:[%s4190 + $0x78] sm:$0xff]
      %v4207 = vld [vmem:[%s4190 + $0x80] sm:$0xff]
      %v4208 = vld [vmem:[%s4190 + $0x88] sm:$0xff]
      %v4209 = vld [vmem:[%s4190 + $0x90] sm:$0xff]
      %v4210 = vld [vmem:[%s4190 + $0x98] sm:$0xff]
      %v4211 = vld [vmem:[%s4190 + $0xa0] sm:$0xff]
      %v4212 = vld [vmem:[%s4190 + $0xa8] sm:$0xff]
      %v4213 = vld [vmem:[%s4190 + $0xb0] sm:$0xff]
      %v4214 = vld [vmem:[%s4190 + $0xb8] sm:$0xff]
      %v4215 = vld [vmem:[%s4190 + $0xc0] sm:$0xff]
      %v4216 = vld [vmem:[%s4190 + $0xc8] sm:$0xff]
      %v4217 = vld [vmem:[%s4190 + $0xd0] sm:$0xff]
      %v4218 = vld [vmem:[%s4190 + $0xd8] sm:$0xff]
      %v4219 = vld [vmem:[%s4190 + $0xe0] sm:$0xff]
      %v4220 = vld [vmem:[%s4190 + $0xe8] sm:$0xff]
      %4221 = vrot.lane.b32.xlu0 %v3383, 122
      %v4222 = vpop.permute.xlu0 %4221
      %4223 = vrot.lane.b32.xlu0 %v3384, 122
      %v4224 = vpop.permute.xlu0 %4223
      %4225 = vrot.lane.b32.xlu0 %v3385, 122
      %v4226 = vpop.permute.xlu0 %4225
      %4227 = vrot.lane.b32.xlu0 %v3386, 122
      %v4228 = vpop.permute.xlu0 %4227
      %4229 = vrot.lane.b32.xlu0 %v3387, 122
      %v4230 = vpop.permute.xlu0 %4229
      %4231 = vrot.lane.b32.xlu0 %v3388, 122
      %v4232 = vpop.permute.xlu0 %4231
      %4233 = vrot.lane.b32.xlu0 %v3389, 122
      %v4234 = vpop.permute.xlu0 %4233
      %4235 = vrot.lane.b32.xlu0 %v3390, 122
      %v4236 = vpop.permute.xlu0 %4235
      %v4246 = vsel %vm2975, %v4191, 0
      %v4249 = vsel %vm2975, %v4192, 0
      %v4252 = vsel %vm2975, %v4193, 0
      %v4255 = vsel %vm2975, %v4194, 0
      %v4258 = vsel %vm2975, %v4195, 0
      %v4261 = vsel %vm2975, %v4196, 0
      %v4264 = vsel %vm2975, %v4197, 0
      %v4267 = vsel %vm2975, %v4198, 0
      %v4270 = vsel %vm2975, %v4199, 0
      %v4273 = vsel %vm2975, %v4200, 0
      %v4276 = vsel %vm2975, %v4201, 0
      %v4279 = vsel %vm2975, %v4202, 0
      %v4282 = vsel %vm2975, %v4203, 0
      %v4285 = vsel %vm2975, %v4204, 0
      %v4288 = vsel %vm2975, %v4205, 0
      %v4291 = vsel %vm2975, %v4206, 0
      %v4294 = vsel %vm2975, %v4207, 0
      %v4297 = vsel %vm2975, %v4208, 0
      %v4300 = vsel %vm2975, %v4209, 0
      %v4303 = vsel %vm2975, %v4210, 0
      %v4306 = vsel %vm2975, %v4211, 0
      %v4309 = vsel %vm2975, %v4212, 0
      %v4312 = vsel %vm2975, %v4213, 0
      %v4315 = vsel %vm2975, %v4214, 0
      %v4318 = vsel %vm2975, %v4215, 0
      %v4321 = vsel %vm2975, %v4216, 0
      %v4324 = vsel %vm2975, %v4217, 0
      %v4327 = vsel %vm2975, %v4218, 0
      %v4330 = vsel %vm2975, %v4219, 0
      %v4333 = vsel %vm2975, %v4220, 0
      %4335 = vmatpush.msra.mxu0 0.0
      %4336 = vmatpush.msra.mxu0 0.0
      %4337 = vmatpush.msra.mxu0 0.0
      %4338 = vmatpush.msra.mxu0 0.0
      %4339 = vmatpush.msra.mxu0 0.0
      %4340 = vmatpush.msra.mxu0 0.0
      %4341 = vmatpush.msra.mxu0 0.0
      %4342 = vmatpush.msra.mxu0 0.0
      %4343 = vmatpush.msra.mxu0 %v4236
      %4344 = vmatpush.msra.mxu0 %v4234
      %4345 = vmatpush.msra.mxu0 %v4232
      %4346 = vmatpush.msra.mxu0 %v4230
      %4347 = vmatpush.msra.mxu0 %v4228
      %4348 = vmatpush.msra.mxu0 %v4226
      %4349 = vmatpush.msra.mxu0 %v4224
      %4350 = vmatpush.msra.mxu0 %v4222
      %4351 = vmatmul.f32.gmra.mxu0 %v4246
      %v4352 = vpop.f32.mrf.mxu0
      %v4353 = vadd.f32 0.0, %v4352
      %4354 = vmatmul.f32.gmra.mxu0 %v4249
      %v4355 = vpop.f32.mrf.mxu0
      %v4356 = vadd.f32 0.0, %v4355
      %4357 = vmatmul.f32.gmra.mxu0 %v4252
      %v4358 = vpop.f32.mrf.mxu0
      %v4359 = vadd.f32 0.0, %v4358
      %4360 = vmatmul.f32.gmra.mxu0 %v4255
      %v4361 = vpop.f32.mrf.mxu0
      %v4362 = vadd.f32 0.0, %v4361
      %4363 = vmatmul.f32.gmra.mxu0 %v4258
      %v4364 = vpop.f32.mrf.mxu0
      %v4365 = vadd.f32 0.0, %v4364
      %4366 = vmatmul.f32.gmra.mxu0 %v4261
      %v4367 = vpop.f32.mrf.mxu0
      %v4368 = vadd.f32 0.0, %v4367
      %4369 = vmatmul.f32.gmra.mxu0 %v4264
      %v4370 = vpop.f32.mrf.mxu0
      %v4371 = vadd.f32 0.0, %v4370
      %4372 = vmatmul.f32.gmra.mxu0 %v4267
      %v4373 = vpop.f32.mrf.mxu0
      %v4374 = vadd.f32 0.0, %v4373
      %4375 = vmatmul.f32.gmra.mxu0 %v4270
      %v4376 = vpop.f32.mrf.mxu0
      %v4377 = vadd.f32 0.0, %v4376
      %4378 = vmatmul.f32.gmra.mxu0 %v4273
      %v4379 = vpop.f32.mrf.mxu0
      %v4380 = vadd.f32 0.0, %v4379
      %4381 = vmatmul.f32.gmra.mxu0 %v4276
      %v4382 = vpop.f32.mrf.mxu0
      %v4383 = vadd.f32 0.0, %v4382
      %4384 = vmatmul.f32.gmra.mxu0 %v4279
      %v4385 = vpop.f32.mrf.mxu0
      %v4386 = vadd.f32 0.0, %v4385
      %4387 = vmatmul.f32.gmra.mxu0 %v4282
      %v4388 = vpop.f32.mrf.mxu0
      %v4389 = vadd.f32 0.0, %v4388
      %4390 = vmatmul.f32.gmra.mxu0 %v4285
      %v4391 = vpop.f32.mrf.mxu0
      %v4392 = vadd.f32 0.0, %v4391
      %4393 = vmatmul.f32.gmra.mxu0 %v4288
      %v4394 = vpop.f32.mrf.mxu0
      %v4395 = vadd.f32 0.0, %v4394
      %4396 = vmatmul.f32.gmra.mxu0 %v4291
      %v4397 = vpop.f32.mrf.mxu0
      %v4398 = vadd.f32 0.0, %v4397
      %4399 = vmatmul.f32.gmra.mxu0 %v4294
      %v4400 = vpop.f32.mrf.mxu0
      %v4401 = vadd.f32 0.0, %v4400
      %4402 = vmatmul.f32.gmra.mxu0 %v4297
      %v4403 = vpop.f32.mrf.mxu0
      %v4404 = vadd.f32 0.0, %v4403
      %4405 = vmatmul.f32.gmra.mxu0 %v4300
      %v4406 = vpop.f32.mrf.mxu0
      %v4407 = vadd.f32 0.0, %v4406
      %4408 = vmatmul.f32.gmra.mxu0 %v4303
      %v4409 = vpop.f32.mrf.mxu0
      %v4410 = vadd.f32 0.0, %v4409
      %4411 = vmatmul.f32.gmra.mxu0 %v4306
      %v4412 = vpop.f32.mrf.mxu0
      %v4413 = vadd.f32 0.0, %v4412
      %4414 = vmatmul.f32.gmra.mxu0 %v4309
      %v4415 = vpop.f32.mrf.mxu0
      %v4416 = vadd.f32 0.0, %v4415
      %4417 = vmatmul.f32.gmra.mxu0 %v4312
      %v4418 = vpop.f32.mrf.mxu0
      %v4419 = vadd.f32 0.0, %v4418
      %4420 = vmatmul.f32.gmra.mxu0 %v4315
      %v4421 = vpop.f32.mrf.mxu0
      %v4422 = vadd.f32 0.0, %v4421
      %4423 = vmatmul.f32.gmra.mxu0 %v4318
      %v4424 = vpop.f32.mrf.mxu0
      %v4425 = vadd.f32 0.0, %v4424
      %4426 = vmatmul.f32.gmra.mxu0 %v4321
      %v4427 = vpop.f32.mrf.mxu0
      %v4428 = vadd.f32 0.0, %v4427
      %4429 = vmatmul.f32.gmra.mxu0 %v4324
      %v4430 = vpop.f32.mrf.mxu0
      %v4431 = vadd.f32 0.0, %v4430
      %4432 = vmatmul.f32.gmra.mxu0 %v4327
      %v4433 = vpop.f32.mrf.mxu0
      %v4434 = vadd.f32 0.0, %v4433
      %4435 = vmatmul.f32.gmra.mxu0 %v4330
      %v4436 = vpop.f32.mrf.mxu0
      %v4437 = vadd.f32 0.0, %v4436
      %4438 = vmatmul.f32.gmra.mxu0 %v4333
      %v4439 = vpop.f32.mrf.mxu0
      %v4440 = vadd.f32 0.0, %v4439
      %4441 = vdwg.mxu0
      %v4442 = vadd.f32 %v4160, %v4353
      %v4443 = vadd.f32 %v4161, %v4356
      %v4444 = vadd.f32 %v4162, %v4359
      %v4445 = vadd.f32 %v4163, %v4362
      %v4446 = vadd.f32 %v4164, %v4365
      %v4447 = vadd.f32 %v4165, %v4368
      %v4448 = vadd.f32 %v4166, %v4371
      %v4449 = vadd.f32 %v4167, %v4374
      %v4450 = vadd.f32 %v4168, %v4377
      %v4451 = vadd.f32 %v4169, %v4380
      %v4452 = vadd.f32 %v4170, %v4383
      %v4453 = vadd.f32 %v4171, %v4386
      %v4454 = vadd.f32 %v4172, %v4389
      %v4455 = vadd.f32 %v4173, %v4392
      %v4456 = vadd.f32 %v4174, %v4395
      %v4457 = vadd.f32 %v4175, %v4398
      %v4458 = vadd.f32 %v4176, %v4401
      %v4459 = vadd.f32 %v4177, %v4404
      %v4460 = vadd.f32 %v4178, %v4407
      %v4461 = vadd.f32 %v4179, %v4410
      %v4462 = vadd.f32 %v4180, %v4413
      %v4463 = vadd.f32 %v4181, %v4416
      %v4464 = vadd.f32 %v4182, %v4419
      %v4465 = vadd.f32 %v4183, %v4422
      %v4466 = vadd.f32 %v4184, %v4425
      %v4467 = vadd.f32 %v4185, %v4428
      %v4468 = vadd.f32 %v4186, %v4431
      %v4469 = vadd.f32 %v4187, %v4434
      %v4470 = vadd.f32 %v4188, %v4437
      %v4471 = vadd.f32 %v4189, %v4440
      %v4472 = vmax.f32 %v4442, 0.0
      %v4473 = vmax.f32 %v4443, 0.0
      %v4474 = vmax.f32 %v4444, 0.0
      %v4475 = vmax.f32 %v4445, 0.0
      %v4476 = vmax.f32 %v4446, 0.0
      %v4477 = vmax.f32 %v4447, 0.0
      %v4478 = vmax.f32 %v4448, 0.0
      %v4479 = vmax.f32 %v4449, 0.0
      %v4480 = vmax.f32 %v4450, 0.0
      %v4481 = vmax.f32 %v4451, 0.0
      %v4482 = vmax.f32 %v4452, 0.0
      %v4483 = vmax.f32 %v4453, 0.0
      %v4484 = vmax.f32 %v4454, 0.0
      %v4485 = vmax.f32 %v4455, 0.0
      %v4486 = vmax.f32 %v4456, 0.0
      %v4487 = vmax.f32 %v4457, 0.0
      %v4488 = vmax.f32 %v4458, 0.0
      %v4489 = vmax.f32 %v4459, 0.0
      %v4490 = vmax.f32 %v4460, 0.0
      %v4491 = vmax.f32 %v4461, 0.0
      %v4492 = vmax.f32 %v4462, 0.0
      %v4493 = vmax.f32 %v4463, 0.0
      %v4494 = vmax.f32 %v4464, 0.0
      %v4495 = vmax.f32 %v4465, 0.0
      %v4496 = vmax.f32 %v4466, 0.0
      %v4497 = vmax.f32 %v4467, 0.0
      %v4498 = vmax.f32 %v4468, 0.0
      %v4499 = vmax.f32 %v4469, 0.0
      %v4500 = vmax.f32 %v4470, 0.0
      %v4501 = vmax.f32 %v4471, 0.0
      %v4502 = vld [vmem:[%s14] sm:$0xff]
      %v4503 = vld [vmem:[%s14 + $0x8] sm:$0xff]
      %v4504 = vld [vmem:[%s14 + $0x10] sm:$0xff]
      %v4505 = vld [vmem:[%s14 + $0x18] sm:$0xff]
      %v4506 = vld [vmem:[%s14 + $0x20] sm:$0xff]
      %v4507 = vld [vmem:[%s14 + $0x28] sm:$0xff]
      %v4508 = vld [vmem:[%s14 + $0x30] sm:$0xff]
      %v4509 = vld [vmem:[%s14 + $0x38] sm:$0xff]
      %v4510 = vld [vmem:[%s14 + $0x40] sm:$0xff]
      %v4511 = vld [vmem:[%s14 + $0x48] sm:$0xff]
      %v4512 = vld [vmem:[%s14 + $0x50] sm:$0xff]
      %v4513 = vld [vmem:[%s14 + $0x58] sm:$0xff]
      %v4514 = vld [vmem:[%s14 + $0x60] sm:$0xff]
      %v4515 = vld [vmem:[%s14 + $0x68] sm:$0xff]
      %v4516 = vld [vmem:[%s14 + $0x70] sm:$0xff]
      %v4517 = vld [vmem:[%s14 + $0x78] sm:$0xff]
      %v4518 = vld [vmem:[%s14 + $0x80] sm:$0xff]
      %v4519 = vld [vmem:[%s14 + $0x88] sm:$0xff]
      %v4520 = vld [vmem:[%s14 + $0x90] sm:$0xff]
      %v4521 = vld [vmem:[%s14 + $0x98] sm:$0xff]
      %v4522 = vld [vmem:[%s14 + $0xa0] sm:$0xff]
      %v4523 = vld [vmem:[%s14 + $0xa8] sm:$0xff]
      %v4524 = vld [vmem:[%s14 + $0xb0] sm:$0xff]
      %v4525 = vld [vmem:[%s14 + $0xb8] sm:$0xff]
      %v4526 = vld [vmem:[%s14 + $0xc0] sm:$0xff]
      %v4527 = vld [vmem:[%s14 + $0xc8] sm:$0xff]
      %v4528 = vld [vmem:[%s14 + $0xd0] sm:$0xff]
      %v4529 = vld [vmem:[%s14 + $0xd8] sm:$0xff]
      %v4530 = vld [vmem:[%s14 + $0xe0] sm:$0xff]
      %v4531 = vld [vmem:[%s14 + $0xe8] sm:$0xff]
      %v4532 = vld [vmem:[%s15] sm:$0xff]
      %v4533 = vld [vmem:[%s15 + $0x8] sm:$0xff]
      %v4534 = vld [vmem:[%s15 + $0x10] sm:$0xff]
      %v4535 = vld [vmem:[%s15 + $0x18] sm:$0xff]
      %v4536 = vld [vmem:[%s15 + $0x20] sm:$0xff]
      %v4537 = vld [vmem:[%s15 + $0x28] sm:$0xff]
      %v4538 = vld [vmem:[%s15 + $0x30] sm:$0xff]
      %v4539 = vld [vmem:[%s15 + $0x38] sm:$0xff]
      %v4540 = vld [vmem:[%s15 + $0x40] sm:$0xff]
      %v4541 = vld [vmem:[%s15 + $0x48] sm:$0xff]
      %v4542 = vld [vmem:[%s15 + $0x50] sm:$0xff]
      %v4543 = vld [vmem:[%s15 + $0x58] sm:$0xff]
      %v4544 = vld [vmem:[%s15 + $0x60] sm:$0xff]
      %v4545 = vld [vmem:[%s15 + $0x68] sm:$0xff]
      %v4546 = vld [vmem:[%s15 + $0x70] sm:$0xff]
      %4548 = vset.pattern.permute.xlu0 0
      %4549 = vperm.xlu0 %4548, %v4532
      %v4550 = vpop.permute.xlu0 %4549
      %4553 = vset.pattern.permute.xlu0 0
      %4554 = vperm.xlu0 %4553, %v4533
      %v4555 = vpop.permute.xlu0 %4554
      %4558 = vset.pattern.permute.xlu0 0
      %4559 = vperm.xlu0 %4558, %v4534
      %v4560 = vpop.permute.xlu0 %4559
      %4563 = vset.pattern.permute.xlu0 0
      %4564 = vperm.xlu0 %4563, %v4535
      %v4565 = vpop.permute.xlu0 %4564
      %4568 = vset.pattern.permute.xlu0 0
      %4569 = vperm.xlu0 %4568, %v4536
      %v4570 = vpop.permute.xlu0 %4569
      %4573 = vset.pattern.permute.xlu0 0
      %4574 = vperm.xlu0 %4573, %v4537
      %v4575 = vpop.permute.xlu0 %4574
      %4578 = vset.pattern.permute.xlu0 0
      %4579 = vperm.xlu0 %4578, %v4538
      %v4580 = vpop.permute.xlu0 %4579
      %4583 = vset.pattern.permute.xlu0 0
      %4584 = vperm.xlu0 %4583, %v4539
      %v4585 = vpop.permute.xlu0 %4584
      %4588 = vset.pattern.permute.xlu0 0
      %4589 = vperm.xlu0 %4588, %v4540
      %v4590 = vpop.permute.xlu0 %4589
      %4593 = vset.pattern.permute.xlu0 0
      %4594 = vperm.xlu0 %4593, %v4541
      %v4595 = vpop.permute.xlu0 %4594
      %4598 = vset.pattern.permute.xlu0 0
      %4599 = vperm.xlu0 %4598, %v4542
      %v4600 = vpop.permute.xlu0 %4599
      %4603 = vset.pattern.permute.xlu0 0
      %4604 = vperm.xlu0 %4603, %v4543
      %v4605 = vpop.permute.xlu0 %4604
      %4608 = vset.pattern.permute.xlu0 0
      %4609 = vperm.xlu0 %4608, %v4544
      %v4610 = vpop.permute.xlu0 %4609
      %4613 = vset.pattern.permute.xlu0 0
      %4614 = vperm.xlu0 %4613, %v4545
      %v4615 = vpop.permute.xlu0 %4614
      %4618 = vset.pattern.permute.xlu0 0
      %4619 = vperm.xlu0 %4618, %v4546
      %v4620 = vpop.permute.xlu0 %4619
      %v4623 = vsel %vm2017, %v4503, 0
      %v4626 = vsel %vm2017, %v4505, 0
      %v4629 = vsel %vm2017, %v4507, 0
      %v4632 = vsel %vm2017, %v4509, 0
      %v4635 = vsel %vm2017, %v4511, 0
      %v4638 = vsel %vm2017, %v4513, 0
      %v4641 = vsel %vm2017, %v4515, 0
      %v4644 = vsel %vm2017, %v4517, 0
      %v4647 = vsel %vm2017, %v4519, 0
      %v4650 = vsel %vm2017, %v4521, 0
      %v4653 = vsel %vm2017, %v4523, 0
      %v4656 = vsel %vm2017, %v4525, 0
      %v4659 = vsel %vm2017, %v4527, 0
      %v4662 = vsel %vm2017, %v4529, 0
      %v4665 = vsel %vm2017, %v4531, 0
      %4667 = vmatpush.msra.mxu0 %v4487
      %4668 = vmatpush.msra.mxu0 %v4486
      %4669 = vmatpush.msra.mxu0 %v4485
      %4670 = vmatpush.msra.mxu0 %v4484
      %4671 = vmatpush.msra.mxu0 %v4483
      %4672 = vmatpush.msra.mxu0 %v4482
      %4673 = vmatpush.msra.mxu0 %v4481
      %4674 = vmatpush.msra.mxu0 %v4480
      %4675 = vmatpush.msra.mxu0 %v4479
      %4676 = vmatpush.msra.mxu0 %v4478
      %4677 = vmatpush.msra.mxu0 %v4477
      %4678 = vmatpush.msra.mxu0 %v4476
      %4679 = vmatpush.msra.mxu0 %v4475
      %4680 = vmatpush.msra.mxu0 %v4474
      %4681 = vmatpush.msra.mxu0 %v4473
      %4682 = vmatpush.msra.mxu0 %v4472
      %4683 = vmatmul.f32.gmra.mxu0 %v4502
      %v4684 = vpop.f32.mrf.mxu0
      %v4685 = vadd.f32 %v4550, %v4684
      %4686 = vmatmul.f32.gmra.mxu0 %v4504
      %v4687 = vpop.f32.mrf.mxu0
      %v4688 = vadd.f32 %v4555, %v4687
      %4689 = vmatmul.f32.gmra.mxu0 %v4506
      %v4690 = vpop.f32.mrf.mxu0
      %v4691 = vadd.f32 %v4560, %v4690
      %4692 = vmatmul.f32.gmra.mxu0 %v4508
      %v4693 = vpop.f32.mrf.mxu0
      %v4694 = vadd.f32 %v4565, %v4693
      %4695 = vmatmul.f32.gmra.mxu0 %v4510
      %v4696 = vpop.f32.mrf.mxu0
      %v4697 = vadd.f32 %v4570, %v4696
      %4698 = vmatmul.f32.gmra.mxu0 %v4512
      %v4699 = vpop.f32.mrf.mxu0
      %v4700 = vadd.f32 %v4575, %v4699
      %4701 = vmatmul.f32.gmra.mxu0 %v4514
      %v4702 = vpop.f32.mrf.mxu0
      %v4703 = vadd.f32 %v4580, %v4702
      %4704 = vmatmul.f32.gmra.mxu0 %v4516
      %v4705 = vpop.f32.mrf.mxu0
      %v4706 = vadd.f32 %v4585, %v4705
      %4707 = vmatmul.f32.gmra.mxu0 %v4518
      %v4708 = vpop.f32.mrf.mxu0
      %v4709 = vadd.f32 %v4590, %v4708
      %4710 = vmatmul.f32.gmra.mxu0 %v4520
      %v4711 = vpop.f32.mrf.mxu0
      %v4712 = vadd.f32 %v4595, %v4711
      %4713 = vmatmul.f32.gmra.mxu0 %v4522
      %v4714 = vpop.f32.mrf.mxu0
      %v4715 = vadd.f32 %v4600, %v4714
      %4716 = vmatmul.f32.gmra.mxu0 %v4524
      %v4717 = vpop.f32.mrf.mxu0
      %v4718 = vadd.f32 %v4605, %v4717
      %4719 = vmatmul.f32.gmra.mxu0 %v4526
      %v4720 = vpop.f32.mrf.mxu0
      %v4721 = vadd.f32 %v4610, %v4720
      %4722 = vmatmul.f32.gmra.mxu0 %v4528
      %v4723 = vpop.f32.mrf.mxu0
      %v4724 = vadd.f32 %v4615, %v4723
      %4725 = vmatmul.f32.gmra.mxu0 %v4530
      %v4726 = vpop.f32.mrf.mxu0
      %v4727 = vadd.f32 %v4620, %v4726
      %4728 = vdwg.mxu0
      %4729 = vmatpush.msra.mxu0 0.0
      %4730 = vmatpush.msra.mxu0 0.0
      %4731 = vmatpush.msra.mxu0 %v4501
      %4732 = vmatpush.msra.mxu0 %v4500
      %4733 = vmatpush.msra.mxu0 %v4499
      %4734 = vmatpush.msra.mxu0 %v4498
      %4735 = vmatpush.msra.mxu0 %v4497
      %4736 = vmatpush.msra.mxu0 %v4496
      %4737 = vmatpush.msra.mxu0 %v4495
      %4738 = vmatpush.msra.mxu0 %v4494
      %4739 = vmatpush.msra.mxu0 %v4493
      %4740 = vmatpush.msra.mxu0 %v4492
      %4741 = vmatpush.msra.mxu0 %v4491
      %4742 = vmatpush.msra.mxu0 %v4490
      %4743 = vmatpush.msra.mxu0 %v4489
      %4744 = vmatpush.msra.mxu0 %v4488
      %4745 = vmatmul.f32.gmra.mxu0 %v4623
      %v4746 = vpop.f32.mrf.mxu0
      %v4747 = vadd.f32 %v4685, %v4746
      %4748 = vmatmul.f32.gmra.mxu0 %v4626
      %v4749 = vpop.f32.mrf.mxu0
      %v4750 = vadd.f32 %v4688, %v4749
      %4751 = vmatmul.f32.gmra.mxu0 %v4629
      %v4752 = vpop.f32.mrf.mxu0
      %v4753 = vadd.f32 %v4691, %v4752
      %4754 = vmatmul.f32.gmra.mxu0 %v4632
      %v4755 = vpop.f32.mrf.mxu0
      %v4756 = vadd.f32 %v4694, %v4755
      %4757 = vmatmul.f32.gmra.mxu0 %v4635
      %v4758 = vpop.f32.mrf.mxu0
      %v4759 = vadd.f32 %v4697, %v4758
      %4760 = vmatmul.f32.gmra.mxu0 %v4638
      %v4761 = vpop.f32.mrf.mxu0
      %v4762 = vadd.f32 %v4700, %v4761
      %4763 = vmatmul.f32.gmra.mxu0 %v4641
      %v4764 = vpop.f32.mrf.mxu0
      %v4765 = vadd.f32 %v4703, %v4764
      %4766 = vmatmul.f32.gmra.mxu0 %v4644
      %v4767 = vpop.f32.mrf.mxu0
      %v4768 = vadd.f32 %v4706, %v4767
      %4769 = vmatmul.f32.gmra.mxu0 %v4647
      %v4770 = vpop.f32.mrf.mxu0
      %v4771 = vadd.f32 %v4709, %v4770
      %4772 = vmatmul.f32.gmra.mxu0 %v4650
      %v4773 = vpop.f32.mrf.mxu0
      %v4774 = vadd.f32 %v4712, %v4773
      %4775 = vmatmul.f32.gmra.mxu0 %v4653
      %v4776 = vpop.f32.mrf.mxu0
      %v4777 = vadd.f32 %v4715, %v4776
      %4778 = vmatmul.f32.gmra.mxu0 %v4656
      %v4779 = vpop.f32.mrf.mxu0
      %v4780 = vadd.f32 %v4718, %v4779
      %4781 = vmatmul.f32.gmra.mxu0 %v4659
      %v4782 = vpop.f32.mrf.mxu0
      %v4783 = vadd.f32 %v4721, %v4782
      %4784 = vmatmul.f32.gmra.mxu0 %v4662
      %v4785 = vpop.f32.mrf.mxu0
      %v4786 = vadd.f32 %v4724, %v4785
      %4787 = vmatmul.f32.gmra.mxu0 %v4665
      %v4788 = vpop.f32.mrf.mxu0
      %v4789 = vadd.f32 %v4727, %v4788
      %4790 = vdwg.mxu0
      %v4791 = vmax.f32 %v4747, 0.0
      %v4792 = vmax.f32 %v4750, 0.0
      %v4793 = vmax.f32 %v4753, 0.0
      %v4794 = vmax.f32 %v4756, 0.0
      %v4795 = vmax.f32 %v4759, 0.0
      %v4796 = vmax.f32 %v4762, 0.0
      %v4797 = vmax.f32 %v4765, 0.0
      %v4798 = vmax.f32 %v4768, 0.0
      %v4799 = vmax.f32 %v4771, 0.0
      %v4800 = vmax.f32 %v4774, 0.0
      %v4801 = vmax.f32 %v4777, 0.0
      %v4802 = vmax.f32 %v4780, 0.0
      %v4803 = vmax.f32 %v4783, 0.0
      %v4804 = vmax.f32 %v4786, 0.0
      %v4805 = vmax.f32 %v4789, 0.0
      %v4806 = vld [vmem:[%s16] sm:$0xff]
      %v4807 = vld [vmem:[%s16 + $0x8] sm:$0xff]
      %v4808 = vld [vmem:[%s16 + $0x10] sm:$0xff]
      %v4809 = vld [vmem:[%s16 + $0x18] sm:$0xff]
      %v4810 = vld [vmem:[%s16 + $0x20] sm:$0xff]
      %v4811 = vld [vmem:[%s16 + $0x28] sm:$0xff]
      %v4812 = vld [vmem:[%s16 + $0x30] sm:$0xff]
      %v4813 = vld [vmem:[%s16 + $0x38] sm:$0xf]
      %v4814 = vld [vmem:[%s17] sm:$0xff]
      %v4815 = vld [vmem:[%s17 + $0x8] sm:$0xff]
      %v4816 = vld [vmem:[%s17 + $0x10] sm:$0xff]
      %v4817 = vld [vmem:[%s17 + $0x18] sm:$0xff]
      %v4818 = vld [vmem:[%s17 + $0x20] sm:$0xff]
      %v4819 = vld [vmem:[%s17 + $0x28] sm:$0xff]
      %v4820 = vld [vmem:[%s17 + $0x30] sm:$0xff]
      %v4821 = vld [vmem:[%s17 + $0x38] sm:$0xf]
      %4823 = vset.pattern.permute.xlu0 0
      %4824 = vperm.xlu0 %4823, %v4814
      %v4825 = vpop.permute.xlu0 %4824
      %4828 = vset.pattern.permute.xlu0 0
      %4829 = vperm.xlu0 %4828, %v4815
      %v4830 = vpop.permute.xlu0 %4829
      %4833 = vset.pattern.permute.xlu0 0
      %4834 = vperm.xlu0 %4833, %v4816
      %v4835 = vpop.permute.xlu0 %4834
      %4838 = vset.pattern.permute.xlu0 0
      %4839 = vperm.xlu0 %4838, %v4817
      %v4840 = vpop.permute.xlu0 %4839
      %4843 = vset.pattern.permute.xlu0 0
      %4844 = vperm.xlu0 %4843, %v4818
      %v4845 = vpop.permute.xlu0 %4844
      %4848 = vset.pattern.permute.xlu0 0
      %4849 = vperm.xlu0 %4848, %v4819
      %v4850 = vpop.permute.xlu0 %4849
      %4853 = vset.pattern.permute.xlu0 0
      %4854 = vperm.xlu0 %4853, %v4820
      %v4855 = vpop.permute.xlu0 %4854
      %4858 = vset.pattern.permute.xlu0 0
      %4859 = vperm.xlu0 %4858, %v4821
      %v4860 = vpop.permute.xlu0 %4859
      %vm4862 = vcmask 982016
      %v4864 = vsel %vm4862, %v4806, 0
      %v4867 = vsel %vm4862, %v4807, 0
      %v4870 = vsel %vm4862, %v4808, 0
      %v4873 = vsel %vm4862, %v4809, 0
      %v4876 = vsel %vm4862, %v4810, 0
      %v4879 = vsel %vm4862, %v4811, 0
      %v4882 = vsel %vm4862, %v4812, 0
      %v4885 = vsel %vm4862, %v4813, 0
      %4887 = vmatpush.msra.mxu0 0.0
      %4888 = vmatpush.msra.mxu0 %v4805
      %4889 = vmatpush.msra.mxu0 %v4804
      %4890 = vmatpush.msra.mxu0 %v4803
      %4891 = vmatpush.msra.mxu0 %v4802
      %4892 = vmatpush.msra.mxu0 %v4801
      %4893 = vmatpush.msra.mxu0 %v4800
      %4894 = vmatpush.msra.mxu0 %v4799
      %4895 = vmatpush.msra.mxu0 %v4798
      %4896 = vmatpush.msra.mxu0 %v4797
      %4897 = vmatpush.msra.mxu0 %v4796
      %4898 = vmatpush.msra.mxu0 %v4795
      %4899 = vmatpush.msra.mxu0 %v4794
      %4900 = vmatpush.msra.mxu0 %v4793
      %4901 = vmatpush.msra.mxu0 %v4792
      %4902 = vmatpush.msra.mxu0 %v4791
      %4903 = vmatmul.f32.gmra.mxu0 %v4864
      %v4904 = vpop.f32.mrf.mxu0
      %v4905 = vadd.f32 %v4825, %v4904
      %4906 = vmatmul.f32.gmra.mxu0 %v4867
      %v4907 = vpop.f32.mrf.mxu0
      %v4908 = vadd.f32 %v4830, %v4907
      %4909 = vmatmul.f32.gmra.mxu0 %v4870
      %v4910 = vpop.f32.mrf.mxu0
      %v4911 = vadd.f32 %v4835, %v4910
      %4912 = vmatmul.f32.gmra.mxu0 %v4873
      %v4913 = vpop.f32.mrf.mxu0
      %v4914 = vadd.f32 %v4840, %v4913
      %4915 = vmatmul.f32.gmra.mxu0 %v4876
      %v4916 = vpop.f32.mrf.mxu0
      %v4917 = vadd.f32 %v4845, %v4916
      %4918 = vmatmul.f32.gmra.mxu0 %v4879
      %v4919 = vpop.f32.mrf.mxu0
      %v4920 = vadd.f32 %v4850, %v4919
      %4921 = vmatmul.f32.gmra.mxu0 %v4882
      %v4922 = vpop.f32.mrf.mxu0
      %v4923 = vadd.f32 %v4855, %v4922
      %4924 = vmatmul.f32.gmra.mxu0 %v4885
      %v4925 = vpop.f32.mrf.mxu0
      %v4926 = vadd.f32 %v4860, %v4925
      %4927 = vdwg.mxu0
      %v4928 = vmax.f32 %v4905, 0.0
      %v4929 = vmax.f32 %v4908, 0.0
      %v4930 = vmax.f32 %v4911, 0.0
      %v4931 = vmax.f32 %v4914, 0.0
      %v4932 = vmax.f32 %v4917, 0.0
      %v4933 = vmax.f32 %v4920, 0.0
      %v4934 = vmax.f32 %v4923, 0.0
      %v4935 = vmax.f32 %v4926, 0.0
      %v4936 = vld [vmem:[%s18] sm:$0xff]
      %v4937 = vld [vmem:[%s18 + $0x8] sm:$0x3]
      %v4938 = vld [vmem:[%s19] sm:$0xff]
      %v4939 = vld [vmem:[%s19 + $0x8] sm:$0x3]
      %4941 = vset.pattern.permute.xlu0 0
      %4942 = vperm.xlu0 %4941, %v4938
      %v4943 = vpop.permute.xlu0 %4942
      %4946 = vset.pattern.permute.xlu0 0
      %4947 = vperm.xlu0 %4946, %v4939
      %v4948 = vpop.permute.xlu0 %4947
      %vm4950 = vcmask 490496
      %v4952 = vsel %vm4950, %v4936, 0
      %v4955 = vsel %vm4950, %v4937, 0
      %v4958 = vsel %vm1105, %v4935, 0
      %4960 = vmatpush.msra.mxu0 0.0
      %4961 = vmatpush.msra.mxu0 0.0
      %4962 = vmatpush.msra.mxu0 0.0
      %4963 = vmatpush.msra.mxu0 0.0
      %4964 = vmatpush.msra.mxu0 0.0
      %4965 = vmatpush.msra.mxu0 0.0
      %4966 = vmatpush.msra.mxu0 0.0
      %4967 = vmatpush.msra.mxu0 0.0
      %4968 = vmatpush.msra.mxu0 %v4958
      %4969 = vmatpush.msra.mxu0 %v4934
      %4970 = vmatpush.msra.mxu0 %v4933
      %4971 = vmatpush.msra.mxu0 %v4932
      %4972 = vmatpush.msra.mxu0 %v4931
      %4973 = vmatpush.msra.mxu0 %v4930
      %4974 = vmatpush.msra.mxu0 %v4929
      %4975 = vmatpush.msra.mxu0 %v4928
      %4976 = vmatmul.f32.gmra.mxu0 %v4952
      %v4977 = vpop.f32.mrf.mxu0
      %v4978 = vadd.f32 %v4943, %v4977
      %4979 = vmatmul.f32.gmra.mxu0 %v4955
      %v4980 = vpop.f32.mrf.mxu0
      %v4981 = vadd.f32 %v4948, %v4980
      %4982 = vdwg.mxu0
      %vm4983 = vcmask 15360
      %4984 = vst.msk [vmem:[#allocation6] sm:$0xff] %vm4983, %v4978
      %vm4985 = vcmask 9216
      %4986 = vst.msk [vmem:[#allocation6 + $0x8] sm:$0x3] %vm4985, %v4981
      %v4987 = vld [vmem:[#allocation6] sm:$0xff]
      %v4988 = vld [vmem:[#allocation6 + $0x8] sm:$0x3]
      %vm4989 = vcmask 7168
      %4990 = vst.msk [vmem:[%s651] sm:$0xff] %vm4989, %v4987
      %vm4991 = vcmask 1024
      %4992 = vst.msk [vmem:[%s651 + $0x8] sm:$0x3] %vm4991, %v4988
      %v4993 = vld [vmem:[#allocation6] sm:$0xff]
      %v4994 = vld [vmem:[#allocation6 + $0x8] sm:$0x3]
      %4997 = vrot.lane.b32.xlu0 %v4993, 127
      %v4998 = vpop.permute.xlu0 %4997
      %4999 = vrot.lane.b32.xlu0 %v4994, 127
      %v5000 = vpop.permute.xlu0 %4999
      %s5003 = scalar_lea.vmem %s651, 16
      %5004 = vst.msk [vmem:[%s5003] sm:$0xff] %vm4989, %v4998
      %5005 = vst.msk [vmem:[%s5003 + $0x8] sm:$0x3] %vm4991, %v5000
      %s5006 = smul.u32 2, %s31
      %p5007 = scmp.lt.s32.totalorder %s5006, 3
      %s5008 = scalar_select %p5007, %s5006, 3
      %s5009 = smul.addr %s5008, 2
      %s5010 = smul.addr %s5009, 8
      %s5011 = scalar_lea.vmem %s20, %s5010
      // Predicated region
      $region101: #{tpu_custom_call.1} parent=99 // pred_check
        %p5012 = pneg %p479
      $region102: #{tpu_custom_call.1} parent=99 // pred_check_branch
        %5014 = sbr.rel (%p5012) target = $region104
      $region103: #{tpu_custom_call.1} parent=99 // pred_region
        %s5015 = smul.u32 2, %s31
      $region104: #{tpu_custom_call.1} parent=99 // pred_fallthru
        _
    $region100: #{tpu_custom_call.1} parent=5 // pred_fallthru
      _
    %p5016 = scmp.le.s32.totalorder 2, %s26
    // Predicated region
    $region105: #{tpu_custom_call.1} parent=5 // pred_check
      %p5017 = pneg %p5016
    $region106: #{tpu_custom_call.1} parent=5 // pred_check_branch
      %5019 = sbr.rel (%p5017) target = $region108
    $region107: #{tpu_custom_call.1} parent=5 // pred_region
      %s5020 = ssub.s32 %s26, 2
      // Predicated region
      $region109: #{tpu_custom_call.1} parent=107 // pred_check
        %p5021 = pneg %p485
      $region110: #{tpu_custom_call.1} parent=107 // pred_check_branch
        %5023 = sbr.rel (%p5021) target = $region112
      $region111: #{tpu_custom_call.1} parent=107 // pred_region
        %s5024 = smul.u32 2, %s32
        %p5025 = scmp.lt.s32.totalorder %s5024, 3
        %s5026 = scalar_select %p5025, %s5024, 3
        %s5027 = smul.addr %s5026, 2
        %s5028 = smul.addr %s5027, 8
        %s5029 = scalar_lea.vmem %s20, %s5028
      $region112: #{tpu_custom_call.1} parent=107 // pred_fallthru
        _
    $region108: #{tpu_custom_call.1} parent=5 // pred_fallthru
      _
  $region6: #{tpu_custom_call.1} parent=0 // loop_footer
    %s30 = sadd.s32 1, %s26
  $region7: #{tpu_custom_call.1} parent=0 // loop_footer_branch
    %25 = sbr.rel target = $region3
  $region8: #{tpu_custom_call.1} parent=0 // loop_exit
    _

</llo_original>
